<compile_context>
chip_gen: v7x
topology: tpu7x:2x2x1
jax: 0.10.0
libtpu: 0.0.40
codegen_flags: <defaults>
</compile_context>

<pallas_src>
import math

import jax
import jax.numpy as jnp
from jax.experimental import pallas as pl
from jax.experimental.pallas import tpu as pltpu

# ----------------------- small synthetic config -----------------------
SAMPLE_SIZE = (16, 16)
PATCH       = 4
CHANNELS    = 4
D_MODEL     = 64
N_HEADS     = 2
N_LAYERS    = 2
LATENT_CH   = 8
LATENT_SIZE = 4

N_P_Y     = SAMPLE_SIZE[0] // PATCH
N_P_X     = SAMPLE_SIZE[1] // PATCH
N_TOK_X   = N_P_Y * N_P_X               # 16 image tokens
N_TOK_Z   = LATENT_SIZE * LATENT_SIZE   # 16 latent tokens
N_TOK     = N_TOK_X + N_TOK_Z           # 32
PATCH_DIM = PATCH * PATCH * CHANNELS    # 64
MLP_DIM   = 4 * D_MODEL                 # 256
D_HEAD    = D_MODEL // N_HEADS          # 32
N_MOD     = 6 * N_LAYERS + 2            # fused adaLN chunks (14)
LN_EPS    = 1e-6

# Set True only on TPU v7x (2 TensorCores/chip): shards the independent batch
# elements across cores.  Leave False on single-TC v5e / v6e (a grid there is
# only per-step overhead on this tiny kernel).
PARALLEL_BATCH_OVER_CORES = False


# ----------------------- in-kernel helpers -----------------------
def _ln(v):
    mu = jnp.mean(v, axis=-1, keepdims=True)
    var = jnp.mean((v - mu) ** 2, axis=-1, keepdims=True)
    return (v - mu) * jax.lax.rsqrt(var + LN_EPS)


def _gelu_tanh(v):
    # TODO(synk): owl_vaes may use erf-based nn.GELU; tanh approximation used here.
    c = math.sqrt(2.0 / math.pi)
    return 0.5 * v * (1.0 + jnp.tanh(c * (v + 0.044715 * v * v * v)))


def _bf16(v):
    return v.astype(jnp.bfloat16)


# ----------------------- fully fused decoder kernel -----------------------
def _fused_decoder_kernel(
    ts_ref,       # (B,1,1)               f32
    x_tok_ref,    # (B,N_TOK_X,PATCH_DIM) f32  (patchified clean image)
    eps_tok_ref,  # (B,N_TOK_X,PATCH_DIM) f32  (patchified noise)
    z_tok_ref,    # (B,N_TOK_Z,LATENT_CH) f32
    cond_ref,     # (B,D)                 f32  (SiLU(timestep embedding))
    w_in_ref,     # (PATCH_DIM,D)         bf16
    w_in_z_ref,   # (LATENT_CH,D)         bf16
    b_in_z_ref,   # (1,D)                 f32
    pos_x_ref,    # (N_TOK_X,D)           f32
    pos_z_ref,    # (N_TOK_Z,D)           f32
    mod_w_ref,    # (D, N_MOD*D)          bf16  (all adaLN projections, fused)
    mod_b_ref,    # (1, N_MOD*D)          f32
    wqkv_ref,     # (L,D,3D)              bf16
    bqkv_ref,     # (L,1,3D)              f32
    wproj_ref,    # (L,D,D)               bf16
    bproj_ref,    # (L,1,D)               f32
    wfc1_ref,     # (L,D,MLP)             bf16
    bfc1_ref,     # (L,1,MLP)             f32
    wfc2_ref,     # (L,MLP,D)             bf16
    bfc2_ref,     # (L,1,D)               f32
    w_out_ref,    # (D,PATCH_DIM)         bf16
    loss_ref,     # (1,1)                 f32  SMEM output (sum of squared diffs)
    seq_ref,      # (B,N_TOK,D)           f32  VMEM scratch
):
    f32 = jnp.float32
    B = x_tok_ref.shape[0]
    D = D_MODEL

    # ---- noising lerp + regression target (token space == image space up to a permutation) ----
    t = ts_ref[...]                                   # (B,1,1)
    x_tok = x_tok_ref[...].astype(f32)
    eps_tok = eps_tok_ref[...].astype(f32)
    lerpd = x_tok * (1.0 - t) + t * eps_tok           # (B,Nx,P)
    target = eps_tok - x_tok                          # (B,Nx,P)

    # ---- proj_in (no bias) + learned pos enc (image tokens) ----
    xt = jnp.dot(_bf16(lerpd.reshape(B * N_TOK_X, PATCH_DIM)), w_in_ref[...],
                 preferred_element_type=f32)
    xt = xt.reshape(B, N_TOK_X, D) + pos_x_ref[...][None]

    # ---- proj_in_z + learned pos enc (latent tokens) ----
    zt = jnp.dot(_bf16(z_tok_ref[...].reshape(B * N_TOK_Z, LATENT_CH)),
                 w_in_z_ref[...], preferred_element_type=f32) + b_in_z_ref[...]
    zt = zt.reshape(B, N_TOK_Z, D) + pos_z_ref[...][None]

    # ---- assemble sequence in VMEM scratch (sublane-aligned stores; no concat retile) ----
    seq_ref[:, :N_TOK_X, :] = xt
    seq_ref[:, N_TOK_X:, :] = zt
    seq = seq_ref[...]                                # (B,N,D)

    # ---- ONE fused modulation matmul for every adaLN in the network ----
    cond = cond_ref[...].astype(f32)                  # (B,D)
    mods = jnp.dot(_bf16(cond), mod_w_ref[...],
                   preferred_element_type=f32) + mod_b_ref[...]   # (B, N_MOD*D)

    def mod(idx):                                     # static 64-lane slice
        return mods[:, idx * D:(idx + 1) * D][:, None, :]          # (B,1,D)

    att_scale = 1.0 / math.sqrt(D_HEAD)

    # ---- DiT blocks (unrolled; weights stay resident in VMEM) ----
    for l in range(N_LAYERS):
        base = 6 * l
        shift_msa, scale_msa, gate_msa = mod(base + 0), mod(base + 1), mod(base + 2)
        shift_mlp, scale_mlp, gate_mlp = mod(base + 3), mod(base + 4), mod(base + 5)

        # --- attention branch ---
        h = _ln(seq) * (1.0 + scale_msa) + shift_msa
        h2 = _bf16(h.reshape(B * N_TOK, D))

        # single (64,192) QKV matmul per layer
        qkv = jnp.dot(h2, wqkv_ref[l], preferred_element_type=f32) + bqkv_ref[l]
        q = qkv[:, 0 * D:1 * D].reshape(B, N_TOK, D)
        k = qkv[:, 1 * D:2 * D].reshape(B, N_TOK, D)
        v = qkv[:, 2 * D:3 * D].reshape(B, N_TOK, D)

        heads = []
        for hh in range(N_HEADS):
            sl = slice(hh * D_HEAD, (hh + 1) * D_HEAD)
            qh, kh, vh = q[:, :, sl], k[:, :, sl], v[:, :, sl]
            s = jnp.einsum('bnd,bmd->bnm', _bf16(qh), _bf16(kh),
                           preferred_element_type=f32) * att_scale
            s = s - jnp.max(s, axis=-1, keepdims=True)
            p = jnp.exp(s)
            p = p / jnp.sum(p, axis=-1, keepdims=True)     # exact softmax (training loss)
            heads.append(jnp.einsum('bnm,bmd->bnd', _bf16(p), _bf16(vh),
                                    preferred_element_type=f32))   # (B,N,dh)
        o = jnp.concatenate(heads, axis=-1).reshape(B * N_TOK, D)  # lane-concat heads

        attn = jnp.dot(_bf16(o), wproj_ref[l], preferred_element_type=f32) + bproj_ref[l]
        seq = seq + gate_msa * attn.reshape(B, N_TOK, D)

        # --- MLP branch ---
        h = _ln(seq) * (1.0 + scale_mlp) + shift_mlp
        h2 = _bf16(h.reshape(B * N_TOK, D))
        m = jnp.dot(h2, wfc1_ref[l], preferred_element_type=f32) + bfc1_ref[l]
        m = _gelu_tanh(m)
        m = jnp.dot(_bf16(m), wfc2_ref[l], preferred_element_type=f32) + bfc2_ref[l]
        seq = seq + gate_mlp * m.reshape(B, N_TOK, D)

    # ---- FinalLayer (modulated LN, skip_proj=True) + proj_out (no bias) ----
    xo = seq[:, :N_TOK_X, :]                          # (B,Nx,D)
    shift_f = mod(6 * N_LAYERS + 0)
    scale_f = mod(6 * N_LAYERS + 1)
    hf = _ln(xo) * (1.0 + scale_f) + shift_f
    pred = jnp.dot(_bf16(hf.reshape(B * N_TOK_X, D)), w_out_ref[...],
                   preferred_element_type=f32)        # (B*Nx,PATCH_DIM)

    # ---- MSE numerator vs (eps - x); unpatchify is a bijection, so token-space
    #      sum of squared diffs == image-space sum.  Wrapper normalizes.
    diff = pred - target.reshape(B * N_TOK_X, PATCH_DIM)
    loss_ref[0, 0] = jnp.sum(diff * diff)


def fused_decoder_loss(ts, x_tok, eps_tok, z_tok, cond_silu, packed,
                       parallel_batch=False):
    B = x_tok.shape[0]
    data = [ts.astype(jnp.float32).reshape(-1, 1, 1), x_tok, eps_tok, z_tok, cond_silu]
    args = data + list(packed)

    if not parallel_batch:
        # Single-block, grid-less launch (v5e / v6e: one TensorCore).
        out = pl.pallas_call(
            _fused_decoder_kernel,
            out_shape=jax.ShapeDtypeStruct((1, 1), jnp.float32),
            in_specs=[pl.BlockSpec(memory_space=pltpu.MemorySpace.VMEM)
                      for _ in range(len(args))],
            out_specs=pl.BlockSpec(memory_space=pltpu.MemorySpace.SMEM),
            scratch_shapes=[pltpu.VMEM((B, N_TOK, D_MODEL), jnp.float32)],
        )(*args)
        sumsq = out[0, 0]
    else:
        # v7x: batch elements are independent -> parallel grid over B, one per core.
        def batched_spec(a):
            nd = a.ndim
            return pl.BlockSpec((1,) + a.shape[1:],
                                lambda b, _nd=nd: (b,) + (0,) * (_nd - 1))

        def weight_spec(a):
            nd = a.ndim
            return pl.BlockSpec(a.shape, lambda b, _nd=nd: (0,) * _nd)

        in_specs = [batched_spec(a) for a in data] + [weight_spec(a) for a in packed]
        out = pl.pallas_call(
            _fused_decoder_kernel,
            grid=(B,),
            out_shape=jax.ShapeDtypeStruct((B, 1), jnp.float32),
            in_specs=in_specs,
            out_specs=pl.BlockSpec((1, 1), lambda b: (b, 0),
                                   memory_space=pltpu.MemorySpace.SMEM),
            scratch_shapes=[pltpu.VMEM((1, N_TOK, D_MODEL), jnp.float32)],
            compiler_params=pltpu.CompilerParams(dimension_semantics=("parallel",)),
        )(*args)
        sumsq = jnp.sum(out)

    return sumsq / float(B * N_TOK_X * PATCH_DIM)


# ----------------------- parameters (deterministic synthetic init) -----------------------
def init_params(key):
    ks = iter(jax.random.split(key, 64))

    def nrm(shape, scale=0.02):
        return scale * jax.random.normal(next(ks), shape, jnp.float32)

    p = {
        "w_proj_in":   nrm((PATCH_DIM, D_MODEL)),       # bias=False
        "w_proj_out":  nrm((D_MODEL, PATCH_DIM)),       # bias=False
        "w_proj_in_z": nrm((LATENT_CH, D_MODEL)),
        "b_proj_in_z": nrm((D_MODEL,)),
        "pos_x":       nrm((N_TOK_X, D_MODEL)),
        "pos_z":       nrm((N_TOK_Z, D_MODEL)),
        "ts_w1":       nrm((D_MODEL, D_MODEL)),
        "ts_b1":       nrm((D_MODEL,)),
        "ts_w2":       nrm((D_MODEL, D_MODEL)),
        "ts_b2":       nrm((D_MODEL,)),
        "final_ada_w": nrm((D_MODEL, 2 * D_MODEL)),
        "final_ada_b": nrm((2 * D_MODEL,)),
    }
    blocks = []
    for _ in range(N_LAYERS):
        blocks.append(dict(
            ada_w=nrm((D_MODEL, 6 * D_MODEL)), ada_b=nrm((6 * D_MODEL,)),
            wqkv=nrm((D_MODEL, 3 * D_MODEL)),  bqkv=nrm((3 * D_MODEL,)),
            wproj=nrm((D_MODEL, D_MODEL)),     bproj=nrm((D_MODEL,)),
            wfc1=nrm((D_MODEL, MLP_DIM)),      bfc1=nrm((MLP_DIM,)),
            wfc2=nrm((MLP_DIM, D_MODEL)),      bfc2=nrm((D_MODEL,)),
        ))
    p["blocks"] = blocks
    return p


def pack_params(p):
    """Rearrange conventional DiT weights into kernel-friendly slabs.

    Intended to run ONCE, outside the jitted training step (perf-review item):
    the returned device arrays are passed to jit as-is, so no per-step
    reshapes/casts are traced.
    """
    D = D_MODEL
    bf16, f32 = jnp.bfloat16, jnp.float32

    def per_layer(fn, dtype):
        return jnp.stack([fn(blk) for blk in p["blocks"]]).astype(dtype)

    # All adaLN projections (6 per layer + 2 final) fused into one wide slab.
    mod_w = jnp.concatenate([blk["ada_w"] for blk in p["blocks"]] + [p["final_ada_w"]], axis=1)
    mod_b = jnp.concatenate([blk["ada_b"] for blk in p["blocks"]] + [p["final_ada_b"]], axis=0)

    return [
        p["w_proj_in"].astype(bf16),                               # (PATCH_DIM,D)
        p["w_proj_in_z"].astype(bf16),                             # (LATENT_CH,D)
        p["b_proj_in_z"].reshape(1, D).astype(f32),                # (1,D)
        p["pos_x"].astype(f32),                                    # (N_TOK_X,D)
        p["pos_z"].astype(f32),                                    # (N_TOK_Z,D)
        mod_w.astype(bf16),                                        # (D, N_MOD*D)
        mod_b.reshape(1, N_MOD * D).astype(f32),                   # (1, N_MOD*D)
        per_layer(lambda b: b["wqkv"], bf16),                      # (L,D,3D)
        per_layer(lambda b: b["bqkv"].reshape(1, 3 * D), f32),     # (L,1,3D)
        per_layer(lambda b: b["wproj"], bf16),                     # (L,D,D)
        per_layer(lambda b: b["bproj"].reshape(1, D), f32),        # (L,1,D)
        per_layer(lambda b: b["wfc1"], bf16),                      # (L,D,MLP)
        per_layer(lambda b: b["bfc1"].reshape(1, MLP_DIM), f32),   # (L,1,MLP)
        per_layer(lambda b: b["wfc2"], bf16),                      # (L,MLP,D)
        per_layer(lambda b: b["bfc2"].reshape(1, D), f32),         # (L,1,D)
        p["w_proj_out"].astype(bf16),                              # (D,PATCH_DIM)
    ]


def prepare_params(p):
    """One-time, out-of-jit preprocessing: split wrapper-side ts-embed weights
    and pack kernel weights into their VMEM-friendly bf16/f32 slabs."""
    ts_params = {k: p[k] for k in ("ts_w1", "ts_b1", "ts_w2", "ts_b2")}
    return ts_params, pack_params(p)


# ----------------------- JAX glue (tiny ops; no standalone pallas_calls) -----------------------
def timestep_sinusoid(ts, dim, max_period=10000.0):
    # TODO(synk): [cos, sin] ordering assumed; verify against owl_vaes TimestepEmbedding.
    half = dim // 2
    freqs = jnp.exp(-math.log(max_period) * jnp.arange(half, dtype=jnp.float32) / half)
    args = ts.astype(jnp.float32)[:, None] * freqs[None, :]
    return jnp.concatenate([jnp.cos(args), jnp.sin(args)], axis=-1)


def cond_embedding(ts_params, ts):
    h = timestep_sinusoid(ts, D_MODEL) @ ts_params["ts_w1"] + ts_params["ts_b1"]
    h = jax.nn.silu(h)
    cond = h @ ts_params["ts_w2"] + ts_params["ts_b2"]
    return jax.nn.silu(cond)   # SiLU'd conditioning feeds the fused adaLN projection in-kernel


def patchify(img):
    """(B,C,H,W) -> (B, n_p_y*n_p_x, p*p*C), matching the torch view/permute order."""
    b, c, _, _ = img.shape
    t = img.reshape(b, c, N_P_Y, PATCH, N_P_X, PATCH)
    t = jnp.transpose(t, (0, 2, 4, 3, 5, 1))
    return t.reshape(b, N_P_Y * N_P_X, PATCH * PATCH * c)


def diffusion_decoder_forward(ts_params, packed, x, z, key, ts_mu=0.0, ts_sigma=1.0):
    # TODO(synk): torch.randn RNG stream not reproducible in JAX; sampling uses jax.random.
    B = x.shape[0]
    k_ts, k_eps = jax.random.split(key)
    ts = jax.nn.sigmoid(jax.random.normal(k_ts, (B,), x.dtype) * ts_sigma + ts_mu)
    eps = jax.random.normal(k_eps, x.shape, x.dtype)

    # patchify is an element bijection: lerp / target / MSE commute with it, so the fused
    # kernel works entirely in token space and never materializes the unpatchified image.
    x_tok = patchify(x)
    eps_tok = patchify(eps)
    zb, zc, zh, zw = z.shape
    z_tok = jnp.transpose(z, (0, 2, 3, 1)).reshape(zb, zh * zw, zc)

    cond_silu = cond_embedding(ts_params, ts)
    return fused_decoder_loss(ts, x_tok, eps_tok, z_tok, cond_silu, packed,
                              parallel_batch=PARALLEL_BATCH_OVER_CORES)


if __name__ == "__main__":
    key = jax.random.PRNGKey(0)
    kp, kx, kz, kn = jax.random.split(key, 4)
    params = init_params(kp)
    # Weight packing happens once, outside jit (perf-review item).
    ts_params, packed = prepare_params(params)
    x = jax.random.normal(kx, (2, CHANNELS, SAMPLE_SIZE[0], SAMPLE_SIZE[1]), jnp.float32)
    z = jax.random.normal(kz, (2, LATENT_CH, LATENT_SIZE, LATENT_SIZE), jnp.float32)
    loss = jax.jit(diffusion_decoder_forward)(ts_params, packed, x, z, kn)
    jax.block_until_ready(loss)
    assert loss.shape == () and jnp.isfinite(loss)
    print("KERNEL_OK")
</pallas_src>

<mosaic_0001>
module attributes {stable_mosaic.version = 11 : i64} {
  func.func @_fused_decoder_kernel(%arg0: memref<2x1x1xf32, #tpu.memory_space<vmem>>, %arg1: memref<2x16x64xf32, #tpu.memory_space<vmem>>, %arg2: memref<2x16x64xf32, #tpu.memory_space<vmem>>, %arg3: memref<2x16x8xf32, #tpu.memory_space<vmem>>, %arg4: memref<2x64xf32, #tpu.memory_space<vmem>>, %arg5: memref<64x64xbf16, #tpu.memory_space<vmem>>, %arg6: memref<8x64xbf16, #tpu.memory_space<vmem>>, %arg7: memref<1x64xf32, #tpu.memory_space<vmem>>, %arg8: memref<16x64xf32, #tpu.memory_space<vmem>>, %arg9: memref<16x64xf32, #tpu.memory_space<vmem>>, %arg10: memref<64x896xbf16, #tpu.memory_space<vmem>>, %arg11: memref<1x896xf32, #tpu.memory_space<vmem>>, %arg12: memref<2x64x192xbf16, #tpu.memory_space<vmem>>, %arg13: memref<2x1x192xf32, #tpu.memory_space<vmem>>, %arg14: memref<2x64x64xbf16, #tpu.memory_space<vmem>>, %arg15: memref<2x1x64xf32, #tpu.memory_space<vmem>>, %arg16: memref<2x64x256xbf16, #tpu.memory_space<vmem>>, %arg17: memref<2x1x256xf32, #tpu.memory_space<vmem>>, %arg18: memref<2x256x64xbf16, #tpu.memory_space<vmem>>, %arg19: memref<2x1x64xf32, #tpu.memory_space<vmem>>, %arg20: memref<64x64xbf16, #tpu.memory_space<vmem>>, %arg21: memref<1x1xf32, #tpu.memory_space<smem>>, %arg22: memref<2x32x64xf32, #tpu.memory_space<vmem>>) attributes {dimension_semantics = [], scalar_prefetch = 0 : i64, scratch_operands = 1 : i64, tpu.core_type = #tpu.core_type<tc>} {
    %c0 = arith.constant 0 : index
    %c0_0 = arith.constant 0 : index
    %c0_1 = arith.constant 0 : index
    %0 = vector.load %arg0[%c0, %c0_0, %c0_1] : memref<2x1x1xf32, #tpu.memory_space<vmem>>, vector<2x1x1xf32>
    %c0_2 = arith.constant 0 : index
    %c0_3 = arith.constant 0 : index
    %c0_4 = arith.constant 0 : index
    %1 = vector.load %arg1[%c0_2, %c0_3, %c0_4] : memref<2x16x64xf32, #tpu.memory_space<vmem>>, vector<2x16x64xf32>
    %c0_5 = arith.constant 0 : index
    %c0_6 = arith.constant 0 : index
    %c0_7 = arith.constant 0 : index
    %2 = vector.load %arg2[%c0_5, %c0_6, %c0_7] : memref<2x16x64xf32, #tpu.memory_space<vmem>>, vector<2x16x64xf32>
    %cst = arith.constant 1.000000e+00 : f32
    %3 = vector.broadcast %cst : f32 to vector<2x1x1xf32>
    %4 = arith.subf %3, %0 : vector<2x1x1xf32>
    %5 = vector.broadcast %4 : vector<2x1x1xf32> to vector<2x16x64xf32>
    %6 = arith.mulf %1, %5 : vector<2x16x64xf32>
    %7 = vector.broadcast %0 : vector<2x1x1xf32> to vector<2x16x64xf32>
    %8 = arith.mulf %7, %2 : vector<2x16x64xf32>
    %9 = arith.addf %6, %8 : vector<2x16x64xf32>
    %10 = arith.subf %2, %1 : vector<2x16x64xf32>
    %11 = vector.shape_cast %9 : vector<2x16x64xf32> to vector<32x64xf32>
    %12 = arith.truncf %11 : vector<32x64xf32> to vector<32x64xbf16>
    %c0_8 = arith.constant 0 : index
    %c0_9 = arith.constant 0 : index
    %13 = vector.load %arg5[%c0_8, %c0_9] : memref<64x64xbf16, #tpu.memory_space<vmem>>, vector<64x64xbf16>
    %cst_10 = arith.constant dense<0.000000e+00> : vector<32x64xf32>
    %14 = tpu.matmul %12, %13, %cst_10 {dimension_numbers = #tpu.dot_dimension_numbers<[1], [0], [0], [1], [0, 0, 1, 1], [], []>} : vector<32x64xbf16>, vector<64x64xbf16>, vector<32x64xf32> -> vector<32x64xf32>
    %15 = vector.shape_cast %14 : vector<32x64xf32> to vector<2x16x64xf32>
    %c0_11 = arith.constant 0 : index
    %c0_12 = arith.constant 0 : index
    %16 = vector.load %arg8[%c0_11, %c0_12] : memref<16x64xf32, #tpu.memory_space<vmem>>, vector<16x64xf32>
    %17 = vector.shape_cast %16 : vector<16x64xf32> to vector<1x16x64xf32>
    %18 = vector.broadcast %17 : vector<1x16x64xf32> to vector<2x16x64xf32>
    %19 = arith.addf %15, %18 : vector<2x16x64xf32>
    %c0_13 = arith.constant 0 : index
    %c0_14 = arith.constant 0 : index
    %c0_15 = arith.constant 0 : index
    %20 = vector.load %arg3[%c0_13, %c0_14, %c0_15] : memref<2x16x8xf32, #tpu.memory_space<vmem>>, vector<2x16x8xf32>
    %21 = vector.shape_cast %20 : vector<2x16x8xf32> to vector<32x8xf32>
    %22 = arith.truncf %21 : vector<32x8xf32> to vector<32x8xbf16>
    %c0_16 = arith.constant 0 : index
    %c0_17 = arith.constant 0 : index
    %23 = vector.load %arg6[%c0_16, %c0_17] : memref<8x64xbf16, #tpu.memory_space<vmem>>, vector<8x64xbf16>
    %cst_18 = arith.constant dense<0.000000e+00> : vector<32x64xf32>
    %24 = tpu.matmul %22, %23, %cst_18 {dimension_numbers = #tpu.dot_dimension_numbers<[1], [0], [0], [1], [0, 0, 1, 1], [], []>} : vector<32x8xbf16>, vector<8x64xbf16>, vector<32x64xf32> -> vector<32x64xf32>
    %c0_19 = arith.constant 0 : index
    %c0_20 = arith.constant 0 : index
    %25 = vector.load %arg7[%c0_19, %c0_20] : memref<1x64xf32, #tpu.memory_space<vmem>>, vector<1x64xf32>
    %26 = vector.broadcast %25 : vector<1x64xf32> to vector<32x64xf32>
    %27 = arith.addf %24, %26 : vector<32x64xf32>
    %28 = vector.shape_cast %27 : vector<32x64xf32> to vector<2x16x64xf32>
    %c0_21 = arith.constant 0 : index
    %c0_22 = arith.constant 0 : index
    %29 = vector.load %arg9[%c0_21, %c0_22] : memref<16x64xf32, #tpu.memory_space<vmem>>, vector<16x64xf32>
    %30 = vector.shape_cast %29 : vector<16x64xf32> to vector<1x16x64xf32>
    %31 = vector.broadcast %30 : vector<1x16x64xf32> to vector<2x16x64xf32>
    %32 = arith.addf %28, %31 : vector<2x16x64xf32>
    %c0_23 = arith.constant 0 : index
    %c0_24 = arith.constant 0 : index
    %c0_25 = arith.constant 0 : index
    %33 = vector.load %arg22[%c0_23, %c0_24, %c0_25] : memref<2x32x64xf32, #tpu.memory_space<vmem>>, vector<2x16x64xf32>
    tpu.vector_store %arg22[%c0_23, %c0_24, %c0_25], %19 {strides = array<i32>} : memref<2x32x64xf32, #tpu.memory_space<vmem>>, vector<2x16x64xf32>,
    %c0_26 = arith.constant 0 : index
    %c16 = arith.constant 16 : index
    %c0_27 = arith.constant 0 : index
    %34 = vector.load %arg22[%c0_26, %c16, %c0_27] : memref<2x32x64xf32, #tpu.memory_space<vmem>>, vector<2x16x64xf32>
    tpu.vector_store %arg22[%c0_26, %c16, %c0_27], %32 {strides = array<i32>} : memref<2x32x64xf32, #tpu.memory_space<vmem>>, vector<2x16x64xf32>,
    %c0_28 = arith.constant 0 : index
    %c0_29 = arith.constant 0 : index
    %c0_30 = arith.constant 0 : index
    %35 = vector.load %arg22[%c0_28, %c0_29, %c0_30] : memref<2x32x64xf32, #tpu.memory_space<vmem>>, vector<2x32x64xf32>
    %c0_31 = arith.constant 0 : index
    %c0_32 = arith.constant 0 : index
    %36 = vector.load %arg4[%c0_31, %c0_32] : memref<2x64xf32, #tpu.memory_space<vmem>>, vector<2x64xf32>
    %37 = arith.truncf %36 : vector<2x64xf32> to vector<2x64xbf16>
    %c0_33 = arith.constant 0 : index
    %c0_34 = arith.constant 0 : index
    %38 = vector.load %arg10[%c0_33, %c0_34] : memref<64x896xbf16, #tpu.memory_space<vmem>>, vector<64x896xbf16>
    %cst_35 = arith.constant dense<0.000000e+00> : vector<2x896xf32>
    %39 = tpu.matmul %37, %38, %cst_35 {dimension_numbers = #tpu.dot_dimension_numbers<[1], [0], [0], [1], [0, 0, 1, 1], [], []>} : vector<2x64xbf16>, vector<64x896xbf16>, vector<2x896xf32> -> vector<2x896xf32>
    %c0_36 = arith.constant 0 : index
    %c0_37 = arith.constant 0 : index
    %40 = vector.load %arg11[%c0_36, %c0_37] : memref<1x896xf32, #tpu.memory_space<vmem>>, vector<1x896xf32>
    %41 = vector.broadcast %40 : vector<1x896xf32> to vector<2x896xf32>
    %42 = arith.addf %39, %41 : vector<2x896xf32>
    %43 = vector.extract_strided_slice %42 {offsets = [0, 0], sizes = [2, 64], strides = [1, 1]} : vector<2x896xf32> to vector<2x64xf32>
    %44 = vector.shape_cast %43 : vector<2x64xf32> to vector<2x1x64xf32>
    %45 = vector.extract_strided_slice %42 {offsets = [0, 64], sizes = [2, 64], strides = [1, 1]} : vector<2x896xf32> to vector<2x64xf32>
    %46 = vector.shape_cast %45 : vector<2x64xf32> to vector<2x1x64xf32>
    %47 = vector.extract_strided_slice %42 {offsets = [0, 128], sizes = [2, 64], strides = [1, 1]} : vector<2x896xf32> to vector<2x64xf32>
    %48 = vector.shape_cast %47 : vector<2x64xf32> to vector<2x1x64xf32>
    %49 = vector.extract_strided_slice %42 {offsets = [0, 192], sizes = [2, 64], strides = [1, 1]} : vector<2x896xf32> to vector<2x64xf32>
    %50 = vector.shape_cast %49 : vector<2x64xf32> to vector<2x1x64xf32>
    %51 = vector.extract_strided_slice %42 {offsets = [0, 256], sizes = [2, 64], strides = [1, 1]} : vector<2x896xf32> to vector<2x64xf32>
    %52 = vector.shape_cast %51 : vector<2x64xf32> to vector<2x1x64xf32>
    %53 = vector.extract_strided_slice %42 {offsets = [0, 320], sizes = [2, 64], strides = [1, 1]} : vector<2x896xf32> to vector<2x64xf32>
    %54 = vector.shape_cast %53 : vector<2x64xf32> to vector<2x1x64xf32>
    %cst_38 = arith.constant dense<0.000000e+00> : vector<2x32xf32>
    %55 = vector.multi_reduction <add>, %35, %cst_38 [2] : vector<2x32x64xf32> to vector<2x32xf32>
    %56 = vector.shape_cast %55 : vector<2x32xf32> to vector<2x32x1xf32>
    %cst_39 = arith.constant 6.400000e+01 : f32
    %57 = vector.broadcast %cst_39 : f32 to vector<2x32x1xf32>
    %58 = arith.divf %56, %57 : vector<2x32x1xf32>
    %59 = vector.broadcast %58 : vector<2x32x1xf32> to vector<2x32x64xf32>
    %60 = arith.subf %35, %59 : vector<2x32x64xf32>
    %61 = arith.mulf %60, %60 : vector<2x32x64xf32>
    %cst_40 = arith.constant dense<0.000000e+00> : vector<2x32xf32>
    %62 = vector.multi_reduction <add>, %61, %cst_40 [2] : vector<2x32x64xf32> to vector<2x32xf32>
    %63 = vector.shape_cast %62 : vector<2x32xf32> to vector<2x32x1xf32>
    %cst_41 = arith.constant 6.400000e+01 : f32
    %64 = vector.broadcast %cst_41 : f32 to vector<2x32x1xf32>
    %65 = arith.divf %63, %64 : vector<2x32x1xf32>
    %66 = vector.broadcast %58 : vector<2x32x1xf32> to vector<2x32x64xf32>
    %67 = arith.subf %35, %66 : vector<2x32x64xf32>
    %cst_42 = arith.constant 9.99999997E-7 : f32
    %68 = vector.broadcast %cst_42 : f32 to vector<2x32x1xf32>
    %69 = arith.addf %65, %68 : vector<2x32x1xf32>
    %70 = math.rsqrt %69 : vector<2x32x1xf32>
    %71 = vector.broadcast %70 : vector<2x32x1xf32> to vector<2x32x64xf32>
    %72 = arith.mulf %67, %71 : vector<2x32x64xf32>
    %cst_43 = arith.constant 1.000000e+00 : f32
    %73 = vector.broadcast %cst_43 : f32 to vector<2x1x64xf32>
    %74 = arith.addf %73, %46 : vector<2x1x64xf32>
    %75 = vector.broadcast %74 : vector<2x1x64xf32> to vector<2x32x64xf32>
    %76 = arith.mulf %72, %75 : vector<2x32x64xf32>
    %77 = vector.broadcast %44 : vector<2x1x64xf32> to vector<2x32x64xf32>
    %78 = arith.addf %76, %77 : vector<2x32x64xf32>
    %79 = vector.shape_cast %78 : vector<2x32x64xf32> to vector<64x64xf32>
    %80 = arith.truncf %79 : vector<64x64xf32> to vector<64x64xbf16>
    %c0_44 = arith.constant 0 : index
    %c0_45 = arith.constant 0 : index
    %c0_46 = arith.constant 0 : index
    %81 = vector.load %arg12[%c0_44, %c0_45, %c0_46] : memref<2x64x192xbf16, #tpu.memory_space<vmem>>, vector<1x64x192xbf16>
    %82 = vector.shape_cast %81 : vector<1x64x192xbf16> to vector<64x192xbf16>
    %cst_47 = arith.constant dense<0.000000e+00> : vector<64x192xf32>
    %83 = tpu.matmul %80, %82, %cst_47 {dimension_numbers = #tpu.dot_dimension_numbers<[1], [0], [0], [1], [0, 0, 1, 1], [], []>} : vector<64x64xbf16>, vector<64x192xbf16>, vector<64x192xf32> -> vector<64x192xf32>
    %c0_48 = arith.constant 0 : index
    %c0_49 = arith.constant 0 : index
    %c0_50 = arith.constant 0 : index
    %84 = vector.load %arg13[%c0_48, %c0_49, %c0_50] : memref<2x1x192xf32, #tpu.memory_space<vmem>>, vector<1x1x192xf32>
    %85 = vector.shape_cast %84 : vector<1x1x192xf32> to vector<1x192xf32>
    %86 = vector.broadcast %85 : vector<1x192xf32> to vector<64x192xf32>
    %87 = arith.addf %83, %86 : vector<64x192xf32>
    %88 = vector.extract_strided_slice %87 {offsets = [0, 0], sizes = [64, 64], strides = [1, 1]} : vector<64x192xf32> to vector<64x64xf32>
    %89 = vector.shape_cast %88 : vector<64x64xf32> to vector<2x32x64xf32>
    %90 = vector.extract_strided_slice %87 {offsets = [0, 64], sizes = [64, 64], strides = [1, 1]} : vector<64x192xf32> to vector<64x64xf32>
    %91 = vector.shape_cast %90 : vector<64x64xf32> to vector<2x32x64xf32>
    %92 = vector.extract_strided_slice %87 {offsets = [0, 128], sizes = [64, 64], strides = [1, 1]} : vector<64x192xf32> to vector<64x64xf32>
    %93 = vector.shape_cast %92 : vector<64x64xf32> to vector<2x32x64xf32>
    %94 = vector.extract_strided_slice %89 {offsets = [0, 0, 0], sizes = [2, 32, 32], strides = [1, 1, 1]} : vector<2x32x64xf32> to vector<2x32x32xf32>
    %95 = vector.extract_strided_slice %91 {offsets = [0, 0, 0], sizes = [2, 32, 32], strides = [1, 1, 1]} : vector<2x32x64xf32> to vector<2x32x32xf32>
    %96 = vector.extract_strided_slice %93 {offsets = [0, 0, 0], sizes = [2, 32, 32], strides = [1, 1, 1]} : vector<2x32x64xf32> to vector<2x32x32xf32>
    %97 = arith.truncf %94 : vector<2x32x32xf32> to vector<2x32x32xbf16>
    %98 = arith.truncf %95 : vector<2x32x32xf32> to vector<2x32x32xbf16>
    "tpu.trace_start"() <{level = 10 : i32, message = "bnd,bmd->bnm"}> : () -> ()
    %cst_51 = arith.constant dense<0.000000e+00> : vector<2x32x32xf32>
    %99 = tpu.matmul %97, %98, %cst_51 {dimension_numbers = #tpu.dot_dimension_numbers<[2], [2], [1], [1], [0, 0, 0, 1, 1, 1], [0], [0]>} : vector<2x32x32xbf16>, vector<2x32x32xbf16>, vector<2x32x32xf32> -> vector<2x32x32xf32>
    "tpu.trace_stop"() : () -> ()
    %cst_52 = arith.constant 0.176776692 : f32
    %100 = vector.broadcast %cst_52 : f32 to vector<2x32x32xf32>
    %101 = arith.mulf %99, %100 : vector<2x32x32xf32>
    %cst_53 = arith.constant dense<0xFF800000> : vector<2x32xf32>
    %102 = vector.multi_reduction <maximumf>, %101, %cst_53 [2] : vector<2x32x32xf32> to vector<2x32xf32>
    %103 = vector.shape_cast %102 : vector<2x32xf32> to vector<2x32x1xf32>
    %104 = vector.broadcast %103 : vector<2x32x1xf32> to vector<2x32x32xf32>
    %105 = arith.subf %101, %104 : vector<2x32x32xf32>
    %106 = math.exp %105 : vector<2x32x32xf32>
    %cst_54 = arith.constant dense<0.000000e+00> : vector<2x32xf32>
    %107 = vector.multi_reduction <add>, %106, %cst_54 [2] : vector<2x32x32xf32> to vector<2x32xf32>
    %108 = vector.shape_cast %107 : vector<2x32xf32> to vector<2x32x1xf32>
    %109 = vector.broadcast %108 : vector<2x32x1xf32> to vector<2x32x32xf32>
    %110 = arith.divf %106, %109 : vector<2x32x32xf32>
    %111 = arith.truncf %110 : vector<2x32x32xf32> to vector<2x32x32xbf16>
    %112 = arith.truncf %96 : vector<2x32x32xf32> to vector<2x32x32xbf16>
    "tpu.trace_start"() <{level = 10 : i32, message = "bnm,bmd->bnd"}> : () -> ()
    %cst_55 = arith.constant dense<0.000000e+00> : vector<2x32x32xf32>
    %113 = tpu.matmul %111, %112, %cst_55 {dimension_numbers = #tpu.dot_dimension_numbers<[2], [1], [1], [2], [0, 0, 0, 1, 1, 2], [0], [0]>} : vector<2x32x32xbf16>, vector<2x32x32xbf16>, vector<2x32x32xf32> -> vector<2x32x32xf32>
    "tpu.trace_stop"() : () -> ()
    %114 = vector.extract_strided_slice %89 {offsets = [0, 0, 32], sizes = [2, 32, 32], strides = [1, 1, 1]} : vector<2x32x64xf32> to vector<2x32x32xf32>
    %115 = vector.extract_strided_slice %91 {offsets = [0, 0, 32], sizes = [2, 32, 32], strides = [1, 1, 1]} : vector<2x32x64xf32> to vector<2x32x32xf32>
    %116 = vector.extract_strided_slice %93 {offsets = [0, 0, 32], sizes = [2, 32, 32], strides = [1, 1, 1]} : vector<2x32x64xf32> to vector<2x32x32xf32>
    %117 = arith.truncf %114 : vector<2x32x32xf32> to vector<2x32x32xbf16>
    %118 = arith.truncf %115 : vector<2x32x32xf32> to vector<2x32x32xbf16>
    "tpu.trace_start"() <{level = 10 : i32, message = "bnd,bmd->bnm"}> : () -> ()
    %cst_56 = arith.constant dense<0.000000e+00> : vector<2x32x32xf32>
    %119 = tpu.matmul %117, %118, %cst_56 {dimension_numbers = #tpu.dot_dimension_numbers<[2], [2], [1], [1], [0, 0, 0, 1, 1, 1], [0], [0]>} : vector<2x32x32xbf16>, vector<2x32x32xbf16>, vector<2x32x32xf32> -> vector<2x32x32xf32>
    "tpu.trace_stop"() : () -> ()
    %cst_57 = arith.constant 0.176776692 : f32
    %120 = vector.broadcast %cst_57 : f32 to vector<2x32x32xf32>
    %121 = arith.mulf %119, %120 : vector<2x32x32xf32>
    %cst_58 = arith.constant dense<0xFF800000> : vector<2x32xf32>
    %122 = vector.multi_reduction <maximumf>, %121, %cst_58 [2] : vector<2x32x32xf32> to vector<2x32xf32>
    %123 = vector.shape_cast %122 : vector<2x32xf32> to vector<2x32x1xf32>
    %124 = vector.broadcast %123 : vector<2x32x1xf32> to vector<2x32x32xf32>
    %125 = arith.subf %121, %124 : vector<2x32x32xf32>
    %126 = math.exp %125 : vector<2x32x32xf32>
    %cst_59 = arith.constant dense<0.000000e+00> : vector<2x32xf32>
    %127 = vector.multi_reduction <add>, %126, %cst_59 [2] : vector<2x32x32xf32> to vector<2x32xf32>
    %128 = vector.shape_cast %127 : vector<2x32xf32> to vector<2x32x1xf32>
    %129 = vector.broadcast %128 : vector<2x32x1xf32> to vector<2x32x32xf32>
    %130 = arith.divf %126, %129 : vector<2x32x32xf32>
    %131 = arith.truncf %130 : vector<2x32x32xf32> to vector<2x32x32xbf16>
    %132 = arith.truncf %116 : vector<2x32x32xf32> to vector<2x32x32xbf16>
    "tpu.trace_start"() <{level = 10 : i32, message = "bnm,bmd->bnd"}> : () -> ()
    %cst_60 = arith.constant dense<0.000000e+00> : vector<2x32x32xf32>
    %133 = tpu.matmul %131, %132, %cst_60 {dimension_numbers = #tpu.dot_dimension_numbers<[2], [1], [1], [2], [0, 0, 0, 1, 1, 2], [0], [0]>} : vector<2x32x32xbf16>, vector<2x32x32xbf16>, vector<2x32x32xf32> -> vector<2x32x32xf32>
    "tpu.trace_stop"() : () -> ()
    %134 = tpu.concatenate %113, %133 in 2 : vector<2x32x32xf32>, vector<2x32x32xf32> -> vector<2x32x64xf32>
    %135 = vector.shape_cast %134 : vector<2x32x64xf32> to vector<64x64xf32>
    %136 = arith.truncf %135 : vector<64x64xf32> to vector<64x64xbf16>
    %c0_61 = arith.constant 0 : index
    %c0_62 = arith.constant 0 : index
    %c0_63 = arith.constant 0 : index
    %137 = vector.load %arg14[%c0_61, %c0_62, %c0_63] : memref<2x64x64xbf16, #tpu.memory_space<vmem>>, vector<1x64x64xbf16>
    %138 = vector.shape_cast %137 : vector<1x64x64xbf16> to vector<64x64xbf16>
    %cst_64 = arith.constant dense<0.000000e+00> : vector<64x64xf32>
    %139 = tpu.matmul %136, %138, %cst_64 {dimension_numbers = #tpu.dot_dimension_numbers<[1], [0], [0], [1], [0, 0, 1, 1], [], []>} : vector<64x64xbf16>, vector<64x64xbf16>, vector<64x64xf32> -> vector<64x64xf32>
    %c0_65 = arith.constant 0 : index
    %c0_66 = arith.constant 0 : index
    %c0_67 = arith.constant 0 : index
    %140 = vector.load %arg15[%c0_65, %c0_66, %c0_67] : memref<2x1x64xf32, #tpu.memory_space<vmem>>, vector<1x1x64xf32>
    %141 = vector.shape_cast %140 : vector<1x1x64xf32> to vector<1x64xf32>
    %142 = vector.broadcast %141 : vector<1x64xf32> to vector<64x64xf32>
    %143 = arith.addf %139, %142 : vector<64x64xf32>
    %144 = vector.shape_cast %143 : vector<64x64xf32> to vector<2x32x64xf32>
    %145 = vector.broadcast %48 : vector<2x1x64xf32> to vector<2x32x64xf32>
    %146 = arith.mulf %145, %144 : vector<2x32x64xf32>
    %147 = arith.addf %35, %146 : vector<2x32x64xf32>
    %cst_68 = arith.constant dense<0.000000e+00> : vector<2x32xf32>
    %148 = vector.multi_reduction <add>, %147, %cst_68 [2] : vector<2x32x64xf32> to vector<2x32xf32>
    %149 = vector.shape_cast %148 : vector<2x32xf32> to vector<2x32x1xf32>
    %cst_69 = arith.constant 6.400000e+01 : f32
    %150 = vector.broadcast %cst_69 : f32 to vector<2x32x1xf32>
    %151 = arith.divf %149, %150 : vector<2x32x1xf32>
    %152 = vector.broadcast %151 : vector<2x32x1xf32> to vector<2x32x64xf32>
    %153 = arith.subf %147, %152 : vector<2x32x64xf32>
    %154 = arith.mulf %153, %153 : vector<2x32x64xf32>
    %cst_70 = arith.constant dense<0.000000e+00> : vector<2x32xf32>
    %155 = vector.multi_reduction <add>, %154, %cst_70 [2] : vector<2x32x64xf32> to vector<2x32xf32>
    %156 = vector.shape_cast %155 : vector<2x32xf32> to vector<2x32x1xf32>
    %cst_71 = arith.constant 6.400000e+01 : f32
    %157 = vector.broadcast %cst_71 : f32 to vector<2x32x1xf32>
    %158 = arith.divf %156, %157 : vector<2x32x1xf32>
    %159 = vector.broadcast %151 : vector<2x32x1xf32> to vector<2x32x64xf32>
    %160 = arith.subf %147, %159 : vector<2x32x64xf32>
    %cst_72 = arith.constant 9.99999997E-7 : f32
    %161 = vector.broadcast %cst_72 : f32 to vector<2x32x1xf32>
    %162 = arith.addf %158, %161 : vector<2x32x1xf32>
    %163 = math.rsqrt %162 : vector<2x32x1xf32>
    %164 = vector.broadcast %163 : vector<2x32x1xf32> to vector<2x32x64xf32>
    %165 = arith.mulf %160, %164 : vector<2x32x64xf32>
    %cst_73 = arith.constant 1.000000e+00 : f32
    %166 = vector.broadcast %cst_73 : f32 to vector<2x1x64xf32>
    %167 = arith.addf %166, %52 : vector<2x1x64xf32>
    %168 = vector.broadcast %167 : vector<2x1x64xf32> to vector<2x32x64xf32>
    %169 = arith.mulf %165, %168 : vector<2x32x64xf32>
    %170 = vector.broadcast %50 : vector<2x1x64xf32> to vector<2x32x64xf32>
    %171 = arith.addf %169, %170 : vector<2x32x64xf32>
    %172 = vector.shape_cast %171 : vector<2x32x64xf32> to vector<64x64xf32>
    %173 = arith.truncf %172 : vector<64x64xf32> to vector<64x64xbf16>
    %c0_74 = arith.constant 0 : index
    %c0_75 = arith.constant 0 : index
    %c0_76 = arith.constant 0 : index
    %174 = vector.load %arg16[%c0_74, %c0_75, %c0_76] : memref<2x64x256xbf16, #tpu.memory_space<vmem>>, vector<1x64x256xbf16>
    %175 = vector.shape_cast %174 : vector<1x64x256xbf16> to vector<64x256xbf16>
    %cst_77 = arith.constant dense<0.000000e+00> : vector<64x256xf32>
    %176 = tpu.matmul %173, %175, %cst_77 {dimension_numbers = #tpu.dot_dimension_numbers<[1], [0], [0], [1], [0, 0, 1, 1], [], []>} : vector<64x64xbf16>, vector<64x256xbf16>, vector<64x256xf32> -> vector<64x256xf32>
    %c0_78 = arith.constant 0 : index
    %c0_79 = arith.constant 0 : index
    %c0_80 = arith.constant 0 : index
    %177 = vector.load %arg17[%c0_78, %c0_79, %c0_80] : memref<2x1x256xf32, #tpu.memory_space<vmem>>, vector<1x1x256xf32>
    %178 = vector.shape_cast %177 : vector<1x1x256xf32> to vector<1x256xf32>
    %179 = vector.broadcast %178 : vector<1x256xf32> to vector<64x256xf32>
    %180 = arith.addf %176, %179 : vector<64x256xf32>
    %cst_81 = arith.constant 5.000000e-01 : f32
    %181 = vector.broadcast %cst_81 : f32 to vector<64x256xf32>
    %182 = arith.mulf %181, %180 : vector<64x256xf32>
    %cst_82 = arith.constant 4.471500e-02 : f32
    %183 = vector.broadcast %cst_82 : f32 to vector<64x256xf32>
    %184 = arith.mulf %183, %180 : vector<64x256xf32>
    %185 = arith.mulf %184, %180 : vector<64x256xf32>
    %186 = arith.mulf %185, %180 : vector<64x256xf32>
    %187 = arith.addf %180, %186 : vector<64x256xf32>
    %cst_83 = arith.constant 0.797884583 : f32
    %188 = vector.broadcast %cst_83 : f32 to vector<64x256xf32>
    %189 = arith.mulf %188, %187 : vector<64x256xf32>
    %190 = math.tanh %189 : vector<64x256xf32>
    %cst_84 = arith.constant 1.000000e+00 : f32
    %191 = vector.broadcast %cst_84 : f32 to vector<64x256xf32>
    %192 = arith.addf %191, %190 : vector<64x256xf32>
    %193 = arith.mulf %182, %192 : vector<64x256xf32>
    %194 = arith.truncf %193 : vector<64x256xf32> to vector<64x256xbf16>
    %c0_85 = arith.constant 0 : index
    %c0_86 = arith.constant 0 : index
    %c0_87 = arith.constant 0 : index
    %195 = vector.load %arg18[%c0_85, %c0_86, %c0_87] : memref<2x256x64xbf16, #tpu.memory_space<vmem>>, vector<1x256x64xbf16>
    %196 = vector.shape_cast %195 : vector<1x256x64xbf16> to vector<256x64xbf16>
    %cst_88 = arith.constant dense<0.000000e+00> : vector<64x64xf32>
    %197 = tpu.matmul %194, %196, %cst_88 {dimension_numbers = #tpu.dot_dimension_numbers<[1], [0], [0], [1], [0, 0, 1, 1], [], []>} : vector<64x256xbf16>, vector<256x64xbf16>, vector<64x64xf32> -> vector<64x64xf32>
    %c0_89 = arith.constant 0 : index
    %c0_90 = arith.constant 0 : index
    %c0_91 = arith.constant 0 : index
    %198 = vector.load %arg19[%c0_89, %c0_90, %c0_91] : memref<2x1x64xf32, #tpu.memory_space<vmem>>, vector<1x1x64xf32>
    %199 = vector.shape_cast %198 : vector<1x1x64xf32> to vector<1x64xf32>
    %200 = vector.broadcast %199 : vector<1x64xf32> to vector<64x64xf32>
    %201 = arith.addf %197, %200 : vector<64x64xf32>
    %202 = vector.shape_cast %201 : vector<64x64xf32> to vector<2x32x64xf32>
    %203 = vector.broadcast %54 : vector<2x1x64xf32> to vector<2x32x64xf32>
    %204 = arith.mulf %203, %202 : vector<2x32x64xf32>
    %205 = arith.addf %147, %204 : vector<2x32x64xf32>
    %206 = vector.extract_strided_slice %42 {offsets = [0, 384], sizes = [2, 64], strides = [1, 1]} : vector<2x896xf32> to vector<2x64xf32>
    %207 = vector.shape_cast %206 : vector<2x64xf32> to vector<2x1x64xf32>
    %208 = vector.extract_strided_slice %42 {offsets = [0, 448], sizes = [2, 64], strides = [1, 1]} : vector<2x896xf32> to vector<2x64xf32>
    %209 = vector.shape_cast %208 : vector<2x64xf32> to vector<2x1x64xf32>
    %210 = vector.extract_strided_slice %42 {offsets = [0, 512], sizes = [2, 64], strides = [1, 1]} : vector<2x896xf32> to vector<2x64xf32>
    %211 = vector.shape_cast %210 : vector<2x64xf32> to vector<2x1x64xf32>
    %212 = vector.extract_strided_slice %42 {offsets = [0, 576], sizes = [2, 64], strides = [1, 1]} : vector<2x896xf32> to vector<2x64xf32>
    %213 = vector.shape_cast %212 : vector<2x64xf32> to vector<2x1x64xf32>
    %214 = vector.extract_strided_slice %42 {offsets = [0, 640], sizes = [2, 64], strides = [1, 1]} : vector<2x896xf32> to vector<2x64xf32>
    %215 = vector.shape_cast %214 : vector<2x64xf32> to vector<2x1x64xf32>
    %216 = vector.extract_strided_slice %42 {offsets = [0, 704], sizes = [2, 64], strides = [1, 1]} : vector<2x896xf32> to vector<2x64xf32>
    %217 = vector.shape_cast %216 : vector<2x64xf32> to vector<2x1x64xf32>
    %cst_92 = arith.constant dense<0.000000e+00> : vector<2x32xf32>
    %218 = vector.multi_reduction <add>, %205, %cst_92 [2] : vector<2x32x64xf32> to vector<2x32xf32>
    %219 = vector.shape_cast %218 : vector<2x32xf32> to vector<2x32x1xf32>
    %cst_93 = arith.constant 6.400000e+01 : f32
    %220 = vector.broadcast %cst_93 : f32 to vector<2x32x1xf32>
    %221 = arith.divf %219, %220 : vector<2x32x1xf32>
    %222 = vector.broadcast %221 : vector<2x32x1xf32> to vector<2x32x64xf32>
    %223 = arith.subf %205, %222 : vector<2x32x64xf32>
    %224 = arith.mulf %223, %223 : vector<2x32x64xf32>
    %cst_94 = arith.constant dense<0.000000e+00> : vector<2x32xf32>
    %225 = vector.multi_reduction <add>, %224, %cst_94 [2] : vector<2x32x64xf32> to vector<2x32xf32>
    %226 = vector.shape_cast %225 : vector<2x32xf32> to vector<2x32x1xf32>
    %cst_95 = arith.constant 6.400000e+01 : f32
    %227 = vector.broadcast %cst_95 : f32 to vector<2x32x1xf32>
    %228 = arith.divf %226, %227 : vector<2x32x1xf32>
    %229 = vector.broadcast %221 : vector<2x32x1xf32> to vector<2x32x64xf32>
    %230 = arith.subf %205, %229 : vector<2x32x64xf32>
    %cst_96 = arith.constant 9.99999997E-7 : f32
    %231 = vector.broadcast %cst_96 : f32 to vector<2x32x1xf32>
    %232 = arith.addf %228, %231 : vector<2x32x1xf32>
    %233 = math.rsqrt %232 : vector<2x32x1xf32>
    %234 = vector.broadcast %233 : vector<2x32x1xf32> to vector<2x32x64xf32>
    %235 = arith.mulf %230, %234 : vector<2x32x64xf32>
    %cst_97 = arith.constant 1.000000e+00 : f32
    %236 = vector.broadcast %cst_97 : f32 to vector<2x1x64xf32>
    %237 = arith.addf %236, %209 : vector<2x1x64xf32>
    %238 = vector.broadcast %237 : vector<2x1x64xf32> to vector<2x32x64xf32>
    %239 = arith.mulf %235, %238 : vector<2x32x64xf32>
    %240 = vector.broadcast %207 : vector<2x1x64xf32> to vector<2x32x64xf32>
    %241 = arith.addf %239, %240 : vector<2x32x64xf32>
    %242 = vector.shape_cast %241 : vector<2x32x64xf32> to vector<64x64xf32>
    %243 = arith.truncf %242 : vector<64x64xf32> to vector<64x64xbf16>
    %c1 = arith.constant 1 : index
    %c0_98 = arith.constant 0 : index
    %c0_99 = arith.constant 0 : index
    %244 = vector.load %arg12[%c1, %c0_98, %c0_99] : memref<2x64x192xbf16, #tpu.memory_space<vmem>>, vector<1x64x192xbf16>
    %245 = vector.shape_cast %244 : vector<1x64x192xbf16> to vector<64x192xbf16>
    %cst_100 = arith.constant dense<0.000000e+00> : vector<64x192xf32>
    %246 = tpu.matmul %243, %245, %cst_100 {dimension_numbers = #tpu.dot_dimension_numbers<[1], [0], [0], [1], [0, 0, 1, 1], [], []>} : vector<64x64xbf16>, vector<64x192xbf16>, vector<64x192xf32> -> vector<64x192xf32>
    %c1_101 = arith.constant 1 : index
    %c0_102 = arith.constant 0 : index
    %c0_103 = arith.constant 0 : index
    %247 = vector.load %arg13[%c1_101, %c0_102, %c0_103] : memref<2x1x192xf32, #tpu.memory_space<vmem>>, vector<1x1x192xf32>
    %248 = vector.shape_cast %247 : vector<1x1x192xf32> to vector<1x192xf32>
    %249 = vector.broadcast %248 : vector<1x192xf32> to vector<64x192xf32>
    %250 = arith.addf %246, %249 : vector<64x192xf32>
    %251 = vector.extract_strided_slice %250 {offsets = [0, 0], sizes = [64, 64], strides = [1, 1]} : vector<64x192xf32> to vector<64x64xf32>
    %252 = vector.shape_cast %251 : vector<64x64xf32> to vector<2x32x64xf32>
    %253 = vector.extract_strided_slice %250 {offsets = [0, 64], sizes = [64, 64], strides = [1, 1]} : vector<64x192xf32> to vector<64x64xf32>
    %254 = vector.shape_cast %253 : vector<64x64xf32> to vector<2x32x64xf32>
    %255 = vector.extract_strided_slice %250 {offsets = [0, 128], sizes = [64, 64], strides = [1, 1]} : vector<64x192xf32> to vector<64x64xf32>
    %256 = vector.shape_cast %255 : vector<64x64xf32> to vector<2x32x64xf32>
    %257 = vector.extract_strided_slice %252 {offsets = [0, 0, 0], sizes = [2, 32, 32], strides = [1, 1, 1]} : vector<2x32x64xf32> to vector<2x32x32xf32>
    %258 = vector.extract_strided_slice %254 {offsets = [0, 0, 0], sizes = [2, 32, 32], strides = [1, 1, 1]} : vector<2x32x64xf32> to vector<2x32x32xf32>
    %259 = vector.extract_strided_slice %256 {offsets = [0, 0, 0], sizes = [2, 32, 32], strides = [1, 1, 1]} : vector<2x32x64xf32> to vector<2x32x32xf32>
    %260 = arith.truncf %257 : vector<2x32x32xf32> to vector<2x32x32xbf16>
    %261 = arith.truncf %258 : vector<2x32x32xf32> to vector<2x32x32xbf16>
    "tpu.trace_start"() <{level = 10 : i32, message = "bnd,bmd->bnm"}> : () -> ()
    %cst_104 = arith.constant dense<0.000000e+00> : vector<2x32x32xf32>
    %262 = tpu.matmul %260, %261, %cst_104 {dimension_numbers = #tpu.dot_dimension_numbers<[2], [2], [1], [1], [0, 0, 0, 1, 1, 1], [0], [0]>} : vector<2x32x32xbf16>, vector<2x32x32xbf16>, vector<2x32x32xf32> -> vector<2x32x32xf32>
    "tpu.trace_stop"() : () -> ()
    %cst_105 = arith.constant 0.176776692 : f32
    %263 = vector.broadcast %cst_105 : f32 to vector<2x32x32xf32>
    %264 = arith.mulf %262, %263 : vector<2x32x32xf32>
    %cst_106 = arith.constant dense<0xFF800000> : vector<2x32xf32>
    %265 = vector.multi_reduction <maximumf>, %264, %cst_106 [2] : vector<2x32x32xf32> to vector<2x32xf32>
    %266 = vector.shape_cast %265 : vector<2x32xf32> to vector<2x32x1xf32>
    %267 = vector.broadcast %266 : vector<2x32x1xf32> to vector<2x32x32xf32>
    %268 = arith.subf %264, %267 : vector<2x32x32xf32>
    %269 = math.exp %268 : vector<2x32x32xf32>
    %cst_107 = arith.constant dense<0.000000e+00> : vector<2x32xf32>
    %270 = vector.multi_reduction <add>, %269, %cst_107 [2] : vector<2x32x32xf32> to vector<2x32xf32>
    %271 = vector.shape_cast %270 : vector<2x32xf32> to vector<2x32x1xf32>
    %272 = vector.broadcast %271 : vector<2x32x1xf32> to vector<2x32x32xf32>
    %273 = arith.divf %269, %272 : vector<2x32x32xf32>
    %274 = arith.truncf %273 : vector<2x32x32xf32> to vector<2x32x32xbf16>
    %275 = arith.truncf %259 : vector<2x32x32xf32> to vector<2x32x32xbf16>
    "tpu.trace_start"() <{level = 10 : i32, message = "bnm,bmd->bnd"}> : () -> ()
    %cst_108 = arith.constant dense<0.000000e+00> : vector<2x32x32xf32>
    %276 = tpu.matmul %274, %275, %cst_108 {dimension_numbers = #tpu.dot_dimension_numbers<[2], [1], [1], [2], [0, 0, 0, 1, 1, 2], [0], [0]>} : vector<2x32x32xbf16>, vector<2x32x32xbf16>, vector<2x32x32xf32> -> vector<2x32x32xf32>
    "tpu.trace_stop"() : () -> ()
    %277 = vector.extract_strided_slice %252 {offsets = [0, 0, 32], sizes = [2, 32, 32], strides = [1, 1, 1]} : vector<2x32x64xf32> to vector<2x32x32xf32>
    %278 = vector.extract_strided_slice %254 {offsets = [0, 0, 32], sizes = [2, 32, 32], strides = [1, 1, 1]} : vector<2x32x64xf32> to vector<2x32x32xf32>
    %279 = vector.extract_strided_slice %256 {offsets = [0, 0, 32], sizes = [2, 32, 32], strides = [1, 1, 1]} : vector<2x32x64xf32> to vector<2x32x32xf32>
    %280 = arith.truncf %277 : vector<2x32x32xf32> to vector<2x32x32xbf16>
    %281 = arith.truncf %278 : vector<2x32x32xf32> to vector<2x32x32xbf16>
    "tpu.trace_start"() <{level = 10 : i32, message = "bnd,bmd->bnm"}> : () -> ()
    %cst_109 = arith.constant dense<0.000000e+00> : vector<2x32x32xf32>
    %282 = tpu.matmul %280, %281, %cst_109 {dimension_numbers = #tpu.dot_dimension_numbers<[2], [2], [1], [1], [0, 0, 0, 1, 1, 1], [0], [0]>} : vector<2x32x32xbf16>, vector<2x32x32xbf16>, vector<2x32x32xf32> -> vector<2x32x32xf32>
    "tpu.trace_stop"() : () -> ()
    %cst_110 = arith.constant 0.176776692 : f32
    %283 = vector.broadcast %cst_110 : f32 to vector<2x32x32xf32>
    %284 = arith.mulf %282, %283 : vector<2x32x32xf32>
    %cst_111 = arith.constant dense<0xFF800000> : vector<2x32xf32>
    %285 = vector.multi_reduction <maximumf>, %284, %cst_111 [2] : vector<2x32x32xf32> to vector<2x32xf32>
    %286 = vector.shape_cast %285 : vector<2x32xf32> to vector<2x32x1xf32>
    %287 = vector.broadcast %286 : vector<2x32x1xf32> to vector<2x32x32xf32>
    %288 = arith.subf %284, %287 : vector<2x32x32xf32>
    %289 = math.exp %288 : vector<2x32x32xf32>
    %cst_112 = arith.constant dense<0.000000e+00> : vector<2x32xf32>
    %290 = vector.multi_reduction <add>, %289, %cst_112 [2] : vector<2x32x32xf32> to vector<2x32xf32>
    %291 = vector.shape_cast %290 : vector<2x32xf32> to vector<2x32x1xf32>
    %292 = vector.broadcast %291 : vector<2x32x1xf32> to vector<2x32x32xf32>
    %293 = arith.divf %289, %292 : vector<2x32x32xf32>
    %294 = arith.truncf %293 : vector<2x32x32xf32> to vector<2x32x32xbf16>
    %295 = arith.truncf %279 : vector<2x32x32xf32> to vector<2x32x32xbf16>
    "tpu.trace_start"() <{level = 10 : i32, message = "bnm,bmd->bnd"}> : () -> ()
    %cst_113 = arith.constant dense<0.000000e+00> : vector<2x32x32xf32>
    %296 = tpu.matmul %294, %295, %cst_113 {dimension_numbers = #tpu.dot_dimension_numbers<[2], [1], [1], [2], [0, 0, 0, 1, 1, 2], [0], [0]>} : vector<2x32x32xbf16>, vector<2x32x32xbf16>, vector<2x32x32xf32> -> vector<2x32x32xf32>
    "tpu.trace_stop"() : () -> ()
    %297 = tpu.concatenate %276, %296 in 2 : vector<2x32x32xf32>, vector<2x32x32xf32> -> vector<2x32x64xf32>
    %298 = vector.shape_cast %297 : vector<2x32x64xf32> to vector<64x64xf32>
    %299 = arith.truncf %298 : vector<64x64xf32> to vector<64x64xbf16>
    %c1_114 = arith.constant 1 : index
    %c0_115 = arith.constant 0 : index
    %c0_116 = arith.constant 0 : index
    %300 = vector.load %arg14[%c1_114, %c0_115, %c0_116] : memref<2x64x64xbf16, #tpu.memory_space<vmem>>, vector<1x64x64xbf16>
    %301 = vector.shape_cast %300 : vector<1x64x64xbf16> to vector<64x64xbf16>
    %cst_117 = arith.constant dense<0.000000e+00> : vector<64x64xf32>
    %302 = tpu.matmul %299, %301, %cst_117 {dimension_numbers = #tpu.dot_dimension_numbers<[1], [0], [0], [1], [0, 0, 1, 1], [], []>} : vector<64x64xbf16>, vector<64x64xbf16>, vector<64x64xf32> -> vector<64x64xf32>
    %c1_118 = arith.constant 1 : index
    %c0_119 = arith.constant 0 : index
    %c0_120 = arith.constant 0 : index
    %303 = vector.load %arg15[%c1_118, %c0_119, %c0_120] : memref<2x1x64xf32, #tpu.memory_space<vmem>>, vector<1x1x64xf32>
    %304 = vector.shape_cast %303 : vector<1x1x64xf32> to vector<1x64xf32>
    %305 = vector.broadcast %304 : vector<1x64xf32> to vector<64x64xf32>
    %306 = arith.addf %302, %305 : vector<64x64xf32>
    %307 = vector.shape_cast %306 : vector<64x64xf32> to vector<2x32x64xf32>
    %308 = vector.broadcast %211 : vector<2x1x64xf32> to vector<2x32x64xf32>
    %309 = arith.mulf %308, %307 : vector<2x32x64xf32>
    %310 = arith.addf %205, %309 : vector<2x32x64xf32>
    %cst_121 = arith.constant dense<0.000000e+00> : vector<2x32xf32>
    %311 = vector.multi_reduction <add>, %310, %cst_121 [2] : vector<2x32x64xf32> to vector<2x32xf32>
    %312 = vector.shape_cast %311 : vector<2x32xf32> to vector<2x32x1xf32>
    %cst_122 = arith.constant 6.400000e+01 : f32
    %313 = vector.broadcast %cst_122 : f32 to vector<2x32x1xf32>
    %314 = arith.divf %312, %313 : vector<2x32x1xf32>
    %315 = vector.broadcast %314 : vector<2x32x1xf32> to vector<2x32x64xf32>
    %316 = arith.subf %310, %315 : vector<2x32x64xf32>
    %317 = arith.mulf %316, %316 : vector<2x32x64xf32>
    %cst_123 = arith.constant dense<0.000000e+00> : vector<2x32xf32>
    %318 = vector.multi_reduction <add>, %317, %cst_123 [2] : vector<2x32x64xf32> to vector<2x32xf32>
    %319 = vector.shape_cast %318 : vector<2x32xf32> to vector<2x32x1xf32>
    %cst_124 = arith.constant 6.400000e+01 : f32
    %320 = vector.broadcast %cst_124 : f32 to vector<2x32x1xf32>
    %321 = arith.divf %319, %320 : vector<2x32x1xf32>
    %322 = vector.broadcast %314 : vector<2x32x1xf32> to vector<2x32x64xf32>
    %323 = arith.subf %310, %322 : vector<2x32x64xf32>
    %cst_125 = arith.constant 9.99999997E-7 : f32
    %324 = vector.broadcast %cst_125 : f32 to vector<2x32x1xf32>
    %325 = arith.addf %321, %324 : vector<2x32x1xf32>
    %326 = math.rsqrt %325 : vector<2x32x1xf32>
    %327 = vector.broadcast %326 : vector<2x32x1xf32> to vector<2x32x64xf32>
    %328 = arith.mulf %323, %327 : vector<2x32x64xf32>
    %cst_126 = arith.constant 1.000000e+00 : f32
    %329 = vector.broadcast %cst_126 : f32 to vector<2x1x64xf32>
    %330 = arith.addf %329, %215 : vector<2x1x64xf32>
    %331 = vector.broadcast %330 : vector<2x1x64xf32> to vector<2x32x64xf32>
    %332 = arith.mulf %328, %331 : vector<2x32x64xf32>
    %333 = vector.broadcast %213 : vector<2x1x64xf32> to vector<2x32x64xf32>
    %334 = arith.addf %332, %333 : vector<2x32x64xf32>
    %335 = vector.shape_cast %334 : vector<2x32x64xf32> to vector<64x64xf32>
    %336 = arith.truncf %335 : vector<64x64xf32> to vector<64x64xbf16>
    %c1_127 = arith.constant 1 : index
    %c0_128 = arith.constant 0 : index
    %c0_129 = arith.constant 0 : index
    %337 = vector.load %arg16[%c1_127, %c0_128, %c0_129] : memref<2x64x256xbf16, #tpu.memory_space<vmem>>, vector<1x64x256xbf16>
    %338 = vector.shape_cast %337 : vector<1x64x256xbf16> to vector<64x256xbf16>
    %cst_130 = arith.constant dense<0.000000e+00> : vector<64x256xf32>
    %339 = tpu.matmul %336, %338, %cst_130 {dimension_numbers = #tpu.dot_dimension_numbers<[1], [0], [0], [1], [0, 0, 1, 1], [], []>} : vector<64x64xbf16>, vector<64x256xbf16>, vector<64x256xf32> -> vector<64x256xf32>
    %c1_131 = arith.constant 1 : index
    %c0_132 = arith.constant 0 : index
    %c0_133 = arith.constant 0 : index
    %340 = vector.load %arg17[%c1_131, %c0_132, %c0_133] : memref<2x1x256xf32, #tpu.memory_space<vmem>>, vector<1x1x256xf32>
    %341 = vector.shape_cast %340 : vector<1x1x256xf32> to vector<1x256xf32>
    %342 = vector.broadcast %341 : vector<1x256xf32> to vector<64x256xf32>
    %343 = arith.addf %339, %342 : vector<64x256xf32>
    %cst_134 = arith.constant 5.000000e-01 : f32
    %344 = vector.broadcast %cst_134 : f32 to vector<64x256xf32>
    %345 = arith.mulf %344, %343 : vector<64x256xf32>
    %cst_135 = arith.constant 4.471500e-02 : f32
    %346 = vector.broadcast %cst_135 : f32 to vector<64x256xf32>
    %347 = arith.mulf %346, %343 : vector<64x256xf32>
    %348 = arith.mulf %347, %343 : vector<64x256xf32>
    %349 = arith.mulf %348, %343 : vector<64x256xf32>
    %350 = arith.addf %343, %349 : vector<64x256xf32>
    %cst_136 = arith.constant 0.797884583 : f32
    %351 = vector.broadcast %cst_136 : f32 to vector<64x256xf32>
    %352 = arith.mulf %351, %350 : vector<64x256xf32>
    %353 = math.tanh %352 : vector<64x256xf32>
    %cst_137 = arith.constant 1.000000e+00 : f32
    %354 = vector.broadcast %cst_137 : f32 to vector<64x256xf32>
    %355 = arith.addf %354, %353 : vector<64x256xf32>
    %356 = arith.mulf %345, %355 : vector<64x256xf32>
    %357 = arith.truncf %356 : vector<64x256xf32> to vector<64x256xbf16>
    %c1_138 = arith.constant 1 : index
    %c0_139 = arith.constant 0 : index
    %c0_140 = arith.constant 0 : index
    %358 = vector.load %arg18[%c1_138, %c0_139, %c0_140] : memref<2x256x64xbf16, #tpu.memory_space<vmem>>, vector<1x256x64xbf16>
    %359 = vector.shape_cast %358 : vector<1x256x64xbf16> to vector<256x64xbf16>
    %cst_141 = arith.constant dense<0.000000e+00> : vector<64x64xf32>
    %360 = tpu.matmul %357, %359, %cst_141 {dimension_numbers = #tpu.dot_dimension_numbers<[1], [0], [0], [1], [0, 0, 1, 1], [], []>} : vector<64x256xbf16>, vector<256x64xbf16>, vector<64x64xf32> -> vector<64x64xf32>
    %c1_142 = arith.constant 1 : index
    %c0_143 = arith.constant 0 : index
    %c0_144 = arith.constant 0 : index
    %361 = vector.load %arg19[%c1_142, %c0_143, %c0_144] : memref<2x1x64xf32, #tpu.memory_space<vmem>>, vector<1x1x64xf32>
    %362 = vector.shape_cast %361 : vector<1x1x64xf32> to vector<1x64xf32>
    %363 = vector.broadcast %362 : vector<1x64xf32> to vector<64x64xf32>
    %364 = arith.addf %360, %363 : vector<64x64xf32>
    %365 = vector.shape_cast %364 : vector<64x64xf32> to vector<2x32x64xf32>
    %366 = vector.broadcast %217 : vector<2x1x64xf32> to vector<2x32x64xf32>
    %367 = arith.mulf %366, %365 : vector<2x32x64xf32>
    %368 = arith.addf %310, %367 : vector<2x32x64xf32>
    %369 = vector.extract_strided_slice %368 {offsets = [0, 0, 0], sizes = [2, 16, 64], strides = [1, 1, 1]} : vector<2x32x64xf32> to vector<2x16x64xf32>
    %370 = vector.extract_strided_slice %42 {offsets = [0, 768], sizes = [2, 64], strides = [1, 1]} : vector<2x896xf32> to vector<2x64xf32>
    %371 = vector.shape_cast %370 : vector<2x64xf32> to vector<2x1x64xf32>
    %372 = vector.extract_strided_slice %42 {offsets = [0, 832], sizes = [2, 64], strides = [1, 1]} : vector<2x896xf32> to vector<2x64xf32>
    %373 = vector.shape_cast %372 : vector<2x64xf32> to vector<2x1x64xf32>
    %cst_145 = arith.constant dense<0.000000e+00> : vector<2x16xf32>
    %374 = vector.multi_reduction <add>, %369, %cst_145 [2] : vector<2x16x64xf32> to vector<2x16xf32>
    %375 = vector.shape_cast %374 : vector<2x16xf32> to vector<2x16x1xf32>
    %cst_146 = arith.constant 6.400000e+01 : f32
    %376 = vector.broadcast %cst_146 : f32 to vector<2x16x1xf32>
    %377 = arith.divf %375, %376 : vector<2x16x1xf32>
    %378 = vector.broadcast %377 : vector<2x16x1xf32> to vector<2x16x64xf32>
    %379 = arith.subf %369, %378 : vector<2x16x64xf32>
    %380 = arith.mulf %379, %379 : vector<2x16x64xf32>
    %cst_147 = arith.constant dense<0.000000e+00> : vector<2x16xf32>
    %381 = vector.multi_reduction <add>, %380, %cst_147 [2] : vector<2x16x64xf32> to vector<2x16xf32>
    %382 = vector.shape_cast %381 : vector<2x16xf32> to vector<2x16x1xf32>
    %cst_148 = arith.constant 6.400000e+01 : f32
    %383 = vector.broadcast %cst_148 : f32 to vector<2x16x1xf32>
    %384 = arith.divf %382, %383 : vector<2x16x1xf32>
    %385 = vector.broadcast %377 : vector<2x16x1xf32> to vector<2x16x64xf32>
    %386 = arith.subf %369, %385 : vector<2x16x64xf32>
    %cst_149 = arith.constant 9.99999997E-7 : f32
    %387 = vector.broadcast %cst_149 : f32 to vector<2x16x1xf32>
    %388 = arith.addf %384, %387 : vector<2x16x1xf32>
    %389 = math.rsqrt %388 : vector<2x16x1xf32>
    %390 = vector.broadcast %389 : vector<2x16x1xf32> to vector<2x16x64xf32>
    %391 = arith.mulf %386, %390 : vector<2x16x64xf32>
    %cst_150 = arith.constant 1.000000e+00 : f32
    %392 = vector.broadcast %cst_150 : f32 to vector<2x1x64xf32>
    %393 = arith.addf %392, %373 : vector<2x1x64xf32>
    %394 = vector.broadcast %393 : vector<2x1x64xf32> to vector<2x16x64xf32>
    %395 = arith.mulf %391, %394 : vector<2x16x64xf32>
    %396 = vector.broadcast %371 : vector<2x1x64xf32> to vector<2x16x64xf32>
    %397 = arith.addf %395, %396 : vector<2x16x64xf32>
    %398 = vector.shape_cast %397 : vector<2x16x64xf32> to vector<32x64xf32>
    %399 = arith.truncf %398 : vector<32x64xf32> to vector<32x64xbf16>
    %c0_151 = arith.constant 0 : index
    %c0_152 = arith.constant 0 : index
    %400 = vector.load %arg20[%c0_151, %c0_152] : memref<64x64xbf16, #tpu.memory_space<vmem>>, vector<64x64xbf16>
    %cst_153 = arith.constant dense<0.000000e+00> : vector<32x64xf32>
    %401 = tpu.matmul %399, %400, %cst_153 {dimension_numbers = #tpu.dot_dimension_numbers<[1], [0], [0], [1], [0, 0, 1, 1], [], []>} : vector<32x64xbf16>, vector<64x64xbf16>, vector<32x64xf32> -> vector<32x64xf32>
    %402 = vector.shape_cast %10 : vector<2x16x64xf32> to vector<32x64xf32>
    %403 = arith.subf %401, %402 : vector<32x64xf32>
    %404 = arith.mulf %403, %403 : vector<32x64xf32>
    %405 = vector.shape_cast %404 : vector<32x64xf32> to vector<1x32x64xf32>
    %cst_154 = arith.constant dense<0.000000e+00> : vector<1xf32>
    %406 = vector.multi_reduction <add>, %405, %cst_154 [1, 2] : vector<1x32x64xf32> to vector<1xf32>
    %407 = vector.shape_cast %406 : vector<1xf32> to vector<1x1x1xf32>
    %408 = vector.extract %407[0, 0, 0] : f32 from vector<1x1x1xf32>
    %c0_155 = arith.constant 0 : index
    %c0_156 = arith.constant 0 : index
    %409 = memref.load %arg21[%c0_155, %c0_156] : memref<1x1xf32, #tpu.memory_space<smem>>
    memref.store %408, %arg21[%c0_155, %c0_156] : memref<1x1xf32, #tpu.memory_space<smem>>
    return
  }
}

</mosaic_0001>

<llo_original>
// kernel: diffusion_decoder_forward.11
$region0: #{diffusion_decoder_forward.11}
  #allocation0 [shape = 'u32[]', space=smem, size = 0x4, offset = 0x4, fixed_abs, tag = 'smem constant byte address 0x4 - core index']
  #allocation1 [shape = 'u32[144,128]{1,0:T(1,128)}', space=vmem, size = 0x12000, scoped, tag = 'internal scratch']
  #allocation2 [shape = 'f32[2,32,64]{2,1,0:T(8,128)}', space=vmem, size = 0x8000, scoped, tag = 'scratch operand']
  %s0 = inlined_call_operand.vmem [shape: f32[2,1,1], index: 0, kind: input, shape index: {}]
  %s1 = inlined_call_operand.vmem [shape: f32[2,16,64], index: 1, kind: input, shape index: {}]
  %s2 = inlined_call_operand.vmem [shape: f32[2,16,64], index: 2, kind: input, shape index: {}]
  %s3 = inlined_call_operand.vmem [shape: f32[2,16,8], index: 3, kind: input, shape index: {}]
  %s4 = inlined_call_operand.vmem [shape: f32[2,64], index: 4, kind: input, shape index: {}]
  %s5 = inlined_call_operand.vmem [shape: bf16[64,64], index: 5, kind: input, shape index: {}]
  %s6 = inlined_call_operand.vmem [shape: bf16[8,64], index: 6, kind: input, shape index: {}]
  %s7 = inlined_call_operand.vmem [shape: f32[1,64], index: 7, kind: input, shape index: {}]
  %s8 = inlined_call_operand.vmem [shape: f32[16,64], index: 8, kind: input, shape index: {}]
  %s9 = inlined_call_operand.vmem [shape: f32[16,64], index: 9, kind: input, shape index: {}]
  %s10 = inlined_call_operand.vmem [shape: bf16[64,896], index: 10, kind: input, shape index: {}]
  %s11 = inlined_call_operand.vmem [shape: f32[1,896], index: 11, kind: input, shape index: {}]
  %s12 = inlined_call_operand.vmem [shape: bf16[2,64,192], index: 12, kind: input, shape index: {}]
  %s13 = inlined_call_operand.vmem [shape: f32[2,1,192], index: 13, kind: input, shape index: {}]
  %s14 = inlined_call_operand.vmem [shape: bf16[2,64,64], index: 14, kind: input, shape index: {}]
  %s15 = inlined_call_operand.vmem [shape: f32[2,1,64], index: 15, kind: input, shape index: {}]
  %s16 = inlined_call_operand.vmem [shape: bf16[2,64,256], index: 16, kind: input, shape index: {}]
  %s17 = inlined_call_operand.vmem [shape: f32[2,1,256], index: 17, kind: input, shape index: {}]
  %s18 = inlined_call_operand.vmem [shape: bf16[2,256,64], index: 18, kind: input, shape index: {}]
  %s19 = inlined_call_operand.vmem [shape: f32[2,1,64], index: 19, kind: input, shape index: {}]
  %s20 = inlined_call_operand.vmem [shape: bf16[64,64], index: 20, kind: input, shape index: {}]
  %s21 = inlined_call_operand.hbm [shape: f32[1,1], index: 21, kind: output, shape index: {}]
  %s22 = sld [smem:[#allocation0]]
  $region94: #{diffusion_decoder_forward.11} parent=0
    _
  %s24 = ssub.s32 1, %s22
  %s25 = scalar_select 0, %s24, %s22
  $region1: #{diffusion_decoder_forward.11} parent=0
    #allocation3 [shape = 'u8[512]{0}', space=smem, size = 0x200, scoped, tag = 'output window, operand 0, single buffered']
    #allocation4 [shape = 's32[1]{0}', space=sflag, size = 0x4, scoped, tag = 'scoped memory for diffusion_decoder_forward.11']
    %26 = vsyncpa [#allocation4], 0
    // Predicated region
    $region2: #{diffusion_decoder_forward.11} parent=1 // pred_check
      _
    $region3: #{diffusion_decoder_forward.11} parent=1 // pred_check_branch
      %28 = sbr.rel (0) target = $region5
    $region4: #{diffusion_decoder_forward.11} parent=1 // pred_region
      _
    $region5: #{diffusion_decoder_forward.11} parent=1 // pred_fallthru
      _
    // Predicated region
    $region6: #{diffusion_decoder_forward.11} parent=1 // pred_check
      _
    $region7: #{diffusion_decoder_forward.11} parent=1 // pred_check_branch
      %30 = sbr.rel (0) target = $region9
    $region8: #{diffusion_decoder_forward.11} parent=1 // pred_region
      _
    $region9: #{diffusion_decoder_forward.11} parent=1 // pred_fallthru
      _
    // Predicated region
    $region10: #{diffusion_decoder_forward.11} parent=1 // pred_check
      _
    $region11: #{diffusion_decoder_forward.11} parent=1 // pred_check_branch
      %32 = sbr.rel (0) target = $region13
    $region12: #{diffusion_decoder_forward.11} parent=1 // pred_region
      _
    $region13: #{diffusion_decoder_forward.11} parent=1 // pred_fallthru
      _
    // Predicated region
    $region14: #{diffusion_decoder_forward.11} parent=1 // pred_check
      _
    $region15: #{diffusion_decoder_forward.11} parent=1 // pred_check_branch
      %34 = sbr.rel (0) target = $region17
    $region16: #{diffusion_decoder_forward.11} parent=1 // pred_region
      _
    $region17: #{diffusion_decoder_forward.11} parent=1 // pred_fallthru
      _
    // Predicated region
    $region18: #{diffusion_decoder_forward.11} parent=1 // pred_check
      _
    $region19: #{diffusion_decoder_forward.11} parent=1 // pred_check_branch
      %36 = sbr.rel (0) target = $region21
    $region20: #{diffusion_decoder_forward.11} parent=1 // pred_region
      _
    $region21: #{diffusion_decoder_forward.11} parent=1 // pred_fallthru
      _
    // Predicated region
    $region22: #{diffusion_decoder_forward.11} parent=1 // pred_check
      _
    $region23: #{diffusion_decoder_forward.11} parent=1 // pred_check_branch
      %38 = sbr.rel (0) target = $region25
    $region24: #{diffusion_decoder_forward.11} parent=1 // pred_region
      _
    $region25: #{diffusion_decoder_forward.11} parent=1 // pred_fallthru
      _
    // Predicated region
    $region26: #{diffusion_decoder_forward.11} parent=1 // pred_check
      _
    $region27: #{diffusion_decoder_forward.11} parent=1 // pred_check_branch
      %40 = sbr.rel (0) target = $region29
    $region28: #{diffusion_decoder_forward.11} parent=1 // pred_region
      _
    $region29: #{diffusion_decoder_forward.11} parent=1 // pred_fallthru
      _
    // Predicated region
    $region30: #{diffusion_decoder_forward.11} parent=1 // pred_check
      _
    $region31: #{diffusion_decoder_forward.11} parent=1 // pred_check_branch
      %42 = sbr.rel (0) target = $region33
    $region32: #{diffusion_decoder_forward.11} parent=1 // pred_region
      _
    $region33: #{diffusion_decoder_forward.11} parent=1 // pred_fallthru
      _
    // Predicated region
    $region34: #{diffusion_decoder_forward.11} parent=1 // pred_check
      _
    $region35: #{diffusion_decoder_forward.11} parent=1 // pred_check_branch
      %44 = sbr.rel (0) target = $region37
    $region36: #{diffusion_decoder_forward.11} parent=1 // pred_region
      _
    $region37: #{diffusion_decoder_forward.11} parent=1 // pred_fallthru
      _
    // Predicated region
    $region38: #{diffusion_decoder_forward.11} parent=1 // pred_check
      _
    $region39: #{diffusion_decoder_forward.11} parent=1 // pred_check_branch
      %46 = sbr.rel (0) target = $region41
    $region40: #{diffusion_decoder_forward.11} parent=1 // pred_region
      _
    $region41: #{diffusion_decoder_forward.11} parent=1 // pred_fallthru
      _
    // Predicated region
    $region42: #{diffusion_decoder_forward.11} parent=1 // pred_check
      _
    $region43: #{diffusion_decoder_forward.11} parent=1 // pred_check_branch
      %48 = sbr.rel (0) target = $region45
    $region44: #{diffusion_decoder_forward.11} parent=1 // pred_region
      _
    $region45: #{diffusion_decoder_forward.11} parent=1 // pred_fallthru
      _
    // Predicated region
    $region46: #{diffusion_decoder_forward.11} parent=1 // pred_check
      _
    $region47: #{diffusion_decoder_forward.11} parent=1 // pred_check_branch
      %50 = sbr.rel (0) target = $region49
    $region48: #{diffusion_decoder_forward.11} parent=1 // pred_region
      _
    $region49: #{diffusion_decoder_forward.11} parent=1 // pred_fallthru
      _
    // Predicated region
    $region50: #{diffusion_decoder_forward.11} parent=1 // pred_check
      _
    $region51: #{diffusion_decoder_forward.11} parent=1 // pred_check_branch
      %52 = sbr.rel (0) target = $region53
    $region52: #{diffusion_decoder_forward.11} parent=1 // pred_region
      _
    $region53: #{diffusion_decoder_forward.11} parent=1 // pred_fallthru
      _
    // Predicated region
    $region54: #{diffusion_decoder_forward.11} parent=1 // pred_check
      _
    $region55: #{diffusion_decoder_forward.11} parent=1 // pred_check_branch
      %54 = sbr.rel (0) target = $region57
    $region56: #{diffusion_decoder_forward.11} parent=1 // pred_region
      _
    $region57: #{diffusion_decoder_forward.11} parent=1 // pred_fallthru
      _
    // Predicated region
    $region58: #{diffusion_decoder_forward.11} parent=1 // pred_check
      _
    $region59: #{diffusion_decoder_forward.11} parent=1 // pred_check_branch
      %56 = sbr.rel (0) target = $region61
    $region60: #{diffusion_decoder_forward.11} parent=1 // pred_region
      _
    $region61: #{diffusion_decoder_forward.11} parent=1 // pred_fallthru
      _
    // Predicated region
    $region62: #{diffusion_decoder_forward.11} parent=1 // pred_check
      _
    $region63: #{diffusion_decoder_forward.11} parent=1 // pred_check_branch
      %58 = sbr.rel (0) target = $region65
    $region64: #{diffusion_decoder_forward.11} parent=1 // pred_region
      _
    $region65: #{diffusion_decoder_forward.11} parent=1 // pred_fallthru
      _
    // Predicated region
    $region66: #{diffusion_decoder_forward.11} parent=1 // pred_check
      _
    $region67: #{diffusion_decoder_forward.11} parent=1 // pred_check_branch
      %60 = sbr.rel (0) target = $region69
    $region68: #{diffusion_decoder_forward.11} parent=1 // pred_region
      _
    $region69: #{diffusion_decoder_forward.11} parent=1 // pred_fallthru
      _
    // Predicated region
    $region70: #{diffusion_decoder_forward.11} parent=1 // pred_check
      _
    $region71: #{diffusion_decoder_forward.11} parent=1 // pred_check_branch
      %62 = sbr.rel (0) target = $region73
    $region72: #{diffusion_decoder_forward.11} parent=1 // pred_region
      _
    $region73: #{diffusion_decoder_forward.11} parent=1 // pred_fallthru
      _
    // Predicated region
    $region74: #{diffusion_decoder_forward.11} parent=1 // pred_check
      _
    $region75: #{diffusion_decoder_forward.11} parent=1 // pred_check_branch
      %64 = sbr.rel (0) target = $region77
    $region76: #{diffusion_decoder_forward.11} parent=1 // pred_region
      _
    $region77: #{diffusion_decoder_forward.11} parent=1 // pred_fallthru
      _
    // Predicated region
    $region78: #{diffusion_decoder_forward.11} parent=1 // pred_check
      _
    $region79: #{diffusion_decoder_forward.11} parent=1 // pred_check_branch
      %66 = sbr.rel (0) target = $region81
    $region80: #{diffusion_decoder_forward.11} parent=1 // pred_region
      _
    $region81: #{diffusion_decoder_forward.11} parent=1 // pred_fallthru
      _
    // Predicated region
    $region82: #{diffusion_decoder_forward.11} parent=1 // pred_check
      _
    $region83: #{diffusion_decoder_forward.11} parent=1 // pred_check_branch
      %68 = sbr.rel (0) target = $region85
    $region84: #{diffusion_decoder_forward.11} parent=1 // pred_region
      _
    $region85: #{diffusion_decoder_forward.11} parent=1 // pred_fallthru
      _
    %v70 = vld [vmem:[%s0] sm:$0x1]
    %v71 = vld [vmem:[%s0 + $0x1] sm:$0x1]
    %v72 = vld [vmem:[%s1] sm:$0xff]
    %v73 = vld [vmem:[%s1 + $0x8] sm:$0xff]
    %v74 = vld [vmem:[%s1 + $0x10] sm:$0xff]
    %v75 = vld [vmem:[%s1 + $0x18] sm:$0xff]
    %v76 = vld [vmem:[%s2] sm:$0xff]
    %v77 = vld [vmem:[%s2 + $0x8] sm:$0xff]
    %v78 = vld [vmem:[%s2 + $0x10] sm:$0xff]
    %v79 = vld [vmem:[%s2 + $0x18] sm:$0xff]
    %v80 = vsub.f32 1.0, %v70
    %v81 = vsub.f32 1.0, %v71
    %v84 = vlaneseq
    %v85 = vshrl.u32 %v84, 7
    %v86 = vsub.s32 0, %v85
    %v87 = vrot.slane %v80, %v86
    %v88 = vlaneseq
    %v89 = vshrl.u32 %v88, 7
    %v90 = vsub.s32 0, %v89
    %v91 = vrot.slane %v81, %v90
    %92 = vset.pattern.permute.xlu0 0
    %93 = vperm.xlu0 %92, %v87
    %v94 = vpop.permute.xlu0 %93
    %96 = vset.pattern.permute.xlu0 0
    %97 = vperm.xlu0 %96, %v91
    %v98 = vpop.permute.xlu0 %97
    %v100 = vmul.f32 %v72, %v94
    %v101 = vmul.f32 %v73, %v94
    %v102 = vmul.f32 %v74, %v98
    %v103 = vmul.f32 %v75, %v98
    %v106 = vlaneseq
    %v107 = vshrl.u32 %v106, 7
    %v108 = vsub.s32 0, %v107
    %v109 = vrot.slane %v70, %v108
    %v110 = vlaneseq
    %v111 = vshrl.u32 %v110, 7
    %v112 = vsub.s32 0, %v111
    %v113 = vrot.slane %v71, %v112
    %114 = vset.pattern.permute.xlu0 0
    %115 = vperm.xlu0 %114, %v109
    %v116 = vpop.permute.xlu0 %115
    %118 = vset.pattern.permute.xlu0 0
    %119 = vperm.xlu0 %118, %v113
    %v120 = vpop.permute.xlu0 %119
    %v122 = vmul.f32 %v116, %v76
    %v123 = vmul.f32 %v116, %v77
    %v124 = vmul.f32 %v120, %v78
    %v125 = vmul.f32 %v120, %v79
    %v126 = vadd.f32 %v100, %v122
    %v127 = vadd.f32 %v101, %v123
    %v128 = vadd.f32 %v102, %v124
    %v129 = vadd.f32 %v103, %v125
    %v130 = vsub.f32 %v76, %v72
    %v131 = vsub.f32 %v77, %v73
    %v132 = vsub.f32 %v78, %v74
    %v133 = vsub.f32 %v79, %v75
    %v134 = vpack.c.bf16 %v127, %v126
    %v135 = vpack.c.bf16 %v129, %v128
    %v136 = vld [vmem:[%s5] sm:$0xf]
    %v137 = vld [vmem:[%s5 + $0x4] sm:$0xf]
    %v138 = vld [vmem:[%s5 + $0x8] sm:$0xf]
    %v139 = vld [vmem:[%s5 + $0xc] sm:$0xf]
    %v140 = vld [vmem:[%s5 + $0x10] sm:$0xf]
    %v141 = vld [vmem:[%s5 + $0x14] sm:$0xf]
    %v142 = vld [vmem:[%s5 + $0x18] sm:$0xf]
    %v143 = vld [vmem:[%s5 + $0x1c] sm:$0xf]
    %v152 = vunpack.c.l.b16 %v136
    %v153 = vunpack.c.l.b16 %v137
    %v154 = vunpack.c.l.b16 %v138
    %v155 = vunpack.c.l.b16 %v139
    %v156 = vunpack.c.l.b16 %v140
    %v157 = vunpack.c.l.b16 %v141
    %v158 = vunpack.c.l.b16 %v142
    %v159 = vunpack.c.l.b16 %v143
    %v160 = vpack.c.b16 %v153, %v152
    %v161 = vpack.c.b16 %v155, %v154
    %v162 = vpack.c.b16 %v157, %v156
    %v163 = vpack.c.b16 %v159, %v158
    %vm168 = vcmask 523264
    %v170 = vsel %vm168, %v134, 0
    %v173 = vsel %vm168, %v135, 0
    %175 = vmatprep.subr.bf16.mxu0 0
    %176 = vmatpush1.bf16.msra.mxu0 %v160
    %177 = vmatprep.subr.bf16.mxu0 0
    %178 = vmatpush1.bf16.msra.mxu0 %v161
    %179 = vmatprep.subr.bf16.mxu0 0
    %180 = vmatpush1.bf16.msra.mxu0 %v162
    %181 = vmatprep.subr.bf16.mxu0 0
    %182 = vmatpush1.bf16.msra.mxu0 %v163
    %183 = vmatprep.subr.bf16.mxu0 0
    %184 = vmatpush1.bf16.msra.mxu0 0
    %185 = vmatprep.subr.bf16.mxu0 0
    %186 = vmatpush1.bf16.msra.mxu0 0
    %187 = vmatprep.subr.bf16.mxu0 0
    %188 = vmatpush1.bf16.msra.mxu0 0
    %189 = vmatprep.subr.bf16.mxu0 0
    %190 = vmatpush1.bf16.msra.mxu0 0
    %191 = vmatprep.subr.bf16.mxu0 0
    %192 = vmatpush1.bf16.msra.mxu0 0
    %193 = vmatprep.subr.bf16.mxu0 0
    %194 = vmatpush1.bf16.msra.mxu0 0
    %195 = vmatprep.subr.bf16.mxu0 0
    %196 = vmatpush1.bf16.msra.mxu0 0
    %197 = vmatprep.subr.bf16.mxu0 0
    %198 = vmatpush1.bf16.msra.mxu0 0
    %199 = vmatprep.subr.bf16.mxu0 0
    %200 = vmatpush1.bf16.msra.mxu0 0
    %201 = vmatprep.subr.bf16.mxu0 0
    %202 = vmatpush1.bf16.msra.mxu0 0
    %203 = vmatprep.subr.bf16.mxu0 0
    %204 = vmatpush1.bf16.msra.mxu0 0
    %205 = vmatprep.subr.bf16.mxu0 0
    %206 = vmatpush1.bf16.msra.mxu0 0
    %207 = vmatprep.mubr.bf16.mxu0 0
    %208 = vmatmul.mubr.bf16.gmra.mrb[0].mxu0 %v170
    %v209 = vpop.f32.mrb[0].mxu0
    %v210 = vadd.f32 0.0, %v209
    %v211 = vpop.f32.mrb[0].mxu0
    %v212 = vpop.f32.mrb[0].mxu0
    %v213 = vadd.f32 0.0, %v212
    %v214 = vpop.f32.mrb[0].mxu0
    %215 = vmatprep.mubr.bf16.mxu0 0
    %216 = vmatmul.mubr.bf16.gmra.mrb[0].mxu0 %v173
    %v217 = vpop.f32.mrb[0].mxu0
    %v218 = vadd.f32 0.0, %v217
    %v219 = vpop.f32.mrb[0].mxu0
    %v220 = vpop.f32.mrb[0].mxu0
    %v221 = vadd.f32 0.0, %v220
    %v222 = vpop.f32.mrb[0].mxu0
    %223 = vdwg.mxu0
    %v224 = vld [vmem:[%s8] sm:$0xff]
    %v225 = vld [vmem:[%s8 + $0x8] sm:$0xff]
    %v226 = vadd.f32 %v210, %v224
    %v227 = vadd.f32 %v213, %v225
    %v228 = vadd.f32 %v218, %v224
    %v229 = vadd.f32 %v221, %v225
    %v230 = vld [vmem:[%s3] sm:$0xff]
    %v231 = vld [vmem:[%s3 + $0x8] sm:$0xff]
    %v232 = vld [vmem:[%s3 + $0x10] sm:$0xff]
    %v233 = vld [vmem:[%s3 + $0x18] sm:$0xff]
    %v234 = vpack.c.bf16 %v231, %v230
    %v235 = vpack.c.bf16 %v233, %v232
    %v236 = vld [vmem:[%s6] sm:$0xf]
    %v237 = vld [vmem:[%s7] sm:$0x1]
    %v239 = vlaneseq
    %v240 = vshrl.u32 %v239, 7
    %v241 = vsub.s32 0, %v240
    %v242 = vrot.slane %v237, %v241
    %vm244 = vcmask 64512
    %v246 = vsel %vm244, %v234, 0
    %v249 = vsel %vm244, %v235, 0
    %vm251 = vcmask 1043456
    %v253 = vsel %vm251, %v236, 0
    %255 = vmatprep.subr.bf16.mxu0 0
    %256 = vmatpush1.bf16.msra.mxu0 %v253
    %257 = vmatprep.subr.bf16.mxu0 0
    %258 = vmatpush1.bf16.msra.mxu0 0
    %259 = vmatprep.subr.bf16.mxu0 0
    %260 = vmatpush1.bf16.msra.mxu0 0
    %261 = vmatprep.subr.bf16.mxu0 0
    %262 = vmatpush1.bf16.msra.mxu0 0
    %263 = vmatprep.subr.bf16.mxu0 0
    %264 = vmatpush1.bf16.msra.mxu0 0
    %265 = vmatprep.subr.bf16.mxu0 0
    %266 = vmatpush1.bf16.msra.mxu0 0
    %267 = vmatprep.subr.bf16.mxu0 0
    %268 = vmatpush1.bf16.msra.mxu0 0
    %269 = vmatprep.subr.bf16.mxu0 0
    %270 = vmatpush1.bf16.msra.mxu0 0
    %271 = vmatprep.subr.bf16.mxu0 0
    %272 = vmatpush1.bf16.msra.mxu0 0
    %273 = vmatprep.subr.bf16.mxu0 0
    %274 = vmatpush1.bf16.msra.mxu0 0
    %275 = vmatprep.subr.bf16.mxu0 0
    %276 = vmatpush1.bf16.msra.mxu0 0
    %277 = vmatprep.subr.bf16.mxu0 0
    %278 = vmatpush1.bf16.msra.mxu0 0
    %279 = vmatprep.subr.bf16.mxu0 0
    %280 = vmatpush1.bf16.msra.mxu0 0
    %281 = vmatprep.subr.bf16.mxu0 0
    %282 = vmatpush1.bf16.msra.mxu0 0
    %283 = vmatprep.subr.bf16.mxu0 0
    %284 = vmatpush1.bf16.msra.mxu0 0
    %285 = vmatprep.subr.bf16.mxu0 0
    %286 = vmatpush1.bf16.msra.mxu0 0
    %287 = vmatprep.mubr.bf16.mxu0 0
    %288 = vmatmul.mubr.bf16.gmra.mrb[0].mxu0 %v246
    %v289 = vpop.f32.mrb[0].mxu0
    %v290 = vadd.f32 %v242, %v289
    %v291 = vpop.f32.mrb[0].mxu0
    %v292 = vpop.f32.mrb[0].mxu0
    %v293 = vadd.f32 %v242, %v292
    %v294 = vpop.f32.mrb[0].mxu0
    %295 = vmatprep.mubr.bf16.mxu0 0
    %296 = vmatmul.mubr.bf16.gmra.mrb[0].mxu0 %v249
    %v297 = vpop.f32.mrb[0].mxu0
    %v298 = vadd.f32 %v242, %v297
    %v299 = vpop.f32.mrb[0].mxu0
    %v300 = vpop.f32.mrb[0].mxu0
    %v301 = vadd.f32 %v242, %v300
    %v302 = vpop.f32.mrb[0].mxu0
    %303 = vdwg.mxu0
    %v304 = vld [vmem:[%s9] sm:$0xff]
    %v305 = vld [vmem:[%s9 + $0x8] sm:$0xff]
    %v306 = vadd.f32 %v290, %v304
    %v307 = vadd.f32 %v293, %v305
    %v308 = vadd.f32 %v298, %v304
    %v309 = vadd.f32 %v301, %v305
    %310 = vst.msk [vmem:[#allocation2] sm:$0xff] %vm168, %v226
    %311 = vst.msk [vmem:[#allocation2 + $0x8] sm:$0xff] %vm168, %v227
    %312 = vst.msk [vmem:[#allocation2 + $0x20] sm:$0xff] %vm168, %v228
    %313 = vst.msk [vmem:[#allocation2 + $0x28] sm:$0xff] %vm168, %v229
    %314 = vst.msk [vmem:[#allocation2 + $0x10] sm:$0xff] %vm168, %v306
    %315 = vst.msk [vmem:[#allocation2 + $0x18] sm:$0xff] %vm168, %v307
    %316 = vst.msk [vmem:[#allocation2 + $0x30] sm:$0xff] %vm168, %v308
    %317 = vst.msk [vmem:[#allocation2 + $0x38] sm:$0xff] %vm168, %v309
    %v318 = vld [vmem:[#allocation2] sm:$0xff]
    %v319 = vld [vmem:[#allocation2 + $0x8] sm:$0xff]
    %v320 = vld [vmem:[#allocation2 + $0x10] sm:$0xff]
    %v321 = vld [vmem:[#allocation2 + $0x18] sm:$0xff]
    %v322 = vld [vmem:[#allocation2 + $0x20] sm:$0xff]
    %v323 = vld [vmem:[#allocation2 + $0x28] sm:$0xff]
    %v324 = vld [vmem:[#allocation2 + $0x30] sm:$0xff]
    %v325 = vld [vmem:[#allocation2 + $0x38] sm:$0xff]
    %v326 = vld [vmem:[%s4] sm:$0x3]
    %v327 = vpack.c.bf16 %v326, %v326
    %v328 = vld [vmem:[%s10] sm:$0xff]
    %v329 = vld [vmem:[%s10 + $0x8] sm:$0xff]
    %v330 = vld [vmem:[%s10 + $0x10] sm:$0xff]
    %v331 = vld [vmem:[%s10 + $0x18] sm:$0xf]
    %v332 = vld [vmem:[%s10 + $0x1c] sm:$0xff]
    %v333 = vld [vmem:[%s10 + $0x24] sm:$0xff]
    %v334 = vld [vmem:[%s10 + $0x2c] sm:$0xff]
    %v335 = vld [vmem:[%s10 + $0x34] sm:$0xf]
    %v336 = vld [vmem:[%s10 + $0x38] sm:$0xff]
    %v337 = vld [vmem:[%s10 + $0x40] sm:$0xff]
    %v338 = vld [vmem:[%s10 + $0x48] sm:$0xff]
    %v339 = vld [vmem:[%s10 + $0x50] sm:$0xf]
    %v340 = vld [vmem:[%s10 + $0x54] sm:$0xff]
    %v341 = vld [vmem:[%s10 + $0x5c] sm:$0xff]
    %v342 = vld [vmem:[%s10 + $0x64] sm:$0xff]
    %v343 = vld [vmem:[%s10 + $0x6c] sm:$0xf]
    %v344 = vld [vmem:[%s10 + $0x70] sm:$0xff]
    %v345 = vld [vmem:[%s10 + $0x78] sm:$0xff]
    %v346 = vld [vmem:[%s10 + $0x80] sm:$0xff]
    %v347 = vld [vmem:[%s10 + $0x88] sm:$0xf]
    %v348 = vld [vmem:[%s10 + $0x8c] sm:$0xff]
    %v349 = vld [vmem:[%s10 + $0x94] sm:$0xff]
    %v350 = vld [vmem:[%s10 + $0x9c] sm:$0xff]
    %v351 = vld [vmem:[%s10 + $0xa4] sm:$0xf]
    %v352 = vld [vmem:[%s10 + $0xa8] sm:$0xff]
    %v353 = vld [vmem:[%s10 + $0xb0] sm:$0xff]
    %v354 = vld [vmem:[%s10 + $0xb8] sm:$0xff]
    %v355 = vld [vmem:[%s10 + $0xc0] sm:$0xf]
    %v356 = vld [vmem:[%s10 + $0xc4] sm:$0xff]
    %v357 = vld [vmem:[%s10 + $0xcc] sm:$0xff]
    %v358 = vld [vmem:[%s10 + $0xd4] sm:$0xff]
    %v359 = vld [vmem:[%s10 + $0xdc] sm:$0xf]
    %v360 = vld [vmem:[%s11] sm:$0xff]
    %v362 = vlaneseq
    %v363 = vshrl.u32 %v362, 7
    %v364 = vsub.s32 0, %v363
    %v365 = vrot.slane %v360, %v364
    %v366 = vlaneseq
    %v367 = vshrl.u32 %v366, 7
    %v368 = vsub.s32 1, %v367
    %v369 = vrot.slane %v360, %v368
    %v370 = vlaneseq
    %v371 = vshrl.u32 %v370, 7
    %v372 = vsub.s32 2, %v371
    %v373 = vrot.slane %v360, %v372
    %v374 = vlaneseq
    %v375 = vshrl.u32 %v374, 7
    %v376 = vsub.s32 3, %v375
    %v377 = vrot.slane %v360, %v376
    %v378 = vlaneseq
    %v379 = vshrl.u32 %v378, 7
    %v380 = vsub.s32 4, %v379
    %v381 = vrot.slane %v360, %v380
    %v382 = vlaneseq
    %v383 = vshrl.u32 %v382, 7
    %v384 = vsub.s32 5, %v383
    %v385 = vrot.slane %v360, %v384
    %v386 = vlaneseq
    %v387 = vshrl.u32 %v386, 7
    %v388 = vsub.s32 6, %v387
    %v389 = vrot.slane %v360, %v388
    %v429 = vunpack.c.l.b16 %v328
    %v430 = vunpack.c.h.b16 %v328
    %v431 = vunpack.c.l.b16 %v329
    %v432 = vunpack.c.h.b16 %v329
    %v433 = vunpack.c.l.b16 %v330
    %v434 = vunpack.c.h.b16 %v330
    %v435 = vunpack.c.l.b16 %v331
    %v436 = vunpack.c.l.b16 %v332
    %v437 = vunpack.c.h.b16 %v332
    %v438 = vunpack.c.l.b16 %v333
    %v439 = vunpack.c.h.b16 %v333
    %v440 = vunpack.c.l.b16 %v334
    %v441 = vunpack.c.h.b16 %v334
    %v442 = vunpack.c.l.b16 %v335
    %v443 = vunpack.c.l.b16 %v336
    %v444 = vunpack.c.h.b16 %v336
    %v445 = vunpack.c.l.b16 %v337
    %v446 = vunpack.c.h.b16 %v337
    %v447 = vunpack.c.l.b16 %v338
    %v448 = vunpack.c.h.b16 %v338
    %v449 = vunpack.c.l.b16 %v339
    %v450 = vunpack.c.l.b16 %v340
    %v451 = vunpack.c.h.b16 %v340
    %v452 = vunpack.c.l.b16 %v341
    %v453 = vunpack.c.h.b16 %v341
    %v454 = vunpack.c.l.b16 %v342
    %v455 = vunpack.c.h.b16 %v342
    %v456 = vunpack.c.l.b16 %v343
    %v457 = vunpack.c.l.b16 %v344
    %v458 = vunpack.c.h.b16 %v344
    %v459 = vunpack.c.l.b16 %v345
    %v460 = vunpack.c.h.b16 %v345
    %v461 = vunpack.c.l.b16 %v346
    %v462 = vunpack.c.h.b16 %v346
    %v463 = vunpack.c.l.b16 %v347
    %v464 = vunpack.c.l.b16 %v348
    %v465 = vunpack.c.h.b16 %v348
    %v466 = vunpack.c.l.b16 %v349
    %v467 = vunpack.c.h.b16 %v349
    %v468 = vunpack.c.l.b16 %v350
    %v469 = vunpack.c.h.b16 %v350
    %v470 = vunpack.c.l.b16 %v351
    %v471 = vunpack.c.l.b16 %v352
    %v472 = vunpack.c.h.b16 %v352
    %v473 = vunpack.c.l.b16 %v353
    %v474 = vunpack.c.h.b16 %v353
    %v475 = vunpack.c.l.b16 %v354
    %v476 = vunpack.c.h.b16 %v354
    %v477 = vunpack.c.l.b16 %v355
    %v478 = vunpack.c.l.b16 %v356
    %v479 = vunpack.c.h.b16 %v356
    %v480 = vunpack.c.l.b16 %v357
    %v481 = vunpack.c.h.b16 %v357
    %v482 = vunpack.c.l.b16 %v358
    %v483 = vunpack.c.h.b16 %v358
    %v484 = vunpack.c.l.b16 %v359
    %v485 = vpack.c.b16 %v436, %v429
    %v486 = vpack.c.b16 %v437, %v430
    %v487 = vpack.c.b16 %v438, %v431
    %v488 = vpack.c.b16 %v439, %v432
    %v489 = vpack.c.b16 %v440, %v433
    %v490 = vpack.c.b16 %v441, %v434
    %v491 = vpack.c.b16 %v442, %v435
    %v492 = vpack.c.b16 %v450, %v443
    %v493 = vpack.c.b16 %v451, %v444
    %v494 = vpack.c.b16 %v452, %v445
    %v495 = vpack.c.b16 %v453, %v446
    %v496 = vpack.c.b16 %v454, %v447
    %v497 = vpack.c.b16 %v455, %v448
    %v498 = vpack.c.b16 %v456, %v449
    %v499 = vpack.c.b16 %v464, %v457
    %v500 = vpack.c.b16 %v465, %v458
    %v501 = vpack.c.b16 %v466, %v459
    %v502 = vpack.c.b16 %v467, %v460
    %v503 = vpack.c.b16 %v468, %v461
    %v504 = vpack.c.b16 %v469, %v462
    %v505 = vpack.c.b16 %v470, %v463
    %v506 = vpack.c.b16 %v478, %v471
    %v507 = vpack.c.b16 %v479, %v472
    %v508 = vpack.c.b16 %v480, %v473
    %v509 = vpack.c.b16 %v481, %v474
    %v510 = vpack.c.b16 %v482, %v475
    %v511 = vpack.c.b16 %v483, %v476
    %v512 = vpack.c.b16 %v484, %v477
    %v542 = vsel %vm168, %v327, 0
    %544 = vmatprep.subr.bf16.mxu0 %v486
    %545 = vmatpush1.bf16.msra.mxu0 %v485
    %546 = vmatprep.subr.bf16.mxu0 %v493
    %547 = vmatpush1.bf16.msra.mxu0 %v492
    %548 = vmatprep.subr.bf16.mxu0 %v500
    %549 = vmatpush1.bf16.msra.mxu0 %v499
    %550 = vmatprep.subr.bf16.mxu0 %v507
    %551 = vmatpush1.bf16.msra.mxu0 %v506
    %552 = vmatprep.subr.bf16.mxu0 0
    %553 = vmatpush1.bf16.msra.mxu0 0
    %554 = vmatprep.subr.bf16.mxu0 0
    %555 = vmatpush1.bf16.msra.mxu0 0
    %556 = vmatprep.subr.bf16.mxu0 0
    %557 = vmatpush1.bf16.msra.mxu0 0
    %558 = vmatprep.subr.bf16.mxu0 0
    %559 = vmatpush1.bf16.msra.mxu0 0
    %560 = vmatprep.subr.bf16.mxu0 0
    %561 = vmatpush1.bf16.msra.mxu0 0
    %562 = vmatprep.subr.bf16.mxu0 0
    %563 = vmatpush1.bf16.msra.mxu0 0
    %564 = vmatprep.subr.bf16.mxu0 0
    %565 = vmatpush1.bf16.msra.mxu0 0
    %566 = vmatprep.subr.bf16.mxu0 0
    %567 = vmatpush1.bf16.msra.mxu0 0
    %568 = vmatprep.subr.bf16.mxu0 0
    %569 = vmatpush1.bf16.msra.mxu0 0
    %570 = vmatprep.subr.bf16.mxu0 0
    %571 = vmatpush1.bf16.msra.mxu0 0
    %572 = vmatprep.subr.bf16.mxu0 0
    %573 = vmatpush1.bf16.msra.mxu0 0
    %574 = vmatprep.subr.bf16.mxu0 0
    %575 = vmatpush1.bf16.msra.mxu0 0
    %576 = vmatprep.mubr.bf16.mxu0 0
    %577 = vmatmul.mubr.bf16.gmra.mrb[0].mxu0 %v542
    %v578 = vpop.f32.mrb[0].mxu0
    %v579 = vadd.f32 %v365, %v578
    %v580 = vpop.f32.mrb[0].mxu0
    %v581 = vadd.f32 %v369, %v580
    %v582 = vpop.f32.mrb[0].mxu0
    %v583 = vpop.f32.mrb[0].mxu0
    %584 = vdwg.mxu0
    %585 = vmatprep.subr.bf16.mxu0 %v488
    %586 = vmatpush1.bf16.msra.mxu0 %v487
    %587 = vmatprep.subr.bf16.mxu0 %v495
    %588 = vmatpush1.bf16.msra.mxu0 %v494
    %589 = vmatprep.subr.bf16.mxu0 %v502
    %590 = vmatpush1.bf16.msra.mxu0 %v501
    %591 = vmatprep.subr.bf16.mxu0 %v509
    %592 = vmatpush1.bf16.msra.mxu0 %v508
    %593 = vmatprep.subr.bf16.mxu0 0
    %594 = vmatpush1.bf16.msra.mxu0 0
    %595 = vmatprep.subr.bf16.mxu0 0
    %596 = vmatpush1.bf16.msra.mxu0 0
    %597 = vmatprep.subr.bf16.mxu0 0
    %598 = vmatpush1.bf16.msra.mxu0 0
    %599 = vmatprep.subr.bf16.mxu0 0
    %600 = vmatpush1.bf16.msra.mxu0 0
    %601 = vmatprep.subr.bf16.mxu0 0
    %602 = vmatpush1.bf16.msra.mxu0 0
    %603 = vmatprep.subr.bf16.mxu0 0
    %604 = vmatpush1.bf16.msra.mxu0 0
    %605 = vmatprep.subr.bf16.mxu0 0
    %606 = vmatpush1.bf16.msra.mxu0 0
    %607 = vmatprep.subr.bf16.mxu0 0
    %608 = vmatpush1.bf16.msra.mxu0 0
    %609 = vmatprep.subr.bf16.mxu0 0
    %610 = vmatpush1.bf16.msra.mxu0 0
    %611 = vmatprep.subr.bf16.mxu0 0
    %612 = vmatpush1.bf16.msra.mxu0 0
    %613 = vmatprep.subr.bf16.mxu0 0
    %614 = vmatpush1.bf16.msra.mxu0 0
    %615 = vmatprep.subr.bf16.mxu0 0
    %616 = vmatpush1.bf16.msra.mxu0 0
    %617 = vmatprep.mubr.bf16.mxu0 0
    %618 = vmatmul.mubr.bf16.gmra.mrb[0].mxu0 %v542
    %v619 = vpop.f32.mrb[0].mxu0
    %v620 = vadd.f32 %v373, %v619
    %v621 = vpop.f32.mrb[0].mxu0
    %v622 = vadd.f32 %v377, %v621
    %v623 = vpop.f32.mrb[0].mxu0
    %v624 = vpop.f32.mrb[0].mxu0
    %625 = vdwg.mxu0
    %626 = vmatprep.subr.bf16.mxu0 %v490
    %627 = vmatpush1.bf16.msra.mxu0 %v489
    %628 = vmatprep.subr.bf16.mxu0 %v497
    %629 = vmatpush1.bf16.msra.mxu0 %v496
    %630 = vmatprep.subr.bf16.mxu0 %v504
    %631 = vmatpush1.bf16.msra.mxu0 %v503
    %632 = vmatprep.subr.bf16.mxu0 %v511
    %633 = vmatpush1.bf16.msra.mxu0 %v510
    %634 = vmatprep.subr.bf16.mxu0 0
    %635 = vmatpush1.bf16.msra.mxu0 0
    %636 = vmatprep.subr.bf16.mxu0 0
    %637 = vmatpush1.bf16.msra.mxu0 0
    %638 = vmatprep.subr.bf16.mxu0 0
    %639 = vmatpush1.bf16.msra.mxu0 0
    %640 = vmatprep.subr.bf16.mxu0 0
    %641 = vmatpush1.bf16.msra.mxu0 0
    %642 = vmatprep.subr.bf16.mxu0 0
    %643 = vmatpush1.bf16.msra.mxu0 0
    %644 = vmatprep.subr.bf16.mxu0 0
    %645 = vmatpush1.bf16.msra.mxu0 0
    %646 = vmatprep.subr.bf16.mxu0 0
    %647 = vmatpush1.bf16.msra.mxu0 0
    %648 = vmatprep.subr.bf16.mxu0 0
    %649 = vmatpush1.bf16.msra.mxu0 0
    %650 = vmatprep.subr.bf16.mxu0 0
    %651 = vmatpush1.bf16.msra.mxu0 0
    %652 = vmatprep.subr.bf16.mxu0 0
    %653 = vmatpush1.bf16.msra.mxu0 0
    %654 = vmatprep.subr.bf16.mxu0 0
    %655 = vmatpush1.bf16.msra.mxu0 0
    %656 = vmatprep.subr.bf16.mxu0 0
    %657 = vmatpush1.bf16.msra.mxu0 0
    %658 = vmatprep.mubr.bf16.mxu0 0
    %659 = vmatmul.mubr.bf16.gmra.mrb[0].mxu0 %v542
    %v660 = vpop.f32.mrb[0].mxu0
    %v661 = vadd.f32 %v381, %v660
    %v662 = vpop.f32.mrb[0].mxu0
    %v663 = vadd.f32 %v385, %v662
    %v664 = vpop.f32.mrb[0].mxu0
    %v665 = vpop.f32.mrb[0].mxu0
    %666 = vdwg.mxu0
    %667 = vmatprep.subr.bf16.mxu0 0
    %668 = vmatpush1.bf16.msra.mxu0 %v491
    %669 = vmatprep.subr.bf16.mxu0 0
    %670 = vmatpush1.bf16.msra.mxu0 %v498
    %671 = vmatprep.subr.bf16.mxu0 0
    %672 = vmatpush1.bf16.msra.mxu0 %v505
    %673 = vmatprep.subr.bf16.mxu0 0
    %674 = vmatpush1.bf16.msra.mxu0 %v512
    %675 = vmatprep.subr.bf16.mxu0 0
    %676 = vmatpush1.bf16.msra.mxu0 0
    %677 = vmatprep.subr.bf16.mxu0 0
    %678 = vmatpush1.bf16.msra.mxu0 0
    %679 = vmatprep.subr.bf16.mxu0 0
    %680 = vmatpush1.bf16.msra.mxu0 0
    %681 = vmatprep.subr.bf16.mxu0 0
    %682 = vmatpush1.bf16.msra.mxu0 0
    %683 = vmatprep.subr.bf16.mxu0 0
    %684 = vmatpush1.bf16.msra.mxu0 0
    %685 = vmatprep.subr.bf16.mxu0 0
    %686 = vmatpush1.bf16.msra.mxu0 0
    %687 = vmatprep.subr.bf16.mxu0 0
    %688 = vmatpush1.bf16.msra.mxu0 0
    %689 = vmatprep.subr.bf16.mxu0 0
    %690 = vmatpush1.bf16.msra.mxu0 0
    %691 = vmatprep.subr.bf16.mxu0 0
    %692 = vmatpush1.bf16.msra.mxu0 0
    %693 = vmatprep.subr.bf16.mxu0 0
    %694 = vmatpush1.bf16.msra.mxu0 0
    %695 = vmatprep.subr.bf16.mxu0 0
    %696 = vmatpush1.bf16.msra.mxu0 0
    %697 = vmatprep.subr.bf16.mxu0 0
    %698 = vmatpush1.bf16.msra.mxu0 0
    %699 = vmatprep.mubr.bf16.mxu0 0
    %700 = vmatmul.mubr.bf16.gmra.mrb[0].mxu0 %v542
    %v701 = vpop.f32.mrb[0].mxu0
    %v702 = vadd.f32 %v389, %v701
    %v703 = vpop.f32.mrb[0].mxu0
    %v704 = vpop.f32.mrb[0].mxu0
    %v705 = vpop.f32.mrb[0].mxu0
    %706 = vdwg.mxu0
    %v709 = vunpack.c.l.s4 1966171168
    %v710 = vunpack.c.0.s8 %v709
    %v711 = vlaneseq
    %v712 = vshrl.u32 %v711, 7
    %v713 = vsub.s32 %v710, %v712
    %v714 = vrot.slane %v579, %v713
    %v715 = vcombine.high %v714, %v714
    %v717 = vunpack.c.l.s4 1966171168
    %v718 = vunpack.c.0.s8 %v717
    %v719 = vlaneseq
    %v720 = vshrl.u32 %v719, 7
    %v721 = vsub.s32 %v718, %v720
    %v722 = vrot.slane %v714, %v721
    %v724 = vunpack.c.l.s4 1966171168
    %v725 = vunpack.c.0.s8 %v724
    %v726 = vlaneseq
    %v727 = vshrl.u32 %v726, 7
    %v728 = vsub.s32 %v725, %v727
    %v729 = vrot.slane %v715, %v728
    %v734 = vunpack.c.l.s4 1966171168
    %v735 = vunpack.c.0.s8 %v734
    %v736 = vlaneseq
    %v737 = vshrl.u32 %v736, 7
    %v738 = vsub.s32 %v735, %v737
    %v739 = vrot.slane %v581, %v738
    %v740 = vcombine.high %v739, %v739
    %v742 = vunpack.c.l.s4 1966171168
    %v743 = vunpack.c.0.s8 %v742
    %v744 = vlaneseq
    %v745 = vshrl.u32 %v744, 7
    %v746 = vsub.s32 %v743, %v745
    %v747 = vrot.slane %v739, %v746
    %v749 = vunpack.c.l.s4 1966171168
    %v750 = vunpack.c.0.s8 %v749
    %v751 = vlaneseq
    %v752 = vshrl.u32 %v751, 7
    %v753 = vsub.s32 %v750, %v752
    %v754 = vrot.slane %v740, %v753
    %v757 = vunpack.c.l.s4 1966171168
    %v758 = vunpack.c.0.s8 %v757
    %v759 = vlaneseq
    %v760 = vshrl.u32 %v759, 7
    %v761 = vsub.s32 %v758, %v760
    %v762 = vrot.slane %v620, %v761
    %v763 = vcombine.high %v762, %v762
    %v765 = vunpack.c.l.s4 1966171168
    %v766 = vunpack.c.0.s8 %v765
    %v767 = vlaneseq
    %v768 = vshrl.u32 %v767, 7
    %v769 = vsub.s32 %v766, %v768
    %v770 = vrot.slane %v762, %v769
    %v772 = vunpack.c.l.s4 1966171168
    %v773 = vunpack.c.0.s8 %v772
    %v774 = vlaneseq
    %v775 = vshrl.u32 %v774, 7
    %v776 = vsub.s32 %v773, %v775
    %v777 = vrot.slane %v763, %v776
    %v780 = vsel %vm168, %v318, 0.0
    %781 = vadd.xlane.f32.xlu0 %v780
    %v782 = vpop.xlane.xlu0 %781
    %v783 = vsel %vm168, %v319, 0.0
    %784 = vadd.xlane.f32.xlu0 %v783
    %v785 = vpop.xlane.xlu0 %784
    %v786 = vsel %vm168, %v320, 0.0
    %787 = vadd.xlane.f32.xlu0 %v786
    %v788 = vpop.xlane.xlu0 %787
    %v789 = vsel %vm168, %v321, 0.0
    %790 = vadd.xlane.f32.xlu0 %v789
    %v791 = vpop.xlane.xlu0 %790
    %v792 = vsel %vm168, %v322, 0.0
    %793 = vadd.xlane.f32.xlu0 %v792
    %v794 = vpop.xlane.xlu0 %793
    %v795 = vsel %vm168, %v323, 0.0
    %796 = vadd.xlane.f32.xlu0 %v795
    %v797 = vpop.xlane.xlu0 %796
    %v798 = vsel %vm168, %v324, 0.0
    %799 = vadd.xlane.f32.xlu0 %v798
    %v800 = vpop.xlane.xlu0 %799
    %v801 = vsel %vm168, %v325, 0.0
    %802 = vadd.xlane.f32.xlu0 %v801
    %v803 = vpop.xlane.xlu0 %802
    %v804 = vrcp.pop 64.0
    %v805 = vmul.f32 %v782, %v804
    %v806 = vmul.f32 %v785, %v804
    %v807 = vmul.f32 %v788, %v804
    %v808 = vmul.f32 %v791, %v804
    %v809 = vmul.f32 %v794, %v804
    %v810 = vmul.f32 %v797, %v804
    %v811 = vmul.f32 %v800, %v804
    %v812 = vmul.f32 %v803, %v804
    %v813 = vsub.f32 %v318, %v805
    %v814 = vsub.f32 %v319, %v806
    %v815 = vsub.f32 %v320, %v807
    %v816 = vsub.f32 %v321, %v808
    %v817 = vsub.f32 %v322, %v809
    %v818 = vsub.f32 %v323, %v810
    %v819 = vsub.f32 %v324, %v811
    %v820 = vsub.f32 %v325, %v812
    %v821 = vmul.f32 %v813, %v813
    %v822 = vmul.f32 %v814, %v814
    %v823 = vmul.f32 %v815, %v815
    %v824 = vmul.f32 %v816, %v816
    %v825 = vmul.f32 %v817, %v817
    %v826 = vmul.f32 %v818, %v818
    %v827 = vmul.f32 %v819, %v819
    %v828 = vmul.f32 %v820, %v820
    %v829 = vsel %vm168, %v821, 0.0
    %830 = vadd.xlane.f32.xlu0 %v829
    %v831 = vpop.xlane.xlu0 %830
    %v832 = vsel %vm168, %v822, 0.0
    %833 = vadd.xlane.f32.xlu0 %v832
    %v834 = vpop.xlane.xlu0 %833
    %v835 = vsel %vm168, %v823, 0.0
    %836 = vadd.xlane.f32.xlu0 %v835
    %v837 = vpop.xlane.xlu0 %836
    %v838 = vsel %vm168, %v824, 0.0
    %839 = vadd.xlane.f32.xlu0 %v838
    %v840 = vpop.xlane.xlu0 %839
    %v841 = vsel %vm168, %v825, 0.0
    %842 = vadd.xlane.f32.xlu0 %v841
    %v843 = vpop.xlane.xlu0 %842
    %v844 = vsel %vm168, %v826, 0.0
    %845 = vadd.xlane.f32.xlu0 %v844
    %v846 = vpop.xlane.xlu0 %845
    %v847 = vsel %vm168, %v827, 0.0
    %848 = vadd.xlane.f32.xlu0 %v847
    %v849 = vpop.xlane.xlu0 %848
    %v850 = vsel %vm168, %v828, 0.0
    %851 = vadd.xlane.f32.xlu0 %v850
    %v852 = vpop.xlane.xlu0 %851
    %v853 = vmul.f32 %v831, %v804
    %v854 = vmul.f32 %v834, %v804
    %v855 = vmul.f32 %v837, %v804
    %v856 = vmul.f32 %v840, %v804
    %v857 = vmul.f32 %v843, %v804
    %v858 = vmul.f32 %v846, %v804
    %v859 = vmul.f32 %v849, %v804
    %v860 = vmul.f32 %v852, %v804
    %v861 = vadd.f32 %v853, 1e-06
    %v862 = vadd.f32 %v854, 1e-06
    %v863 = vadd.f32 %v855, 1e-06
    %v864 = vadd.f32 %v856, 1e-06
    %v865 = vadd.f32 %v857, 1e-06
    %v866 = vadd.f32 %v858, 1e-06
    %v867 = vadd.f32 %v859, 1e-06
    %v868 = vadd.f32 %v860, 1e-06
    %v869 = vrsqrt.pop %v861
    %v870 = vrsqrt.pop %v862
    %v871 = vrsqrt.pop %v863
    %v872 = vrsqrt.pop %v864
    %v873 = vrsqrt.pop %v865
    %v874 = vrsqrt.pop %v866
    %v875 = vrsqrt.pop %v867
    %v876 = vrsqrt.pop %v868
    %v877 = vmul.f32 %v813, %v869
    %v878 = vmul.f32 %v814, %v870
    %v879 = vmul.f32 %v815, %v871
    %v880 = vmul.f32 %v816, %v872
    %v881 = vmul.f32 %v817, %v873
    %v882 = vmul.f32 %v818, %v874
    %v883 = vmul.f32 %v819, %v875
    %v884 = vmul.f32 %v820, %v876
    %v885 = vadd.f32 %v722, 1.0
    %v886 = vadd.f32 %v729, 1.0
    %v889 = vlaneseq
    %v890 = vshrl.u32 %v889, 7
    %v891 = vsub.s32 0, %v890
    %v892 = vrot.slane %v885, %v891
    %v893 = vlaneseq
    %v894 = vshrl.u32 %v893, 7
    %v895 = vsub.s32 0, %v894
    %v896 = vrot.slane %v886, %v895
    %897 = vrot.lane.b32.xlu0 %v892, 64
    %v898 = vpop.permute.xlu0 %897
    %899 = vrot.lane.b32.xlu0 %v896, 64
    %v900 = vpop.permute.xlu0 %899
    %v903 = vmul.f32 %v877, %v898
    %v904 = vmul.f32 %v878, %v898
    %v905 = vmul.f32 %v879, %v898
    %v906 = vmul.f32 %v880, %v898
    %v907 = vmul.f32 %v881, %v900
    %v908 = vmul.f32 %v882, %v900
    %v909 = vmul.f32 %v883, %v900
    %v910 = vmul.f32 %v884, %v900
    %v911 = vlaneseq
    %v912 = vshrl.u32 %v911, 7
    %v913 = vsub.s32 0, %v912
    %v914 = vrot.slane %v722, %v913
    %v915 = vlaneseq
    %v916 = vshrl.u32 %v915, 7
    %v917 = vsub.s32 0, %v916
    %v918 = vrot.slane %v729, %v917
    %v921 = vadd.f32 %v903, %v914
    %v922 = vadd.f32 %v904, %v914
    %v923 = vadd.f32 %v905, %v914
    %v924 = vadd.f32 %v906, %v914
    %v925 = vadd.f32 %v907, %v918
    %v926 = vadd.f32 %v908, %v918
    %v927 = vadd.f32 %v909, %v918
    %v928 = vadd.f32 %v910, %v918
    %v929 = vpack.c.bf16 %v922, %v921
    %v930 = vpack.c.bf16 %v924, %v923
    %v931 = vpack.c.bf16 %v926, %v925
    %v932 = vpack.c.bf16 %v928, %v927
    %v933 = vld [vmem:[%s12] sm:$0xff]
    %v934 = vld [vmem:[%s12 + $0x8] sm:$0xff]
    %v935 = vld [vmem:[%s12 + $0x10] sm:$0xff]
    %v936 = vld [vmem:[%s12 + $0x18] sm:$0xff]
    %v937 = vld [vmem:[%s12 + $0x20] sm:$0xff]
    %v938 = vld [vmem:[%s12 + $0x28] sm:$0xff]
    %v939 = vld [vmem:[%s12 + $0x30] sm:$0xff]
    %v940 = vld [vmem:[%s12 + $0x38] sm:$0xff]
    %v941 = vld [vmem:[%s13] sm:$0x3]
    %v943 = vlaneseq
    %v944 = vshrl.u32 %v943, 7
    %v945 = vsub.s32 0, %v944
    %v946 = vrot.slane %v941, %v945
    %v947 = vlaneseq
    %v948 = vshrl.u32 %v947, 7
    %v949 = vsub.s32 1, %v948
    %v950 = vrot.slane %v941, %v949
    %v961 = vunpack.c.l.b16 %v933
    %v962 = vunpack.c.h.b16 %v933
    %v963 = vunpack.c.l.b16 %v934
    %v964 = vunpack.c.h.b16 %v934
    %v965 = vunpack.c.l.b16 %v935
    %v966 = vunpack.c.h.b16 %v935
    %v967 = vunpack.c.l.b16 %v936
    %v968 = vunpack.c.h.b16 %v936
    %v969 = vunpack.c.l.b16 %v937
    %v970 = vunpack.c.h.b16 %v937
    %v971 = vunpack.c.l.b16 %v938
    %v972 = vunpack.c.h.b16 %v938
    %v973 = vunpack.c.l.b16 %v939
    %v974 = vunpack.c.h.b16 %v939
    %v975 = vunpack.c.l.b16 %v940
    %v976 = vunpack.c.h.b16 %v940
    %v977 = vpack.c.b16 %v963, %v961
    %v978 = vpack.c.b16 %v964, %v962
    %v979 = vpack.c.b16 %v967, %v965
    %v980 = vpack.c.b16 %v968, %v966
    %v981 = vpack.c.b16 %v971, %v969
    %v982 = vpack.c.b16 %v972, %v970
    %v983 = vpack.c.b16 %v975, %v973
    %v984 = vpack.c.b16 %v976, %v974
    %v994 = vsel %vm168, %v929, 0
    %v997 = vsel %vm168, %v930, 0
    %v1000 = vsel %vm168, %v931, 0
    %v1003 = vsel %vm168, %v932, 0
    %1005 = vmatprep.subr.bf16.mxu0 %v978
    %1006 = vmatpush1.bf16.msra.mxu0 %v977
    %1007 = vmatprep.subr.bf16.mxu0 %v980
    %1008 = vmatpush1.bf16.msra.mxu0 %v979
    %1009 = vmatprep.subr.bf16.mxu0 %v982
    %1010 = vmatpush1.bf16.msra.mxu0 %v981
    %1011 = vmatprep.subr.bf16.mxu0 %v984
    %1012 = vmatpush1.bf16.msra.mxu0 %v983
    %1013 = vmatprep.subr.bf16.mxu0 0
    %1014 = vmatpush1.bf16.msra.mxu0 0
    %1015 = vmatprep.subr.bf16.mxu0 0
    %1016 = vmatpush1.bf16.msra.mxu0 0
    %1017 = vmatprep.subr.bf16.mxu0 0
    %1018 = vmatpush1.bf16.msra.mxu0 0
    %1019 = vmatprep.subr.bf16.mxu0 0
    %1020 = vmatpush1.bf16.msra.mxu0 0
    %1021 = vmatprep.subr.bf16.mxu0 0
    %1022 = vmatpush1.bf16.msra.mxu0 0
    %1023 = vmatprep.subr.bf16.mxu0 0
    %1024 = vmatpush1.bf16.msra.mxu0 0
    %1025 = vmatprep.subr.bf16.mxu0 0
    %1026 = vmatpush1.bf16.msra.mxu0 0
    %1027 = vmatprep.subr.bf16.mxu0 0
    %1028 = vmatpush1.bf16.msra.mxu0 0
    %1029 = vmatprep.subr.bf16.mxu0 0
    %1030 = vmatpush1.bf16.msra.mxu0 0
    %1031 = vmatprep.subr.bf16.mxu0 0
    %1032 = vmatpush1.bf16.msra.mxu0 0
    %1033 = vmatprep.subr.bf16.mxu0 0
    %1034 = vmatpush1.bf16.msra.mxu0 0
    %1035 = vmatprep.subr.bf16.mxu0 0
    %1036 = vmatpush1.bf16.msra.mxu0 0
    %1037 = vmatprep.mubr.bf16.mxu0 0
    %1038 = vmatmul.mubr.bf16.gmra.mrb[0].mxu0 %v994
    %v1039 = vpop.f32.mrb[0].mxu0
    %v1040 = vadd.f32 %v946, %v1039
    %v1041 = vpop.f32.mrb[0].mxu0
    %v1042 = vadd.f32 %v950, %v1041
    %v1043 = vpop.f32.mrb[0].mxu0
    %v1044 = vadd.f32 %v946, %v1043
    %v1045 = vpop.f32.mrb[0].mxu0
    %v1046 = vadd.f32 %v950, %v1045
    %1047 = vmatprep.mubr.bf16.mxu0 0
    %1048 = vmatmul.mubr.bf16.gmra.mrb[0].mxu0 %v997
    %v1049 = vpop.f32.mrb[0].mxu0
    %v1050 = vadd.f32 %v946, %v1049
    %v1051 = vpop.f32.mrb[0].mxu0
    %v1052 = vadd.f32 %v950, %v1051
    %v1053 = vpop.f32.mrb[0].mxu0
    %v1054 = vadd.f32 %v946, %v1053
    %v1055 = vpop.f32.mrb[0].mxu0
    %v1056 = vadd.f32 %v950, %v1055
    %1057 = vmatprep.mubr.bf16.mxu0 0
    %1058 = vmatmul.mubr.bf16.gmra.mrb[0].mxu0 %v1000
    %v1059 = vpop.f32.mrb[0].mxu0
    %v1060 = vadd.f32 %v946, %v1059
    %v1061 = vpop.f32.mrb[0].mxu0
    %v1062 = vadd.f32 %v950, %v1061
    %v1063 = vpop.f32.mrb[0].mxu0
    %v1064 = vadd.f32 %v946, %v1063
    %v1065 = vpop.f32.mrb[0].mxu0
    %v1066 = vadd.f32 %v950, %v1065
    %1067 = vmatprep.mubr.bf16.mxu0 0
    %1068 = vmatmul.mubr.bf16.gmra.mrb[0].mxu0 %v1003
    %v1069 = vpop.f32.mrb[0].mxu0
    %v1070 = vadd.f32 %v946, %v1069
    %v1071 = vpop.f32.mrb[0].mxu0
    %v1072 = vadd.f32 %v950, %v1071
    %v1073 = vpop.f32.mrb[0].mxu0
    %v1074 = vadd.f32 %v946, %v1073
    %v1075 = vpop.f32.mrb[0].mxu0
    %v1076 = vadd.f32 %v950, %v1075
    %1077 = vdwg.mxu0
    %v1078 = vpack.c.bf16 %v1044, %v1040
    %v1079 = vpack.c.bf16 %v1054, %v1050
    %v1080 = vpack.c.bf16 %v1064, %v1060
    %v1081 = vpack.c.bf16 %v1074, %v1070
    %1084 = vrot.lane.b32.xlu0 %v1078, 64
    %v1085 = vpop.permute.xlu0 %1084
    %1086 = vrot.lane.b32.xlu0 %v1079, 64
    %v1087 = vpop.permute.xlu0 %1086
    %vm1088 = vcmask 261120
    %v1090 = vsel %vm1088, %v1078, 0
    %v1093 = vsel %vm1088, %v1079, 0
    %v1096 = vsel %vm1088, %v1085, 0
    %v1099 = vsel %vm1088, %v1087, 0
    %1101 = vmatprep.subr.bf16.mxu0 0
    %1102 = vmatpush1.bf16.xpose.msra.mxu0 %v1096
    %1103 = vmatprep.subr.bf16.mxu0 0
    %1104 = vmatpush1.bf16.xpose.msra.mxu0 %v1099
    %1105 = vmatprep.subr.bf16.mxu0 0
    %1106 = vmatpush1.bf16.xpose.msra.mxu0 0
    %1107 = vmatprep.subr.bf16.mxu0 0
    %1108 = vmatpush1.bf16.xpose.msra.mxu0 0
    %1109 = vmatprep.subr.bf16.mxu0 0
    %1110 = vmatpush1.bf16.xpose.msra.mxu0 0
    %1111 = vmatprep.subr.bf16.mxu0 0
    %1112 = vmatpush1.bf16.xpose.msra.mxu0 0
    %1113 = vmatprep.subr.bf16.mxu0 0
    %1114 = vmatpush1.bf16.xpose.msra.mxu0 0
    %1115 = vmatprep.subr.bf16.mxu0 0
    %1116 = vmatpush1.bf16.xpose.msra.mxu0 0
    %1117 = vmatprep.subr.bf16.mxu0 0
    %1118 = vmatpush1.bf16.xpose.msra.mxu0 0
    %1119 = vmatprep.subr.bf16.mxu0 0
    %1120 = vmatpush1.bf16.xpose.msra.mxu0 0
    %1121 = vmatprep.subr.bf16.mxu0 0
    %1122 = vmatpush1.bf16.xpose.msra.mxu0 0
    %1123 = vmatprep.subr.bf16.mxu0 0
    %1124 = vmatpush1.bf16.xpose.msra.mxu0 0
    %1125 = vmatprep.subr.bf16.mxu0 0
    %1126 = vmatpush1.bf16.xpose.msra.mxu0 0
    %1127 = vmatprep.subr.bf16.mxu0 0
    %1128 = vmatpush1.bf16.xpose.msra.mxu0 0
    %1129 = vmatprep.subr.bf16.mxu0 0
    %1130 = vmatpush1.bf16.xpose.msra.mxu0 0
    %1131 = vmatprep.subr.bf16.mxu0 0
    %1132 = vmatpush1.bf16.xpose.msra.mxu0 0
    %1133 = vmatprep.mubr.bf16.mxu0 0
    %1134 = vmatmul.mubr.bf16.gmra.mrb[0].mxu0 %v1090
    %v1135 = vpop.f32.mrb[0].mxu0
    %v1136 = vadd.f32 0.0, %v1135
    %v1137 = vpop.f32.mrb[0].mxu0
    %v1138 = vpop.f32.mrb[0].mxu0
    %v1139 = vadd.f32 0.0, %v1138
    %v1140 = vpop.f32.mrb[0].mxu0
    %1141 = vmatprep.mubr.bf16.mxu0 0
    %1142 = vmatmul.mubr.bf16.gmra.mrb[0].mxu0 %v1093
    %v1143 = vpop.f32.mrb[0].mxu0
    %v1144 = vadd.f32 0.0, %v1143
    %v1145 = vpop.f32.mrb[0].mxu0
    %v1146 = vpop.f32.mrb[0].mxu0
    %v1147 = vadd.f32 0.0, %v1146
    %v1148 = vpop.f32.mrb[0].mxu0
    %1149 = vdwg.mxu0
    %1152 = vrot.lane.b32.xlu0 %v1080, 64
    %v1153 = vpop.permute.xlu0 %1152
    %1154 = vrot.lane.b32.xlu0 %v1081, 64
    %v1155 = vpop.permute.xlu0 %1154
    %v1157 = vsel %vm1088, %v1080, 0
    %v1160 = vsel %vm1088, %v1081, 0
    %v1163 = vsel %vm1088, %v1153, 0
    %v1166 = vsel %vm1088, %v1155, 0
    %1168 = vmatprep.subr.bf16.mxu0 0
    %1169 = vmatpush1.bf16.xpose.msra.mxu0 %v1163
    %1170 = vmatprep.subr.bf16.mxu0 0
    %1171 = vmatpush1.bf16.xpose.msra.mxu0 %v1166
    %1172 = vmatprep.subr.bf16.mxu0 0
    %1173 = vmatpush1.bf16.xpose.msra.mxu0 0
    %1174 = vmatprep.subr.bf16.mxu0 0
    %1175 = vmatpush1.bf16.xpose.msra.mxu0 0
    %1176 = vmatprep.subr.bf16.mxu0 0
    %1177 = vmatpush1.bf16.xpose.msra.mxu0 0
    %1178 = vmatprep.subr.bf16.mxu0 0
    %1179 = vmatpush1.bf16.xpose.msra.mxu0 0
    %1180 = vmatprep.subr.bf16.mxu0 0
    %1181 = vmatpush1.bf16.xpose.msra.mxu0 0
    %1182 = vmatprep.subr.bf16.mxu0 0
    %1183 = vmatpush1.bf16.xpose.msra.mxu0 0
    %1184 = vmatprep.subr.bf16.mxu0 0
    %1185 = vmatpush1.bf16.xpose.msra.mxu0 0
    %1186 = vmatprep.subr.bf16.mxu0 0
    %1187 = vmatpush1.bf16.xpose.msra.mxu0 0
    %1188 = vmatprep.subr.bf16.mxu0 0
    %1189 = vmatpush1.bf16.xpose.msra.mxu0 0
    %1190 = vmatprep.subr.bf16.mxu0 0
    %1191 = vmatpush1.bf16.xpose.msra.mxu0 0
    %1192 = vmatprep.subr.bf16.mxu0 0
    %1193 = vmatpush1.bf16.xpose.msra.mxu0 0
    %1194 = vmatprep.subr.bf16.mxu0 0
    %1195 = vmatpush1.bf16.xpose.msra.mxu0 0
    %1196 = vmatprep.subr.bf16.mxu0 0
    %1197 = vmatpush1.bf16.xpose.msra.mxu0 0
    %1198 = vmatprep.subr.bf16.mxu0 0
    %1199 = vmatpush1.bf16.xpose.msra.mxu0 0
    %1200 = vmatprep.mubr.bf16.mxu0 0
    %1201 = vmatmul.mubr.bf16.gmra.mrb[0].mxu0 %v1157
    %v1202 = vpop.f32.mrb[0].mxu0
    %v1203 = vadd.f32 0.0, %v1202
    %v1204 = vpop.f32.mrb[0].mxu0
    %v1205 = vpop.f32.mrb[0].mxu0
    %v1206 = vadd.f32 0.0, %v1205
    %v1207 = vpop.f32.mrb[0].mxu0
    %1208 = vmatprep.mubr.bf16.mxu0 0
    %1209 = vmatmul.mubr.bf16.gmra.mrb[0].mxu0 %v1160
    %v1210 = vpop.f32.mrb[0].mxu0
    %v1211 = vadd.f32 0.0, %v1210
    %v1212 = vpop.f32.mrb[0].mxu0
    %v1213 = vpop.f32.mrb[0].mxu0
    %v1214 = vadd.f32 0.0, %v1213
    %v1215 = vpop.f32.mrb[0].mxu0
    %1216 = vdwg.mxu0
    %v1217 = vmul.f32 %v1136, 0.17677669
    %v1218 = vmul.f32 %v1139, 0.17677669
    %v1219 = vmul.f32 %v1144, 0.17677669
    %v1220 = vmul.f32 %v1147, 0.17677669
    %v1221 = vmul.f32 %v1203, 0.17677669
    %v1222 = vmul.f32 %v1206, 0.17677669
    %v1223 = vmul.f32 %v1211, 0.17677669
    %v1224 = vmul.f32 %v1214, 0.17677669
    %v1225 = vsel %vm1088, %v1217, -inf
    %1226 = vmax.xlane.f32.xlu0 %v1225
    %v1227 = vpop.xlane.xlu0 %1226
    %v1228 = vsel %vm1088, %v1218, -inf
    %1229 = vmax.xlane.f32.xlu0 %v1228
    %v1230 = vpop.xlane.xlu0 %1229
    %v1231 = vsel %vm1088, %v1219, -inf
    %1232 = vmax.xlane.f32.xlu0 %v1231
    %v1233 = vpop.xlane.xlu0 %1232
    %v1234 = vsel %vm1088, %v1220, -inf
    %1235 = vmax.xlane.f32.xlu0 %v1234
    %v1236 = vpop.xlane.xlu0 %1235
    %v1237 = vsel %vm1088, %v1221, -inf
    %1238 = vmax.xlane.f32.xlu0 %v1237
    %v1239 = vpop.xlane.xlu0 %1238
    %v1240 = vsel %vm1088, %v1222, -inf
    %1241 = vmax.xlane.f32.xlu0 %v1240
    %v1242 = vpop.xlane.xlu0 %1241
    %v1243 = vsel %vm1088, %v1223, -inf
    %1244 = vmax.xlane.f32.xlu0 %v1243
    %v1245 = vpop.xlane.xlu0 %1244
    %v1246 = vsel %vm1088, %v1224, -inf
    %1247 = vmax.xlane.f32.xlu0 %v1246
    %v1248 = vpop.xlane.xlu0 %1247
    %v1249 = vsub.f32 %v1217, %v1227
    %v1250 = vsub.f32 %v1218, %v1230
    %v1251 = vsub.f32 %v1219, %v1233
    %v1252 = vsub.f32 %v1220, %v1236
    %v1253 = vsub.f32 %v1221, %v1239
    %v1254 = vsub.f32 %v1222, %v1242
    %v1255 = vsub.f32 %v1223, %v1245
    %v1256 = vsub.f32 %v1224, %v1248
    %v1257 = vmul.f32 %v1249, 1.442695
    %v1258 = vpow.pop %v1257
    %v1259 = vmul.f32 %v1250, 1.442695
    %v1260 = vpow.pop %v1259
    %v1261 = vmul.f32 %v1251, 1.442695
    %v1262 = vpow.pop %v1261
    %v1263 = vmul.f32 %v1252, 1.442695
    %v1264 = vpow.pop %v1263
    %v1265 = vmul.f32 %v1253, 1.442695
    %v1266 = vpow.pop %v1265
    %v1267 = vmul.f32 %v1254, 1.442695
    %v1268 = vpow.pop %v1267
    %v1269 = vmul.f32 %v1255, 1.442695
    %v1270 = vpow.pop %v1269
    %v1271 = vmul.f32 %v1256, 1.442695
    %v1272 = vpow.pop %v1271
    %v1273 = vsel %vm1088, %v1258, 0.0
    %1274 = vadd.xlane.f32.xlu0 %v1273
    %v1275 = vpop.xlane.xlu0 %1274
    %v1276 = vsel %vm1088, %v1260, 0.0
    %1277 = vadd.xlane.f32.xlu0 %v1276
    %v1278 = vpop.xlane.xlu0 %1277
    %v1279 = vsel %vm1088, %v1262, 0.0
    %1280 = vadd.xlane.f32.xlu0 %v1279
    %v1281 = vpop.xlane.xlu0 %1280
    %v1282 = vsel %vm1088, %v1264, 0.0
    %1283 = vadd.xlane.f32.xlu0 %v1282
    %v1284 = vpop.xlane.xlu0 %1283
    %v1285 = vsel %vm1088, %v1266, 0.0
    %1286 = vadd.xlane.f32.xlu0 %v1285
    %v1287 = vpop.xlane.xlu0 %1286
    %v1288 = vsel %vm1088, %v1268, 0.0
    %1289 = vadd.xlane.f32.xlu0 %v1288
    %v1290 = vpop.xlane.xlu0 %1289
    %v1291 = vsel %vm1088, %v1270, 0.0
    %1292 = vadd.xlane.f32.xlu0 %v1291
    %v1293 = vpop.xlane.xlu0 %1292
    %v1294 = vsel %vm1088, %v1272, 0.0
    %1295 = vadd.xlane.f32.xlu0 %v1294
    %v1296 = vpop.xlane.xlu0 %1295
    %v1297 = vrcp.pop %v1275
    %v1298 = vmul.f32 %v1258, %v1297
    %v1299 = vrcp.pop %v1278
    %v1300 = vmul.f32 %v1260, %v1299
    %v1301 = vrcp.pop %v1281
    %v1302 = vmul.f32 %v1262, %v1301
    %v1303 = vrcp.pop %v1284
    %v1304 = vmul.f32 %v1264, %v1303
    %v1305 = vrcp.pop %v1287
    %v1306 = vmul.f32 %v1266, %v1305
    %v1307 = vrcp.pop %v1290
    %v1308 = vmul.f32 %v1268, %v1307
    %v1309 = vrcp.pop %v1293
    %v1310 = vmul.f32 %v1270, %v1309
    %v1311 = vrcp.pop %v1296
    %v1312 = vmul.f32 %v1272, %v1311
    %v1313 = vpack.c.bf16 %v1300, %v1298
    %v1314 = vpack.c.bf16 %v1304, %v1302
    %v1315 = vpack.c.bf16 %v1308, %v1306
    %v1316 = vpack.c.bf16 %v1312, %v1310
    %v1317 = vpack.c.bf16 %v1046, %v1042
    %v1318 = vpack.c.bf16 %v1056, %v1052
    %v1319 = vpack.c.bf16 %v1066, %v1062
    %v1320 = vpack.c.bf16 %v1076, %v1072
    %v1322 = vsel %vm1088, %v1313, 0
    %v1325 = vsel %vm1088, %v1314, 0
    %1327 = vmatprep.subr.bf16.mxu0 0
    %1328 = vmatpush1.bf16.msra.mxu0 %v1317
    %1329 = vmatprep.subr.bf16.mxu0 0
    %1330 = vmatpush1.bf16.msra.mxu0 %v1318
    %1331 = vmatprep.subr.bf16.mxu0 0
    %1332 = vmatpush1.bf16.msra.mxu0 0
    %1333 = vmatprep.subr.bf16.mxu0 0
    %1334 = vmatpush1.bf16.msra.mxu0 0
    %1335 = vmatprep.subr.bf16.mxu0 0
    %1336 = vmatpush1.bf16.msra.mxu0 0
    %1337 = vmatprep.subr.bf16.mxu0 0
    %1338 = vmatpush1.bf16.msra.mxu0 0
    %1339 = vmatprep.subr.bf16.mxu0 0
    %1340 = vmatpush1.bf16.msra.mxu0 0
    %1341 = vmatprep.subr.bf16.mxu0 0
    %1342 = vmatpush1.bf16.msra.mxu0 0
    %1343 = vmatprep.subr.bf16.mxu0 0
    %1344 = vmatpush1.bf16.msra.mxu0 0
    %1345 = vmatprep.subr.bf16.mxu0 0
    %1346 = vmatpush1.bf16.msra.mxu0 0
    %1347 = vmatprep.subr.bf16.mxu0 0
    %1348 = vmatpush1.bf16.msra.mxu0 0
    %1349 = vmatprep.subr.bf16.mxu0 0
    %1350 = vmatpush1.bf16.msra.mxu0 0
    %1351 = vmatprep.subr.bf16.mxu0 0
    %1352 = vmatpush1.bf16.msra.mxu0 0
    %1353 = vmatprep.subr.bf16.mxu0 0
    %1354 = vmatpush1.bf16.msra.mxu0 0
    %1355 = vmatprep.subr.bf16.mxu0 0
    %1356 = vmatpush1.bf16.msra.mxu0 0
    %1357 = vmatprep.subr.bf16.mxu0 0
    %1358 = vmatpush1.bf16.msra.mxu0 0
    %1359 = vmatprep.mubr.bf16.mxu0 0
    %1360 = vmatmul.mubr.bf16.gmra.mrb[0].mxu0 %v1322
    %v1361 = vpop.f32.mrb[0].mxu0
    %v1362 = vadd.f32 0.0, %v1361
    %v1363 = vpop.f32.mrb[0].mxu0
    %v1364 = vpop.f32.mrb[0].mxu0
    %v1365 = vadd.f32 0.0, %v1364
    %v1366 = vpop.f32.mrb[0].mxu0
    %1367 = vmatprep.mubr.bf16.mxu0 0
    %1368 = vmatmul.mubr.bf16.gmra.mrb[0].mxu0 %v1325
    %v1369 = vpop.f32.mrb[0].mxu0
    %v1370 = vadd.f32 0.0, %v1369
    %v1371 = vpop.f32.mrb[0].mxu0
    %v1372 = vpop.f32.mrb[0].mxu0
    %v1373 = vadd.f32 0.0, %v1372
    %v1374 = vpop.f32.mrb[0].mxu0
    %1375 = vdwg.mxu0
    %v1377 = vsel %vm1088, %v1315, 0
    %v1380 = vsel %vm1088, %v1316, 0
    %1382 = vmatprep.subr.bf16.mxu0 0
    %1383 = vmatpush1.bf16.msra.mxu0 %v1319
    %1384 = vmatprep.subr.bf16.mxu0 0
    %1385 = vmatpush1.bf16.msra.mxu0 %v1320
    %1386 = vmatprep.subr.bf16.mxu0 0
    %1387 = vmatpush1.bf16.msra.mxu0 0
    %1388 = vmatprep.subr.bf16.mxu0 0
    %1389 = vmatpush1.bf16.msra.mxu0 0
    %1390 = vmatprep.subr.bf16.mxu0 0
    %1391 = vmatpush1.bf16.msra.mxu0 0
    %1392 = vmatprep.subr.bf16.mxu0 0
    %1393 = vmatpush1.bf16.msra.mxu0 0
    %1394 = vmatprep.subr.bf16.mxu0 0
    %1395 = vmatpush1.bf16.msra.mxu0 0
    %1396 = vmatprep.subr.bf16.mxu0 0
    %1397 = vmatpush1.bf16.msra.mxu0 0
    %1398 = vmatprep.subr.bf16.mxu0 0
    %1399 = vmatpush1.bf16.msra.mxu0 0
    %1400 = vmatprep.subr.bf16.mxu0 0
    %1401 = vmatpush1.bf16.msra.mxu0 0
    %1402 = vmatprep.subr.bf16.mxu0 0
    %1403 = vmatpush1.bf16.msra.mxu0 0
    %1404 = vmatprep.subr.bf16.mxu0 0
    %1405 = vmatpush1.bf16.msra.mxu0 0
    %1406 = vmatprep.subr.bf16.mxu0 0
    %1407 = vmatpush1.bf16.msra.mxu0 0
    %1408 = vmatprep.subr.bf16.mxu0 0
    %1409 = vmatpush1.bf16.msra.mxu0 0
    %1410 = vmatprep.subr.bf16.mxu0 0
    %1411 = vmatpush1.bf16.msra.mxu0 0
    %1412 = vmatprep.subr.bf16.mxu0 0
    %1413 = vmatpush1.bf16.msra.mxu0 0
    %1414 = vmatprep.mubr.bf16.mxu0 0
    %1415 = vmatmul.mubr.bf16.gmra.mrb[0].mxu0 %v1377
    %v1416 = vpop.f32.mrb[0].mxu0
    %v1417 = vadd.f32 0.0, %v1416
    %v1418 = vpop.f32.mrb[0].mxu0
    %v1419 = vpop.f32.mrb[0].mxu0
    %v1420 = vadd.f32 0.0, %v1419
    %v1421 = vpop.f32.mrb[0].mxu0
    %1422 = vmatprep.mubr.bf16.mxu0 0
    %1423 = vmatmul.mubr.bf16.gmra.mrb[0].mxu0 %v1380
    %v1424 = vpop.f32.mrb[0].mxu0
    %v1425 = vadd.f32 0.0, %v1424
    %v1426 = vpop.f32.mrb[0].mxu0
    %v1427 = vpop.f32.mrb[0].mxu0
    %v1428 = vadd.f32 0.0, %v1427
    %v1429 = vpop.f32.mrb[0].mxu0
    %1430 = vdwg.mxu0
    %1431 = vrot.lane.b32.xlu0 %v1078, 96
    %v1432 = vpop.permute.xlu0 %1431
    %1433 = vrot.lane.b32.xlu0 %v1079, 96
    %v1434 = vpop.permute.xlu0 %1433
    %1435 = vrot.lane.b32.xlu0 %v1078, 32
    %v1436 = vpop.permute.xlu0 %1435
    %1437 = vrot.lane.b32.xlu0 %v1079, 32
    %v1438 = vpop.permute.xlu0 %1437
    %v1440 = vsel %vm1088, %v1432, 0
    %v1443 = vsel %vm1088, %v1434, 0
    %v1446 = vsel %vm1088, %v1436, 0
    %v1449 = vsel %vm1088, %v1438, 0
    %1451 = vmatprep.subr.bf16.mxu0 0
    %1452 = vmatpush1.bf16.xpose.msra.mxu0 %v1446
    %1453 = vmatprep.subr.bf16.mxu0 0
    %1454 = vmatpush1.bf16.xpose.msra.mxu0 %v1449
    %1455 = vmatprep.subr.bf16.mxu0 0
    %1456 = vmatpush1.bf16.xpose.msra.mxu0 0
    %1457 = vmatprep.subr.bf16.mxu0 0
    %1458 = vmatpush1.bf16.xpose.msra.mxu0 0
    %1459 = vmatprep.subr.bf16.mxu0 0
    %1460 = vmatpush1.bf16.xpose.msra.mxu0 0
    %1461 = vmatprep.subr.bf16.mxu0 0
    %1462 = vmatpush1.bf16.xpose.msra.mxu0 0
    %1463 = vmatprep.subr.bf16.mxu0 0
    %1464 = vmatpush1.bf16.xpose.msra.mxu0 0
    %1465 = vmatprep.subr.bf16.mxu0 0
    %1466 = vmatpush1.bf16.xpose.msra.mxu0 0
    %1467 = vmatprep.subr.bf16.mxu0 0
    %1468 = vmatpush1.bf16.xpose.msra.mxu0 0
    %1469 = vmatprep.subr.bf16.mxu0 0
    %1470 = vmatpush1.bf16.xpose.msra.mxu0 0
    %1471 = vmatprep.subr.bf16.mxu0 0
    %1472 = vmatpush1.bf16.xpose.msra.mxu0 0
    %1473 = vmatprep.subr.bf16.mxu0 0
    %1474 = vmatpush1.bf16.xpose.msra.mxu0 0
    %1475 = vmatprep.subr.bf16.mxu0 0
    %1476 = vmatpush1.bf16.xpose.msra.mxu0 0
    %1477 = vmatprep.subr.bf16.mxu0 0
    %1478 = vmatpush1.bf16.xpose.msra.mxu0 0
    %1479 = vmatprep.subr.bf16.mxu0 0
    %1480 = vmatpush1.bf16.xpose.msra.mxu0 0
    %1481 = vmatprep.subr.bf16.mxu0 0
    %1482 = vmatpush1.bf16.xpose.msra.mxu0 0
    %1483 = vmatprep.mubr.bf16.mxu0 0
    %1484 = vmatmul.mubr.bf16.gmra.mrb[0].mxu0 %v1440
    %v1485 = vpop.f32.mrb[0].mxu0
    %v1486 = vadd.f32 0.0, %v1485
    %v1487 = vpop.f32.mrb[0].mxu0
    %v1488 = vpop.f32.mrb[0].mxu0
    %v1489 = vadd.f32 0.0, %v1488
    %v1490 = vpop.f32.mrb[0].mxu0
    %1491 = vmatprep.mubr.bf16.mxu0 0
    %1492 = vmatmul.mubr.bf16.gmra.mrb[0].mxu0 %v1443
    %v1493 = vpop.f32.mrb[0].mxu0
    %v1494 = vadd.f32 0.0, %v1493
    %v1495 = vpop.f32.mrb[0].mxu0
    %v1496 = vpop.f32.mrb[0].mxu0
    %v1497 = vadd.f32 0.0, %v1496
    %v1498 = vpop.f32.mrb[0].mxu0
    %1499 = vdwg.mxu0
    %1500 = vrot.lane.b32.xlu0 %v1080, 96
    %v1501 = vpop.permute.xlu0 %1500
    %1502 = vrot.lane.b32.xlu0 %v1081, 96
    %v1503 = vpop.permute.xlu0 %1502
    %1504 = vrot.lane.b32.xlu0 %v1080, 32
    %v1505 = vpop.permute.xlu0 %1504
    %1506 = vrot.lane.b32.xlu0 %v1081, 32
    %v1507 = vpop.permute.xlu0 %1506
    %v1509 = vsel %vm1088, %v1501, 0
    %v1512 = vsel %vm1088, %v1503, 0
    %v1515 = vsel %vm1088, %v1505, 0
    %v1518 = vsel %vm1088, %v1507, 0
    %1520 = vmatprep.subr.bf16.mxu0 0
    %1521 = vmatpush1.bf16.xpose.msra.mxu0 %v1515
    %1522 = vmatprep.subr.bf16.mxu0 0
    %1523 = vmatpush1.bf16.xpose.msra.mxu0 %v1518
    %1524 = vmatprep.subr.bf16.mxu0 0
    %1525 = vmatpush1.bf16.xpose.msra.mxu0 0
    %1526 = vmatprep.subr.bf16.mxu0 0
    %1527 = vmatpush1.bf16.xpose.msra.mxu0 0
    %1528 = vmatprep.subr.bf16.mxu0 0
    %1529 = vmatpush1.bf16.xpose.msra.mxu0 0
    %1530 = vmatprep.subr.bf16.mxu0 0
    %1531 = vmatpush1.bf16.xpose.msra.mxu0 0
    %1532 = vmatprep.subr.bf16.mxu0 0
    %1533 = vmatpush1.bf16.xpose.msra.mxu0 0
    %1534 = vmatprep.subr.bf16.mxu0 0
    %1535 = vmatpush1.bf16.xpose.msra.mxu0 0
    %1536 = vmatprep.subr.bf16.mxu0 0
    %1537 = vmatpush1.bf16.xpose.msra.mxu0 0
    %1538 = vmatprep.subr.bf16.mxu0 0
    %1539 = vmatpush1.bf16.xpose.msra.mxu0 0
    %1540 = vmatprep.subr.bf16.mxu0 0
    %1541 = vmatpush1.bf16.xpose.msra.mxu0 0
    %1542 = vmatprep.subr.bf16.mxu0 0
    %1543 = vmatpush1.bf16.xpose.msra.mxu0 0
    %1544 = vmatprep.subr.bf16.mxu0 0
    %1545 = vmatpush1.bf16.xpose.msra.mxu0 0
    %1546 = vmatprep.subr.bf16.mxu0 0
    %1547 = vmatpush1.bf16.xpose.msra.mxu0 0
    %1548 = vmatprep.subr.bf16.mxu0 0
    %1549 = vmatpush1.bf16.xpose.msra.mxu0 0
    %1550 = vmatprep.subr.bf16.mxu0 0
    %1551 = vmatpush1.bf16.xpose.msra.mxu0 0
    %1552 = vmatprep.mubr.bf16.mxu0 0
    %1553 = vmatmul.mubr.bf16.gmra.mrb[0].mxu0 %v1509
    %v1554 = vpop.f32.mrb[0].mxu0
    %v1555 = vadd.f32 0.0, %v1554
    %v1556 = vpop.f32.mrb[0].mxu0
    %v1557 = vpop.f32.mrb[0].mxu0
    %v1558 = vadd.f32 0.0, %v1557
    %v1559 = vpop.f32.mrb[0].mxu0
    %1560 = vmatprep.mubr.bf16.mxu0 0
    %1561 = vmatmul.mubr.bf16.gmra.mrb[0].mxu0 %v1512
    %v1562 = vpop.f32.mrb[0].mxu0
    %v1563 = vadd.f32 0.0, %v1562
    %v1564 = vpop.f32.mrb[0].mxu0
    %v1565 = vpop.f32.mrb[0].mxu0
    %v1566 = vadd.f32 0.0, %v1565
    %v1567 = vpop.f32.mrb[0].mxu0
    %1568 = vdwg.mxu0
    %v1569 = vmul.f32 %v1486, 0.17677669
    %v1570 = vmul.f32 %v1489, 0.17677669
    %v1571 = vmul.f32 %v1494, 0.17677669
    %v1572 = vmul.f32 %v1497, 0.17677669
    %v1573 = vmul.f32 %v1555, 0.17677669
    %v1574 = vmul.f32 %v1558, 0.17677669
    %v1575 = vmul.f32 %v1563, 0.17677669
    %v1576 = vmul.f32 %v1566, 0.17677669
    %v1577 = vsel %vm1088, %v1569, -inf
    %1578 = vmax.xlane.f32.xlu0 %v1577
    %v1579 = vpop.xlane.xlu0 %1578
    %v1580 = vsel %vm1088, %v1570, -inf
    %1581 = vmax.xlane.f32.xlu0 %v1580
    %v1582 = vpop.xlane.xlu0 %1581
    %v1583 = vsel %vm1088, %v1571, -inf
    %1584 = vmax.xlane.f32.xlu0 %v1583
    %v1585 = vpop.xlane.xlu0 %1584
    %v1586 = vsel %vm1088, %v1572, -inf
    %1587 = vmax.xlane.f32.xlu0 %v1586
    %v1588 = vpop.xlane.xlu0 %1587
    %v1589 = vsel %vm1088, %v1573, -inf
    %1590 = vmax.xlane.f32.xlu0 %v1589
    %v1591 = vpop.xlane.xlu0 %1590
    %v1592 = vsel %vm1088, %v1574, -inf
    %1593 = vmax.xlane.f32.xlu0 %v1592
    %v1594 = vpop.xlane.xlu0 %1593
    %v1595 = vsel %vm1088, %v1575, -inf
    %1596 = vmax.xlane.f32.xlu0 %v1595
    %v1597 = vpop.xlane.xlu0 %1596
    %v1598 = vsel %vm1088, %v1576, -inf
    %1599 = vmax.xlane.f32.xlu0 %v1598
    %v1600 = vpop.xlane.xlu0 %1599
    %v1601 = vsub.f32 %v1569, %v1579
    %v1602 = vsub.f32 %v1570, %v1582
    %v1603 = vsub.f32 %v1571, %v1585
    %v1604 = vsub.f32 %v1572, %v1588
    %v1605 = vsub.f32 %v1573, %v1591
    %v1606 = vsub.f32 %v1574, %v1594
    %v1607 = vsub.f32 %v1575, %v1597
    %v1608 = vsub.f32 %v1576, %v1600
    %v1609 = vmul.f32 %v1601, 1.442695
    %v1610 = vpow.pop %v1609
    %v1611 = vmul.f32 %v1602, 1.442695
    %v1612 = vpow.pop %v1611
    %v1613 = vmul.f32 %v1603, 1.442695
    %v1614 = vpow.pop %v1613
    %v1615 = vmul.f32 %v1604, 1.442695
    %v1616 = vpow.pop %v1615
    %v1617 = vmul.f32 %v1605, 1.442695
    %v1618 = vpow.pop %v1617
    %v1619 = vmul.f32 %v1606, 1.442695
    %v1620 = vpow.pop %v1619
    %v1621 = vmul.f32 %v1607, 1.442695
    %v1622 = vpow.pop %v1621
    %v1623 = vmul.f32 %v1608, 1.442695
    %v1624 = vpow.pop %v1623
    %v1625 = vsel %vm1088, %v1610, 0.0
    %1626 = vadd.xlane.f32.xlu0 %v1625
    %v1627 = vpop.xlane.xlu0 %1626
    %v1628 = vsel %vm1088, %v1612, 0.0
    %1629 = vadd.xlane.f32.xlu0 %v1628
    %v1630 = vpop.xlane.xlu0 %1629
    %v1631 = vsel %vm1088, %v1614, 0.0
    %1632 = vadd.xlane.f32.xlu0 %v1631
    %v1633 = vpop.xlane.xlu0 %1632
    %v1634 = vsel %vm1088, %v1616, 0.0
    %1635 = vadd.xlane.f32.xlu0 %v1634
    %v1636 = vpop.xlane.xlu0 %1635
    %v1637 = vsel %vm1088, %v1618, 0.0
    %1638 = vadd.xlane.f32.xlu0 %v1637
    %v1639 = vpop.xlane.xlu0 %1638
    %v1640 = vsel %vm1088, %v1620, 0.0
    %1641 = vadd.xlane.f32.xlu0 %v1640
    %v1642 = vpop.xlane.xlu0 %1641
    %v1643 = vsel %vm1088, %v1622, 0.0
    %1644 = vadd.xlane.f32.xlu0 %v1643
    %v1645 = vpop.xlane.xlu0 %1644
    %v1646 = vsel %vm1088, %v1624, 0.0
    %1647 = vadd.xlane.f32.xlu0 %v1646
    %v1648 = vpop.xlane.xlu0 %1647
    %v1649 = vrcp.pop %v1627
    %v1650 = vmul.f32 %v1610, %v1649
    %v1651 = vrcp.pop %v1630
    %v1652 = vmul.f32 %v1612, %v1651
    %v1653 = vrcp.pop %v1633
    %v1654 = vmul.f32 %v1614, %v1653
    %v1655 = vrcp.pop %v1636
    %v1656 = vmul.f32 %v1616, %v1655
    %v1657 = vrcp.pop %v1639
    %v1658 = vmul.f32 %v1618, %v1657
    %v1659 = vrcp.pop %v1642
    %v1660 = vmul.f32 %v1620, %v1659
    %v1661 = vrcp.pop %v1645
    %v1662 = vmul.f32 %v1622, %v1661
    %v1663 = vrcp.pop %v1648
    %v1664 = vmul.f32 %v1624, %v1663
    %v1665 = vpack.c.bf16 %v1652, %v1650
    %v1666 = vpack.c.bf16 %v1656, %v1654
    %v1667 = vpack.c.bf16 %v1660, %v1658
    %v1668 = vpack.c.bf16 %v1664, %v1662
    %1671 = vrot.lane.b32.xlu0 %v1317, 96
    %v1672 = vpop.permute.xlu0 %1671
    %1673 = vrot.lane.b32.xlu0 %v1318, 96
    %v1674 = vpop.permute.xlu0 %1673
    %v1678 = vsel %vm1088, %v1665, 0
    %v1681 = vsel %vm1088, %v1666, 0
    %1683 = vmatprep.subr.bf16.mxu0 0
    %1684 = vmatpush1.bf16.msra.mxu0 %v1672
    %1685 = vmatprep.subr.bf16.mxu0 0
    %1686 = vmatpush1.bf16.msra.mxu0 %v1674
    %1687 = vmatprep.subr.bf16.mxu0 0
    %1688 = vmatpush1.bf16.msra.mxu0 0
    %1689 = vmatprep.subr.bf16.mxu0 0
    %1690 = vmatpush1.bf16.msra.mxu0 0
    %1691 = vmatprep.subr.bf16.mxu0 0
    %1692 = vmatpush1.bf16.msra.mxu0 0
    %1693 = vmatprep.subr.bf16.mxu0 0
    %1694 = vmatpush1.bf16.msra.mxu0 0
    %1695 = vmatprep.subr.bf16.mxu0 0
    %1696 = vmatpush1.bf16.msra.mxu0 0
    %1697 = vmatprep.subr.bf16.mxu0 0
    %1698 = vmatpush1.bf16.msra.mxu0 0
    %1699 = vmatprep.subr.bf16.mxu0 0
    %1700 = vmatpush1.bf16.msra.mxu0 0
    %1701 = vmatprep.subr.bf16.mxu0 0
    %1702 = vmatpush1.bf16.msra.mxu0 0
    %1703 = vmatprep.subr.bf16.mxu0 0
    %1704 = vmatpush1.bf16.msra.mxu0 0
    %1705 = vmatprep.subr.bf16.mxu0 0
    %1706 = vmatpush1.bf16.msra.mxu0 0
    %1707 = vmatprep.subr.bf16.mxu0 0
    %1708 = vmatpush1.bf16.msra.mxu0 0
    %1709 = vmatprep.subr.bf16.mxu0 0
    %1710 = vmatpush1.bf16.msra.mxu0 0
    %1711 = vmatprep.subr.bf16.mxu0 0
    %1712 = vmatpush1.bf16.msra.mxu0 0
    %1713 = vmatprep.subr.bf16.mxu0 0
    %1714 = vmatpush1.bf16.msra.mxu0 0
    %1715 = vmatprep.mubr.bf16.mxu0 0
    %1716 = vmatmul.mubr.bf16.gmra.mrb[0].mxu0 %v1678
    %v1717 = vpop.f32.mrb[0].mxu0
    %v1718 = vadd.f32 0.0, %v1717
    %v1719 = vpop.f32.mrb[0].mxu0
    %v1720 = vpop.f32.mrb[0].mxu0
    %v1721 = vadd.f32 0.0, %v1720
    %v1722 = vpop.f32.mrb[0].mxu0
    %1723 = vmatprep.mubr.bf16.mxu0 0
    %1724 = vmatmul.mubr.bf16.gmra.mrb[0].mxu0 %v1681
    %v1725 = vpop.f32.mrb[0].mxu0
    %v1726 = vadd.f32 0.0, %v1725
    %v1727 = vpop.f32.mrb[0].mxu0
    %v1728 = vpop.f32.mrb[0].mxu0
    %v1729 = vadd.f32 0.0, %v1728
    %v1730 = vpop.f32.mrb[0].mxu0
    %1731 = vdwg.mxu0
    %1734 = vrot.lane.b32.xlu0 %v1319, 96
    %v1735 = vpop.permute.xlu0 %1734
    %1736 = vrot.lane.b32.xlu0 %v1320, 96
    %v1737 = vpop.permute.xlu0 %1736
    %v1741 = vsel %vm1088, %v1667, 0
    %v1744 = vsel %vm1088, %v1668, 0
    %1746 = vmatprep.subr.bf16.mxu0 0
    %1747 = vmatpush1.bf16.msra.mxu0 %v1735
    %1748 = vmatprep.subr.bf16.mxu0 0
    %1749 = vmatpush1.bf16.msra.mxu0 %v1737
    %1750 = vmatprep.subr.bf16.mxu0 0
    %1751 = vmatpush1.bf16.msra.mxu0 0
    %1752 = vmatprep.subr.bf16.mxu0 0
    %1753 = vmatpush1.bf16.msra.mxu0 0
    %1754 = vmatprep.subr.bf16.mxu0 0
    %1755 = vmatpush1.bf16.msra.mxu0 0
    %1756 = vmatprep.subr.bf16.mxu0 0
    %1757 = vmatpush1.bf16.msra.mxu0 0
    %1758 = vmatprep.subr.bf16.mxu0 0
    %1759 = vmatpush1.bf16.msra.mxu0 0
    %1760 = vmatprep.subr.bf16.mxu0 0
    %1761 = vmatpush1.bf16.msra.mxu0 0
    %1762 = vmatprep.subr.bf16.mxu0 0
    %1763 = vmatpush1.bf16.msra.mxu0 0
    %1764 = vmatprep.subr.bf16.mxu0 0
    %1765 = vmatpush1.bf16.msra.mxu0 0
    %1766 = vmatprep.subr.bf16.mxu0 0
    %1767 = vmatpush1.bf16.msra.mxu0 0
    %1768 = vmatprep.subr.bf16.mxu0 0
    %1769 = vmatpush1.bf16.msra.mxu0 0
    %1770 = vmatprep.subr.bf16.mxu0 0
    %1771 = vmatpush1.bf16.msra.mxu0 0
    %1772 = vmatprep.subr.bf16.mxu0 0
    %1773 = vmatpush1.bf16.msra.mxu0 0
    %1774 = vmatprep.subr.bf16.mxu0 0
    %1775 = vmatpush1.bf16.msra.mxu0 0
    %1776 = vmatprep.subr.bf16.mxu0 0
    %1777 = vmatpush1.bf16.msra.mxu0 0
    %1778 = vmatprep.mubr.bf16.mxu0 0
    %1779 = vmatmul.mubr.bf16.gmra.mrb[0].mxu0 %v1741
    %v1780 = vpop.f32.mrb[0].mxu0
    %v1781 = vadd.f32 0.0, %v1780
    %v1782 = vpop.f32.mrb[0].mxu0
    %v1783 = vpop.f32.mrb[0].mxu0
    %v1784 = vadd.f32 0.0, %v1783
    %v1785 = vpop.f32.mrb[0].mxu0
    %1786 = vmatprep.mubr.bf16.mxu0 0
    %1787 = vmatmul.mubr.bf16.gmra.mrb[0].mxu0 %v1744
    %v1788 = vpop.f32.mrb[0].mxu0
    %v1789 = vadd.f32 0.0, %v1788
    %v1790 = vpop.f32.mrb[0].mxu0
    %v1791 = vpop.f32.mrb[0].mxu0
    %v1792 = vadd.f32 0.0, %v1791
    %v1793 = vpop.f32.mrb[0].mxu0
    %1794 = vdwg.mxu0
    %1803 = vrot.lane.b32.xlu0 %v1718, 32
    %v1804 = vpop.permute.xlu0 %1803
    %1805 = vrot.lane.b32.xlu0 %v1721, 32
    %v1806 = vpop.permute.xlu0 %1805
    %1807 = vrot.lane.b32.xlu0 %v1726, 32
    %v1808 = vpop.permute.xlu0 %1807
    %1809 = vrot.lane.b32.xlu0 %v1729, 32
    %v1810 = vpop.permute.xlu0 %1809
    %1811 = vrot.lane.b32.xlu0 %v1781, 32
    %v1812 = vpop.permute.xlu0 %1811
    %1813 = vrot.lane.b32.xlu0 %v1784, 32
    %v1814 = vpop.permute.xlu0 %1813
    %1815 = vrot.lane.b32.xlu0 %v1789, 32
    %v1816 = vpop.permute.xlu0 %1815
    %1817 = vrot.lane.b32.xlu0 %v1792, 32
    %v1818 = vpop.permute.xlu0 %1817
    %v1827 = vsel %vm1088, %v1362, %v1804
    %v1828 = vsel %vm1088, %v1365, %v1806
    %v1829 = vsel %vm1088, %v1370, %v1808
    %v1830 = vsel %vm1088, %v1373, %v1810
    %v1831 = vsel %vm1088, %v1417, %v1812
    %v1832 = vsel %vm1088, %v1420, %v1814
    %v1833 = vsel %vm1088, %v1425, %v1816
    %v1834 = vsel %vm1088, %v1428, %v1818
    %v1835 = vpack.c.bf16 %v1828, %v1827
    %v1836 = vpack.c.bf16 %v1830, %v1829
    %v1837 = vpack.c.bf16 %v1832, %v1831
    %v1838 = vpack.c.bf16 %v1834, %v1833
    %v1839 = vld [vmem:[%s14] sm:$0xf]
    %v1840 = vld [vmem:[%s14 + $0x4] sm:$0xf]
    %v1841 = vld [vmem:[%s14 + $0x8] sm:$0xf]
    %v1842 = vld [vmem:[%s14 + $0xc] sm:$0xf]
    %v1843 = vld [vmem:[%s14 + $0x10] sm:$0xf]
    %v1844 = vld [vmem:[%s14 + $0x14] sm:$0xf]
    %v1845 = vld [vmem:[%s14 + $0x18] sm:$0xf]
    %v1846 = vld [vmem:[%s14 + $0x1c] sm:$0xf]
    %v1847 = vld [vmem:[%s15] sm:$0x1]
    %v1849 = vlaneseq
    %v1850 = vshrl.u32 %v1849, 7
    %v1851 = vsub.s32 0, %v1850
    %v1852 = vrot.slane %v1847, %v1851
    %v1862 = vunpack.c.l.b16 %v1839
    %v1863 = vunpack.c.l.b16 %v1840
    %v1864 = vunpack.c.l.b16 %v1841
    %v1865 = vunpack.c.l.b16 %v1842
    %v1866 = vunpack.c.l.b16 %v1843
    %v1867 = vunpack.c.l.b16 %v1844
    %v1868 = vunpack.c.l.b16 %v1845
    %v1869 = vunpack.c.l.b16 %v1846
    %v1870 = vpack.c.b16 %v1863, %v1862
    %v1871 = vpack.c.b16 %v1865, %v1864
    %v1872 = vpack.c.b16 %v1867, %v1866
    %v1873 = vpack.c.b16 %v1869, %v1868
    %v1879 = vsel %vm168, %v1835, 0
    %v1882 = vsel %vm168, %v1836, 0
    %v1885 = vsel %vm168, %v1837, 0
    %v1888 = vsel %vm168, %v1838, 0
    %1890 = vmatprep.subr.bf16.mxu0 0
    %1891 = vmatpush1.bf16.msra.mxu0 %v1870
    %1892 = vmatprep.subr.bf16.mxu0 0
    %1893 = vmatpush1.bf16.msra.mxu0 %v1871
    %1894 = vmatprep.subr.bf16.mxu0 0
    %1895 = vmatpush1.bf16.msra.mxu0 %v1872
    %1896 = vmatprep.subr.bf16.mxu0 0
    %1897 = vmatpush1.bf16.msra.mxu0 %v1873
    %1898 = vmatprep.subr.bf16.mxu0 0
    %1899 = vmatpush1.bf16.msra.mxu0 0
    %1900 = vmatprep.subr.bf16.mxu0 0
    %1901 = vmatpush1.bf16.msra.mxu0 0
    %1902 = vmatprep.subr.bf16.mxu0 0
    %1903 = vmatpush1.bf16.msra.mxu0 0
    %1904 = vmatprep.subr.bf16.mxu0 0
    %1905 = vmatpush1.bf16.msra.mxu0 0
    %1906 = vmatprep.subr.bf16.mxu0 0
    %1907 = vmatpush1.bf16.msra.mxu0 0
    %1908 = vmatprep.subr.bf16.mxu0 0
    %1909 = vmatpush1.bf16.msra.mxu0 0
    %1910 = vmatprep.subr.bf16.mxu0 0
    %1911 = vmatpush1.bf16.msra.mxu0 0
    %1912 = vmatprep.subr.bf16.mxu0 0
    %1913 = vmatpush1.bf16.msra.mxu0 0
    %1914 = vmatprep.subr.bf16.mxu0 0
    %1915 = vmatpush1.bf16.msra.mxu0 0
    %1916 = vmatprep.subr.bf16.mxu0 0
    %1917 = vmatpush1.bf16.msra.mxu0 0
    %1918 = vmatprep.subr.bf16.mxu0 0
    %1919 = vmatpush1.bf16.msra.mxu0 0
    %1920 = vmatprep.subr.bf16.mxu0 0
    %1921 = vmatpush1.bf16.msra.mxu0 0
    %1922 = vmatprep.mubr.bf16.mxu0 0
    %1923 = vmatmul.mubr.bf16.gmra.mrb[0].mxu0 %v1879
    %v1924 = vpop.f32.mrb[0].mxu0
    %v1925 = vadd.f32 %v1852, %v1924
    %v1926 = vpop.f32.mrb[0].mxu0
    %v1927 = vpop.f32.mrb[0].mxu0
    %v1928 = vadd.f32 %v1852, %v1927
    %v1929 = vpop.f32.mrb[0].mxu0
    %1930 = vmatprep.mubr.bf16.mxu0 0
    %1931 = vmatmul.mubr.bf16.gmra.mrb[0].mxu0 %v1882
    %v1932 = vpop.f32.mrb[0].mxu0
    %v1933 = vadd.f32 %v1852, %v1932
    %v1934 = vpop.f32.mrb[0].mxu0
    %v1935 = vpop.f32.mrb[0].mxu0
    %v1936 = vadd.f32 %v1852, %v1935
    %v1937 = vpop.f32.mrb[0].mxu0
    %1938 = vmatprep.mubr.bf16.mxu0 0
    %1939 = vmatmul.mubr.bf16.gmra.mrb[0].mxu0 %v1885
    %v1940 = vpop.f32.mrb[0].mxu0
    %v1941 = vadd.f32 %v1852, %v1940
    %v1942 = vpop.f32.mrb[0].mxu0
    %v1943 = vpop.f32.mrb[0].mxu0
    %v1944 = vadd.f32 %v1852, %v1943
    %v1945 = vpop.f32.mrb[0].mxu0
    %1946 = vmatprep.mubr.bf16.mxu0 0
    %1947 = vmatmul.mubr.bf16.gmra.mrb[0].mxu0 %v1888
    %v1948 = vpop.f32.mrb[0].mxu0
    %v1949 = vadd.f32 %v1852, %v1948
    %v1950 = vpop.f32.mrb[0].mxu0
    %v1951 = vpop.f32.mrb[0].mxu0
    %v1952 = vadd.f32 %v1852, %v1951
    %v1953 = vpop.f32.mrb[0].mxu0
    %1954 = vdwg.mxu0
    %v1955 = vlaneseq
    %v1956 = vshrl.u32 %v1955, 7
    %v1957 = vsub.s32 0, %v1956
    %v1958 = vrot.slane %v747, %v1957
    %v1959 = vlaneseq
    %v1960 = vshrl.u32 %v1959, 7
    %v1961 = vsub.s32 0, %v1960
    %v1962 = vrot.slane %v754, %v1961
    %v1965 = vmul.f32 %v1958, %v1925
    %v1966 = vmul.f32 %v1958, %v1928
    %v1967 = vmul.f32 %v1958, %v1933
    %v1968 = vmul.f32 %v1958, %v1936
    %v1969 = vmul.f32 %v1962, %v1941
    %v1970 = vmul.f32 %v1962, %v1944
    %v1971 = vmul.f32 %v1962, %v1949
    %v1972 = vmul.f32 %v1962, %v1952
    %v1973 = vadd.f32 %v318, %v1965
    %v1974 = vadd.f32 %v319, %v1966
    %v1975 = vadd.f32 %v320, %v1967
    %v1976 = vadd.f32 %v321, %v1968
    %v1977 = vadd.f32 %v322, %v1969
    %v1978 = vadd.f32 %v323, %v1970
    %v1979 = vadd.f32 %v324, %v1971
    %v1980 = vadd.f32 %v325, %v1972
    %v1981 = vsel %vm168, %v1973, 0.0
    %1982 = vadd.xlane.f32.xlu0 %v1981
    %v1983 = vpop.xlane.xlu0 %1982
    %v1984 = vsel %vm168, %v1974, 0.0
    %1985 = vadd.xlane.f32.xlu0 %v1984
    %v1986 = vpop.xlane.xlu0 %1985
    %v1987 = vsel %vm168, %v1975, 0.0
    %1988 = vadd.xlane.f32.xlu0 %v1987
    %v1989 = vpop.xlane.xlu0 %1988
    %v1990 = vsel %vm168, %v1976, 0.0
    %1991 = vadd.xlane.f32.xlu0 %v1990
    %v1992 = vpop.xlane.xlu0 %1991
    %v1993 = vsel %vm168, %v1977, 0.0
    %1994 = vadd.xlane.f32.xlu0 %v1993
    %v1995 = vpop.xlane.xlu0 %1994
    %v1996 = vsel %vm168, %v1978, 0.0
    %1997 = vadd.xlane.f32.xlu0 %v1996
    %v1998 = vpop.xlane.xlu0 %1997
    %v1999 = vsel %vm168, %v1979, 0.0
    %2000 = vadd.xlane.f32.xlu0 %v1999
    %v2001 = vpop.xlane.xlu0 %2000
    %v2002 = vsel %vm168, %v1980, 0.0
    %2003 = vadd.xlane.f32.xlu0 %v2002
    %v2004 = vpop.xlane.xlu0 %2003
    %v2005 = vmul.f32 %v1983, %v804
    %v2006 = vmul.f32 %v1986, %v804
    %v2007 = vmul.f32 %v1989, %v804
    %v2008 = vmul.f32 %v1992, %v804
    %v2009 = vmul.f32 %v1995, %v804
    %v2010 = vmul.f32 %v1998, %v804
    %v2011 = vmul.f32 %v2001, %v804
    %v2012 = vmul.f32 %v2004, %v804
    %v2013 = vsub.f32 %v1973, %v2005
    %v2014 = vsub.f32 %v1974, %v2006
    %v2015 = vsub.f32 %v1975, %v2007
    %v2016 = vsub.f32 %v1976, %v2008
    %v2017 = vsub.f32 %v1977, %v2009
    %v2018 = vsub.f32 %v1978, %v2010
    %v2019 = vsub.f32 %v1979, %v2011
    %v2020 = vsub.f32 %v1980, %v2012
    %v2021 = vmul.f32 %v2013, %v2013
    %v2022 = vmul.f32 %v2014, %v2014
    %v2023 = vmul.f32 %v2015, %v2015
    %v2024 = vmul.f32 %v2016, %v2016
    %v2025 = vmul.f32 %v2017, %v2017
    %v2026 = vmul.f32 %v2018, %v2018
    %v2027 = vmul.f32 %v2019, %v2019
    %v2028 = vmul.f32 %v2020, %v2020
    %v2029 = vsel %vm168, %v2021, 0.0
    %2030 = vadd.xlane.f32.xlu0 %v2029
    %v2031 = vpop.xlane.xlu0 %2030
    %v2032 = vsel %vm168, %v2022, 0.0
    %2033 = vadd.xlane.f32.xlu0 %v2032
    %v2034 = vpop.xlane.xlu0 %2033
    %v2035 = vsel %vm168, %v2023, 0.0
    %2036 = vadd.xlane.f32.xlu0 %v2035
    %v2037 = vpop.xlane.xlu0 %2036
    %v2038 = vsel %vm168, %v2024, 0.0
    %2039 = vadd.xlane.f32.xlu0 %v2038
    %v2040 = vpop.xlane.xlu0 %2039
    %v2041 = vsel %vm168, %v2025, 0.0
    %2042 = vadd.xlane.f32.xlu0 %v2041
    %v2043 = vpop.xlane.xlu0 %2042
    %v2044 = vsel %vm168, %v2026, 0.0
    %2045 = vadd.xlane.f32.xlu0 %v2044
    %v2046 = vpop.xlane.xlu0 %2045
    %v2047 = vsel %vm168, %v2027, 0.0
    %2048 = vadd.xlane.f32.xlu0 %v2047
    %v2049 = vpop.xlane.xlu0 %2048
    %v2050 = vsel %vm168, %v2028, 0.0
    %2051 = vadd.xlane.f32.xlu0 %v2050
    %v2052 = vpop.xlane.xlu0 %2051
    %v2053 = vmul.f32 %v2031, %v804
    %v2054 = vmul.f32 %v2034, %v804
    %v2055 = vmul.f32 %v2037, %v804
    %v2056 = vmul.f32 %v2040, %v804
    %v2057 = vmul.f32 %v2043, %v804
    %v2058 = vmul.f32 %v2046, %v804
    %v2059 = vmul.f32 %v2049, %v804
    %v2060 = vmul.f32 %v2052, %v804
    %v2061 = vadd.f32 %v2053, 1e-06
    %v2062 = vadd.f32 %v2054, 1e-06
    %v2063 = vadd.f32 %v2055, 1e-06
    %v2064 = vadd.f32 %v2056, 1e-06
    %v2065 = vadd.f32 %v2057, 1e-06
    %v2066 = vadd.f32 %v2058, 1e-06
    %v2067 = vadd.f32 %v2059, 1e-06
    %v2068 = vadd.f32 %v2060, 1e-06
    %v2069 = vrsqrt.pop %v2061
    %v2070 = vrsqrt.pop %v2062
    %v2071 = vrsqrt.pop %v2063
    %v2072 = vrsqrt.pop %v2064
    %v2073 = vrsqrt.pop %v2065
    %v2074 = vrsqrt.pop %v2066
    %v2075 = vrsqrt.pop %v2067
    %v2076 = vrsqrt.pop %v2068
    %v2077 = vmul.f32 %v2013, %v2069
    %v2078 = vmul.f32 %v2014, %v2070
    %v2079 = vmul.f32 %v2015, %v2071
    %v2080 = vmul.f32 %v2016, %v2072
    %v2081 = vmul.f32 %v2017, %v2073
    %v2082 = vmul.f32 %v2018, %v2074
    %v2083 = vmul.f32 %v2019, %v2075
    %v2084 = vmul.f32 %v2020, %v2076
    %v2085 = vadd.f32 %v770, 1.0
    %v2086 = vadd.f32 %v777, 1.0
    %v2089 = vlaneseq
    %v2090 = vshrl.u32 %v2089, 7
    %v2091 = vsub.s32 0, %v2090
    %v2092 = vrot.slane %v2085, %v2091
    %v2093 = vlaneseq
    %v2094 = vshrl.u32 %v2093, 7
    %v2095 = vsub.s32 0, %v2094
    %v2096 = vrot.slane %v2086, %v2095
    %v2099 = vmul.f32 %v2077, %v2092
    %v2100 = vmul.f32 %v2078, %v2092
    %v2101 = vmul.f32 %v2079, %v2092
    %v2102 = vmul.f32 %v2080, %v2092
    %v2103 = vmul.f32 %v2081, %v2096
    %v2104 = vmul.f32 %v2082, %v2096
    %v2105 = vmul.f32 %v2083, %v2096
    %v2106 = vmul.f32 %v2084, %v2096
    %2107 = vrot.lane.b32.xlu0 %v1958, 64
    %v2108 = vpop.permute.xlu0 %2107
    %2109 = vrot.lane.b32.xlu0 %v1962, 64
    %v2110 = vpop.permute.xlu0 %2109
    %v2113 = vadd.f32 %v2099, %v2108
    %v2114 = vadd.f32 %v2100, %v2108
    %v2115 = vadd.f32 %v2101, %v2108
    %v2116 = vadd.f32 %v2102, %v2108
    %v2117 = vadd.f32 %v2103, %v2110
    %v2118 = vadd.f32 %v2104, %v2110
    %v2119 = vadd.f32 %v2105, %v2110
    %v2120 = vadd.f32 %v2106, %v2110
    %v2121 = vpack.c.bf16 %v2114, %v2113
    %v2122 = vpack.c.bf16 %v2116, %v2115
    %v2123 = vpack.c.bf16 %v2118, %v2117
    %v2124 = vpack.c.bf16 %v2120, %v2119
    %v2125 = vld [vmem:[%s16] sm:$0xff]
    %v2126 = vld [vmem:[%s16 + $0x8] sm:$0xff]
    %v2127 = vld [vmem:[%s16 + $0x10] sm:$0xff]
    %v2128 = vld [vmem:[%s16 + $0x18] sm:$0xff]
    %v2129 = vld [vmem:[%s16 + $0x20] sm:$0xff]
    %v2130 = vld [vmem:[%s16 + $0x28] sm:$0xff]
    %v2131 = vld [vmem:[%s16 + $0x30] sm:$0xff]
    %v2132 = vld [vmem:[%s16 + $0x38] sm:$0xff]
    %v2133 = vld [vmem:[%s17] sm:$0x3]
    %v2135 = vlaneseq
    %v2136 = vshrl.u32 %v2135, 7
    %v2137 = vsub.s32 0, %v2136
    %v2138 = vrot.slane %v2133, %v2137
    %v2139 = vlaneseq
    %v2140 = vshrl.u32 %v2139, 7
    %v2141 = vsub.s32 1, %v2140
    %v2142 = vrot.slane %v2133, %v2141
    %v2153 = vunpack.c.l.b16 %v2125
    %v2154 = vunpack.c.h.b16 %v2125
    %v2155 = vunpack.c.l.b16 %v2126
    %v2156 = vunpack.c.h.b16 %v2126
    %v2157 = vunpack.c.l.b16 %v2127
    %v2158 = vunpack.c.h.b16 %v2127
    %v2159 = vunpack.c.l.b16 %v2128
    %v2160 = vunpack.c.h.b16 %v2128
    %v2161 = vunpack.c.l.b16 %v2129
    %v2162 = vunpack.c.h.b16 %v2129
    %v2163 = vunpack.c.l.b16 %v2130
    %v2164 = vunpack.c.h.b16 %v2130
    %v2165 = vunpack.c.l.b16 %v2131
    %v2166 = vunpack.c.h.b16 %v2131
    %v2167 = vunpack.c.l.b16 %v2132
    %v2168 = vunpack.c.h.b16 %v2132
    %v2169 = vpack.c.b16 %v2155, %v2153
    %v2170 = vpack.c.b16 %v2156, %v2154
    %v2171 = vpack.c.b16 %v2159, %v2157
    %v2172 = vpack.c.b16 %v2160, %v2158
    %v2173 = vpack.c.b16 %v2163, %v2161
    %v2174 = vpack.c.b16 %v2164, %v2162
    %v2175 = vpack.c.b16 %v2167, %v2165
    %v2176 = vpack.c.b16 %v2168, %v2166
    %v2186 = vsel %vm168, %v2121, 0
    %v2189 = vsel %vm168, %v2122, 0
    %v2192 = vsel %vm168, %v2123, 0
    %v2195 = vsel %vm168, %v2124, 0
    %2197 = vmatprep.subr.bf16.mxu0 %v2170
    %2198 = vmatpush1.bf16.msra.mxu0 %v2169
    %2199 = vmatprep.subr.bf16.mxu0 %v2172
    %2200 = vmatpush1.bf16.msra.mxu0 %v2171
    %2201 = vmatprep.subr.bf16.mxu0 %v2174
    %2202 = vmatpush1.bf16.msra.mxu0 %v2173
    %2203 = vmatprep.subr.bf16.mxu0 %v2176
    %2204 = vmatpush1.bf16.msra.mxu0 %v2175
    %2205 = vmatprep.subr.bf16.mxu0 0
    %2206 = vmatpush1.bf16.msra.mxu0 0
    %2207 = vmatprep.subr.bf16.mxu0 0
    %2208 = vmatpush1.bf16.msra.mxu0 0
    %2209 = vmatprep.subr.bf16.mxu0 0
    %2210 = vmatpush1.bf16.msra.mxu0 0
    %2211 = vmatprep.subr.bf16.mxu0 0
    %2212 = vmatpush1.bf16.msra.mxu0 0
    %2213 = vmatprep.subr.bf16.mxu0 0
    %2214 = vmatpush1.bf16.msra.mxu0 0
    %2215 = vmatprep.subr.bf16.mxu0 0
    %2216 = vmatpush1.bf16.msra.mxu0 0
    %2217 = vmatprep.subr.bf16.mxu0 0
    %2218 = vmatpush1.bf16.msra.mxu0 0
    %2219 = vmatprep.subr.bf16.mxu0 0
    %2220 = vmatpush1.bf16.msra.mxu0 0
    %2221 = vmatprep.subr.bf16.mxu0 0
    %2222 = vmatpush1.bf16.msra.mxu0 0
    %2223 = vmatprep.subr.bf16.mxu0 0
    %2224 = vmatpush1.bf16.msra.mxu0 0
    %2225 = vmatprep.subr.bf16.mxu0 0
    %2226 = vmatpush1.bf16.msra.mxu0 0
    %2227 = vmatprep.subr.bf16.mxu0 0
    %2228 = vmatpush1.bf16.msra.mxu0 0
    %2229 = vmatprep.mubr.bf16.mxu0 0
    %2230 = vmatmul.mubr.bf16.gmra.mrb[0].mxu0 %v2186
    %v2231 = vpop.f32.mrb[0].mxu0
    %v2232 = vadd.f32 %v2138, %v2231
    %v2233 = vpop.f32.mrb[0].mxu0
    %v2234 = vadd.f32 %v2142, %v2233
    %v2235 = vpop.f32.mrb[0].mxu0
    %v2236 = vadd.f32 %v2138, %v2235
    %v2237 = vpop.f32.mrb[0].mxu0
    %v2238 = vadd.f32 %v2142, %v2237
    %2239 = vmatprep.mubr.bf16.mxu0 0
    %2240 = vmatmul.mubr.bf16.gmra.mrb[0].mxu0 %v2189
    %v2241 = vpop.f32.mrb[0].mxu0
    %v2242 = vadd.f32 %v2138, %v2241
    %v2243 = vpop.f32.mrb[0].mxu0
    %v2244 = vadd.f32 %v2142, %v2243
    %v2245 = vpop.f32.mrb[0].mxu0
    %v2246 = vadd.f32 %v2138, %v2245
    %v2247 = vpop.f32.mrb[0].mxu0
    %v2248 = vadd.f32 %v2142, %v2247
    %2249 = vmatprep.mubr.bf16.mxu0 0
    %2250 = vmatmul.mubr.bf16.gmra.mrb[0].mxu0 %v2192
    %v2251 = vpop.f32.mrb[0].mxu0
    %v2252 = vadd.f32 %v2138, %v2251
    %v2253 = vpop.f32.mrb[0].mxu0
    %v2254 = vadd.f32 %v2142, %v2253
    %v2255 = vpop.f32.mrb[0].mxu0
    %v2256 = vadd.f32 %v2138, %v2255
    %v2257 = vpop.f32.mrb[0].mxu0
    %v2258 = vadd.f32 %v2142, %v2257
    %2259 = vmatprep.mubr.bf16.mxu0 0
    %2260 = vmatmul.mubr.bf16.gmra.mrb[0].mxu0 %v2195
    %v2261 = vpop.f32.mrb[0].mxu0
    %v2262 = vadd.f32 %v2138, %v2261
    %v2263 = vpop.f32.mrb[0].mxu0
    %v2264 = vadd.f32 %v2142, %v2263
    %v2265 = vpop.f32.mrb[0].mxu0
    %v2266 = vadd.f32 %v2138, %v2265
    %v2267 = vpop.f32.mrb[0].mxu0
    %v2268 = vadd.f32 %v2142, %v2267
    %2269 = vdwg.mxu0
    %v2270 = vmul.f32 %v2232, 0.5
    %v2271 = vmul.f32 %v2234, 0.5
    %v2272 = vmul.f32 %v2236, 0.5
    %v2273 = vmul.f32 %v2238, 0.5
    %v2274 = vmul.f32 %v2242, 0.5
    %v2275 = vmul.f32 %v2244, 0.5
    %v2276 = vmul.f32 %v2246, 0.5
    %v2277 = vmul.f32 %v2248, 0.5
    %v2278 = vmul.f32 %v2252, 0.5
    %v2279 = vmul.f32 %v2254, 0.5
    %v2280 = vmul.f32 %v2256, 0.5
    %v2281 = vmul.f32 %v2258, 0.5
    %v2282 = vmul.f32 %v2262, 0.5
    %v2283 = vmul.f32 %v2264, 0.5
    %v2284 = vmul.f32 %v2266, 0.5
    %v2285 = vmul.f32 %v2268, 0.5
    %v2286 = vmul.f32 %v2232, 0.044715
    %v2287 = vmul.f32 %v2234, 0.044715
    %v2288 = vmul.f32 %v2236, 0.044715
    %v2289 = vmul.f32 %v2238, 0.044715
    %v2290 = vmul.f32 %v2242, 0.044715
    %v2291 = vmul.f32 %v2244, 0.044715
    %v2292 = vmul.f32 %v2246, 0.044715
    %v2293 = vmul.f32 %v2248, 0.044715
    %v2294 = vmul.f32 %v2252, 0.044715
    %v2295 = vmul.f32 %v2254, 0.044715
    %v2296 = vmul.f32 %v2256, 0.044715
    %v2297 = vmul.f32 %v2258, 0.044715
    %v2298 = vmul.f32 %v2262, 0.044715
    %v2299 = vmul.f32 %v2264, 0.044715
    %v2300 = vmul.f32 %v2266, 0.044715
    %v2301 = vmul.f32 %v2268, 0.044715
    %v2302 = vmul.f32 %v2286, %v2232
    %v2303 = vmul.f32 %v2287, %v2234
    %v2304 = vmul.f32 %v2288, %v2236
    %v2305 = vmul.f32 %v2289, %v2238
    %v2306 = vmul.f32 %v2290, %v2242
    %v2307 = vmul.f32 %v2291, %v2244
    %v2308 = vmul.f32 %v2292, %v2246
    %v2309 = vmul.f32 %v2293, %v2248
    %v2310 = vmul.f32 %v2294, %v2252
    %v2311 = vmul.f32 %v2295, %v2254
    %v2312 = vmul.f32 %v2296, %v2256
    %v2313 = vmul.f32 %v2297, %v2258
    %v2314 = vmul.f32 %v2298, %v2262
    %v2315 = vmul.f32 %v2299, %v2264
    %v2316 = vmul.f32 %v2300, %v2266
    %v2317 = vmul.f32 %v2301, %v2268
    %v2318 = vmul.f32 %v2302, %v2232
    %v2319 = vmul.f32 %v2303, %v2234
    %v2320 = vmul.f32 %v2304, %v2236
    %v2321 = vmul.f32 %v2305, %v2238
    %v2322 = vmul.f32 %v2306, %v2242
    %v2323 = vmul.f32 %v2307, %v2244
    %v2324 = vmul.f32 %v2308, %v2246
    %v2325 = vmul.f32 %v2309, %v2248
    %v2326 = vmul.f32 %v2310, %v2252
    %v2327 = vmul.f32 %v2311, %v2254
    %v2328 = vmul.f32 %v2312, %v2256
    %v2329 = vmul.f32 %v2313, %v2258
    %v2330 = vmul.f32 %v2314, %v2262
    %v2331 = vmul.f32 %v2315, %v2264
    %v2332 = vmul.f32 %v2316, %v2266
    %v2333 = vmul.f32 %v2317, %v2268
    %v2334 = vadd.f32 %v2232, %v2318
    %v2335 = vadd.f32 %v2234, %v2319
    %v2336 = vadd.f32 %v2236, %v2320
    %v2337 = vadd.f32 %v2238, %v2321
    %v2338 = vadd.f32 %v2242, %v2322
    %v2339 = vadd.f32 %v2244, %v2323
    %v2340 = vadd.f32 %v2246, %v2324
    %v2341 = vadd.f32 %v2248, %v2325
    %v2342 = vadd.f32 %v2252, %v2326
    %v2343 = vadd.f32 %v2254, %v2327
    %v2344 = vadd.f32 %v2256, %v2328
    %v2345 = vadd.f32 %v2258, %v2329
    %v2346 = vadd.f32 %v2262, %v2330
    %v2347 = vadd.f32 %v2264, %v2331
    %v2348 = vadd.f32 %v2266, %v2332
    %v2349 = vadd.f32 %v2268, %v2333
    %v2350 = vmul.f32 %v2334, 0.7978846
    %v2351 = vmul.f32 %v2335, 0.7978846
    %v2352 = vmul.f32 %v2336, 0.7978846
    %v2353 = vmul.f32 %v2337, 0.7978846
    %v2354 = vmul.f32 %v2338, 0.7978846
    %v2355 = vmul.f32 %v2339, 0.7978846
    %v2356 = vmul.f32 %v2340, 0.7978846
    %v2357 = vmul.f32 %v2341, 0.7978846
    %v2358 = vmul.f32 %v2342, 0.7978846
    %v2359 = vmul.f32 %v2343, 0.7978846
    %v2360 = vmul.f32 %v2344, 0.7978846
    %v2361 = vmul.f32 %v2345, 0.7978846
    %v2362 = vmul.f32 %v2346, 0.7978846
    %v2363 = vmul.f32 %v2347, 0.7978846
    %v2364 = vmul.f32 %v2348, 0.7978846
    %v2365 = vmul.f32 %v2349, 0.7978846
    %v2366 = vtanh.pop %v2350
    %v2367 = vtanh.pop %v2351
    %v2368 = vtanh.pop %v2352
    %v2369 = vtanh.pop %v2353
    %v2370 = vtanh.pop %v2354
    %v2371 = vtanh.pop %v2355
    %v2372 = vtanh.pop %v2356
    %v2373 = vtanh.pop %v2357
    %v2374 = vtanh.pop %v2358
    %v2375 = vtanh.pop %v2359
    %v2376 = vtanh.pop %v2360
    %v2377 = vtanh.pop %v2361
    %v2378 = vtanh.pop %v2362
    %v2379 = vtanh.pop %v2363
    %v2380 = vtanh.pop %v2364
    %v2381 = vtanh.pop %v2365
    %v2382 = vadd.f32 %v2366, 1.0
    %v2383 = vadd.f32 %v2367, 1.0
    %v2384 = vadd.f32 %v2368, 1.0
    %v2385 = vadd.f32 %v2369, 1.0
    %v2386 = vadd.f32 %v2370, 1.0
    %v2387 = vadd.f32 %v2371, 1.0
    %v2388 = vadd.f32 %v2372, 1.0
    %v2389 = vadd.f32 %v2373, 1.0
    %v2390 = vadd.f32 %v2374, 1.0
    %v2391 = vadd.f32 %v2375, 1.0
    %v2392 = vadd.f32 %v2376, 1.0
    %v2393 = vadd.f32 %v2377, 1.0
    %v2394 = vadd.f32 %v2378, 1.0
    %v2395 = vadd.f32 %v2379, 1.0
    %v2396 = vadd.f32 %v2380, 1.0
    %v2397 = vadd.f32 %v2381, 1.0
    %v2398 = vmul.f32 %v2270, %v2382
    %v2399 = vmul.f32 %v2271, %v2383
    %v2400 = vmul.f32 %v2272, %v2384
    %v2401 = vmul.f32 %v2273, %v2385
    %v2402 = vmul.f32 %v2274, %v2386
    %v2403 = vmul.f32 %v2275, %v2387
    %v2404 = vmul.f32 %v2276, %v2388
    %v2405 = vmul.f32 %v2277, %v2389
    %v2406 = vmul.f32 %v2278, %v2390
    %v2407 = vmul.f32 %v2279, %v2391
    %v2408 = vmul.f32 %v2280, %v2392
    %v2409 = vmul.f32 %v2281, %v2393
    %v2410 = vmul.f32 %v2282, %v2394
    %v2411 = vmul.f32 %v2283, %v2395
    %v2412 = vmul.f32 %v2284, %v2396
    %v2413 = vmul.f32 %v2285, %v2397
    %v2414 = vpack.c.bf16 %v2400, %v2398
    %v2415 = vpack.c.bf16 %v2401, %v2399
    %v2416 = vpack.c.bf16 %v2404, %v2402
    %v2417 = vpack.c.bf16 %v2405, %v2403
    %v2418 = vpack.c.bf16 %v2408, %v2406
    %v2419 = vpack.c.bf16 %v2409, %v2407
    %v2420 = vpack.c.bf16 %v2412, %v2410
    %v2421 = vpack.c.bf16 %v2413, %v2411
    %v2422 = vld [vmem:[%s18] sm:$0xf]
    %v2423 = vld [vmem:[%s18 + $0x4] sm:$0xf]
    %v2424 = vld [vmem:[%s18 + $0x8] sm:$0xf]
    %v2425 = vld [vmem:[%s18 + $0xc] sm:$0xf]
    %v2426 = vld [vmem:[%s18 + $0x10] sm:$0xf]
    %v2427 = vld [vmem:[%s18 + $0x14] sm:$0xf]
    %v2428 = vld [vmem:[%s18 + $0x18] sm:$0xf]
    %v2429 = vld [vmem:[%s18 + $0x1c] sm:$0xf]
    %v2430 = vld [vmem:[%s18 + $0x20] sm:$0xf]
    %v2431 = vld [vmem:[%s18 + $0x24] sm:$0xf]
    %v2432 = vld [vmem:[%s18 + $0x28] sm:$0xf]
    %v2433 = vld [vmem:[%s18 + $0x2c] sm:$0xf]
    %v2434 = vld [vmem:[%s18 + $0x30] sm:$0xf]
    %v2435 = vld [vmem:[%s18 + $0x34] sm:$0xf]
    %v2436 = vld [vmem:[%s18 + $0x38] sm:$0xf]
    %v2437 = vld [vmem:[%s18 + $0x3c] sm:$0xf]
    %v2438 = vld [vmem:[%s18 + $0x40] sm:$0xf]
    %v2439 = vld [vmem:[%s18 + $0x44] sm:$0xf]
    %v2440 = vld [vmem:[%s18 + $0x48] sm:$0xf]
    %v2441 = vld [vmem:[%s18 + $0x4c] sm:$0xf]
    %v2442 = vld [vmem:[%s18 + $0x50] sm:$0xf]
    %v2443 = vld [vmem:[%s18 + $0x54] sm:$0xf]
    %v2444 = vld [vmem:[%s18 + $0x58] sm:$0xf]
    %v2445 = vld [vmem:[%s18 + $0x5c] sm:$0xf]
    %v2446 = vld [vmem:[%s18 + $0x60] sm:$0xf]
    %v2447 = vld [vmem:[%s18 + $0x64] sm:$0xf]
    %v2448 = vld [vmem:[%s18 + $0x68] sm:$0xf]
    %v2449 = vld [vmem:[%s18 + $0x6c] sm:$0xf]
    %v2450 = vld [vmem:[%s18 + $0x70] sm:$0xf]
    %v2451 = vld [vmem:[%s18 + $0x74] sm:$0xf]
    %v2452 = vld [vmem:[%s18 + $0x78] sm:$0xf]
    %v2453 = vld [vmem:[%s18 + $0x7c] sm:$0xf]
    %v2454 = vld [vmem:[%s19] sm:$0x1]
    %v2456 = vlaneseq
    %v2457 = vshrl.u32 %v2456, 7
    %v2458 = vsub.s32 0, %v2457
    %v2459 = vrot.slane %v2454, %v2458
    %v2493 = vunpack.c.l.b16 %v2422
    %v2494 = vunpack.c.l.b16 %v2423
    %v2495 = vunpack.c.l.b16 %v2424
    %v2496 = vunpack.c.l.b16 %v2425
    %v2497 = vunpack.c.l.b16 %v2426
    %v2498 = vunpack.c.l.b16 %v2427
    %v2499 = vunpack.c.l.b16 %v2428
    %v2500 = vunpack.c.l.b16 %v2429
    %v2501 = vunpack.c.l.b16 %v2430
    %v2502 = vunpack.c.l.b16 %v2431
    %v2503 = vunpack.c.l.b16 %v2432
    %v2504 = vunpack.c.l.b16 %v2433
    %v2505 = vunpack.c.l.b16 %v2434
    %v2506 = vunpack.c.l.b16 %v2435
    %v2507 = vunpack.c.l.b16 %v2436
    %v2508 = vunpack.c.l.b16 %v2437
    %v2509 = vunpack.c.l.b16 %v2438
    %v2510 = vunpack.c.l.b16 %v2439
    %v2511 = vunpack.c.l.b16 %v2440
    %v2512 = vunpack.c.l.b16 %v2441
    %v2513 = vunpack.c.l.b16 %v2442
    %v2514 = vunpack.c.l.b16 %v2443
    %v2515 = vunpack.c.l.b16 %v2444
    %v2516 = vunpack.c.l.b16 %v2445
    %v2517 = vunpack.c.l.b16 %v2446
    %v2518 = vunpack.c.l.b16 %v2447
    %v2519 = vunpack.c.l.b16 %v2448
    %v2520 = vunpack.c.l.b16 %v2449
    %v2521 = vunpack.c.l.b16 %v2450
    %v2522 = vunpack.c.l.b16 %v2451
    %v2523 = vunpack.c.l.b16 %v2452
    %v2524 = vunpack.c.l.b16 %v2453
    %v2525 = vpack.c.b16 %v2494, %v2493
    %v2526 = vpack.c.b16 %v2496, %v2495
    %v2527 = vpack.c.b16 %v2498, %v2497
    %v2528 = vpack.c.b16 %v2500, %v2499
    %v2529 = vpack.c.b16 %v2502, %v2501
    %v2530 = vpack.c.b16 %v2504, %v2503
    %v2531 = vpack.c.b16 %v2506, %v2505
    %v2532 = vpack.c.b16 %v2508, %v2507
    %v2533 = vpack.c.b16 %v2510, %v2509
    %v2534 = vpack.c.b16 %v2512, %v2511
    %v2535 = vpack.c.b16 %v2514, %v2513
    %v2536 = vpack.c.b16 %v2516, %v2515
    %v2537 = vpack.c.b16 %v2518, %v2517
    %v2538 = vpack.c.b16 %v2520, %v2519
    %v2539 = vpack.c.b16 %v2522, %v2521
    %v2540 = vpack.c.b16 %v2524, %v2523
    %2557 = vmatprep.subr.bf16.mxu0 0
    %2558 = vmatpush1.bf16.msra.mxu0 %v2525
    %2559 = vmatprep.subr.bf16.mxu0 0
    %2560 = vmatpush1.bf16.msra.mxu0 %v2526
    %2561 = vmatprep.subr.bf16.mxu0 0
    %2562 = vmatpush1.bf16.msra.mxu0 %v2527
    %2563 = vmatprep.subr.bf16.mxu0 0
    %2564 = vmatpush1.bf16.msra.mxu0 %v2528
    %2565 = vmatprep.subr.bf16.mxu0 0
    %2566 = vmatpush1.bf16.msra.mxu0 %v2529
    %2567 = vmatprep.subr.bf16.mxu0 0
    %2568 = vmatpush1.bf16.msra.mxu0 %v2530
    %2569 = vmatprep.subr.bf16.mxu0 0
    %2570 = vmatpush1.bf16.msra.mxu0 %v2531
    %2571 = vmatprep.subr.bf16.mxu0 0
    %2572 = vmatpush1.bf16.msra.mxu0 %v2532
    %2573 = vmatprep.subr.bf16.mxu0 0
    %2574 = vmatpush1.bf16.msra.mxu0 %v2533
    %2575 = vmatprep.subr.bf16.mxu0 0
    %2576 = vmatpush1.bf16.msra.mxu0 %v2534
    %2577 = vmatprep.subr.bf16.mxu0 0
    %2578 = vmatpush1.bf16.msra.mxu0 %v2535
    %2579 = vmatprep.subr.bf16.mxu0 0
    %2580 = vmatpush1.bf16.msra.mxu0 %v2536
    %2581 = vmatprep.subr.bf16.mxu0 0
    %2582 = vmatpush1.bf16.msra.mxu0 %v2537
    %2583 = vmatprep.subr.bf16.mxu0 0
    %2584 = vmatpush1.bf16.msra.mxu0 %v2538
    %2585 = vmatprep.subr.bf16.mxu0 0
    %2586 = vmatpush1.bf16.msra.mxu0 %v2539
    %2587 = vmatprep.subr.bf16.mxu0 0
    %2588 = vmatpush1.bf16.msra.mxu0 %v2540
    %2589 = vmatprep.mubr.bf16.mxu0 %v2415
    %2590 = vmatmul.mubr.bf16.gmra.mrb[0].mxu0 %v2414
    %v2591 = vpop.f32.mrb[0].mxu0
    %v2592 = vadd.f32 %v2459, %v2591
    %v2593 = vpop.f32.mrb[0].mxu0
    %v2594 = vpop.f32.mrb[0].mxu0
    %v2595 = vadd.f32 %v2459, %v2594
    %v2596 = vpop.f32.mrb[0].mxu0
    %2597 = vmatprep.mubr.bf16.mxu0 %v2417
    %2598 = vmatmul.mubr.bf16.gmra.mrb[0].mxu0 %v2416
    %v2599 = vpop.f32.mrb[0].mxu0
    %v2600 = vadd.f32 %v2459, %v2599
    %v2601 = vpop.f32.mrb[0].mxu0
    %v2602 = vpop.f32.mrb[0].mxu0
    %v2603 = vadd.f32 %v2459, %v2602
    %v2604 = vpop.f32.mrb[0].mxu0
    %2605 = vmatprep.mubr.bf16.mxu0 %v2419
    %2606 = vmatmul.mubr.bf16.gmra.mrb[0].mxu0 %v2418
    %v2607 = vpop.f32.mrb[0].mxu0
    %v2608 = vadd.f32 %v2459, %v2607
    %v2609 = vpop.f32.mrb[0].mxu0
    %v2610 = vpop.f32.mrb[0].mxu0
    %v2611 = vadd.f32 %v2459, %v2610
    %v2612 = vpop.f32.mrb[0].mxu0
    %2613 = vmatprep.mubr.bf16.mxu0 %v2421
    %2614 = vmatmul.mubr.bf16.gmra.mrb[0].mxu0 %v2420
    %v2615 = vpop.f32.mrb[0].mxu0
    %v2616 = vadd.f32 %v2459, %v2615
    %v2617 = vpop.f32.mrb[0].mxu0
    %v2618 = vpop.f32.mrb[0].mxu0
    %v2619 = vadd.f32 %v2459, %v2618
    %v2620 = vpop.f32.mrb[0].mxu0
    %2621 = vdwg.mxu0
    %v2622 = vlaneseq
    %v2623 = vshrl.u32 %v2622, 7
    %v2624 = vsub.s32 0, %v2623
    %v2625 = vrot.slane %v770, %v2624
    %v2626 = vlaneseq
    %v2627 = vshrl.u32 %v2626, 7
    %v2628 = vsub.s32 0, %v2627
    %v2629 = vrot.slane %v777, %v2628
    %2640 = vrot.lane.b32.xlu0 %v2592, 64
    %v2641 = vpop.permute.xlu0 %2640
    %2642 = vrot.lane.b32.xlu0 %v2595, 64
    %v2643 = vpop.permute.xlu0 %2642
    %2644 = vrot.lane.b32.xlu0 %v2600, 64
    %v2645 = vpop.permute.xlu0 %2644
    %2646 = vrot.lane.b32.xlu0 %v2603, 64
    %v2647 = vpop.permute.xlu0 %2646
    %2648 = vrot.lane.b32.xlu0 %v2608, 64
    %v2649 = vpop.permute.xlu0 %2648
    %2650 = vrot.lane.b32.xlu0 %v2611, 64
    %v2651 = vpop.permute.xlu0 %2650
    %2652 = vrot.lane.b32.xlu0 %v2616, 64
    %v2653 = vpop.permute.xlu0 %2652
    %2654 = vrot.lane.b32.xlu0 %v2619, 64
    %v2655 = vpop.permute.xlu0 %2654
    %v2664 = vmul.f32 %v2625, %v2641
    %v2665 = vmul.f32 %v2625, %v2643
    %v2666 = vmul.f32 %v2625, %v2645
    %v2667 = vmul.f32 %v2625, %v2647
    %v2668 = vmul.f32 %v2629, %v2649
    %v2669 = vmul.f32 %v2629, %v2651
    %v2670 = vmul.f32 %v2629, %v2653
    %v2671 = vmul.f32 %v2629, %v2655
    %2680 = vrot.lane.b32.xlu0 %v2664, 64
    %v2681 = vpop.permute.xlu0 %2680
    %2682 = vrot.lane.b32.xlu0 %v2665, 64
    %v2683 = vpop.permute.xlu0 %2682
    %2684 = vrot.lane.b32.xlu0 %v2666, 64
    %v2685 = vpop.permute.xlu0 %2684
    %2686 = vrot.lane.b32.xlu0 %v2667, 64
    %v2687 = vpop.permute.xlu0 %2686
    %2688 = vrot.lane.b32.xlu0 %v2668, 64
    %v2689 = vpop.permute.xlu0 %2688
    %2690 = vrot.lane.b32.xlu0 %v2669, 64
    %v2691 = vpop.permute.xlu0 %2690
    %2692 = vrot.lane.b32.xlu0 %v2670, 64
    %v2693 = vpop.permute.xlu0 %2692
    %2694 = vrot.lane.b32.xlu0 %v2671, 64
    %v2695 = vpop.permute.xlu0 %2694
    %v2704 = vadd.f32 %v1973, %v2681
    %v2705 = vadd.f32 %v1974, %v2683
    %v2706 = vadd.f32 %v1975, %v2685
    %v2707 = vadd.f32 %v1976, %v2687
    %v2708 = vadd.f32 %v1977, %v2689
    %v2709 = vadd.f32 %v1978, %v2691
    %v2710 = vadd.f32 %v1979, %v2693
    %v2711 = vadd.f32 %v1980, %v2695
    %v2714 = vunpack.c.l.s4 1966171168
    %v2715 = vunpack.c.0.s8 %v2714
    %v2716 = vlaneseq
    %v2717 = vshrl.u32 %v2716, 7
    %v2718 = vsub.s32 %v2715, %v2717
    %v2719 = vrot.slane %v622, %v2718
    %v2720 = vcombine.high %v2719, %v2719
    %v2722 = vunpack.c.l.s4 1966171168
    %v2723 = vunpack.c.0.s8 %v2722
    %v2724 = vlaneseq
    %v2725 = vshrl.u32 %v2724, 7
    %v2726 = vsub.s32 %v2723, %v2725
    %v2727 = vrot.slane %v2719, %v2726
    %v2729 = vunpack.c.l.s4 1966171168
    %v2730 = vunpack.c.0.s8 %v2729
    %v2731 = vlaneseq
    %v2732 = vshrl.u32 %v2731, 7
    %v2733 = vsub.s32 %v2730, %v2732
    %v2734 = vrot.slane %v2720, %v2733
    %v2739 = vunpack.c.l.s4 1966171168
    %v2740 = vunpack.c.0.s8 %v2739
    %v2741 = vlaneseq
    %v2742 = vshrl.u32 %v2741, 7
    %v2743 = vsub.s32 %v2740, %v2742
    %v2744 = vrot.slane %v661, %v2743
    %v2745 = vcombine.high %v2744, %v2744
    %v2747 = vunpack.c.l.s4 1966171168
    %v2748 = vunpack.c.0.s8 %v2747
    %v2749 = vlaneseq
    %v2750 = vshrl.u32 %v2749, 7
    %v2751 = vsub.s32 %v2748, %v2750
    %v2752 = vrot.slane %v2744, %v2751
    %v2754 = vunpack.c.l.s4 1966171168
    %v2755 = vunpack.c.0.s8 %v2754
    %v2756 = vlaneseq
    %v2757 = vshrl.u32 %v2756, 7
    %v2758 = vsub.s32 %v2755, %v2757
    %v2759 = vrot.slane %v2745, %v2758
    %v2762 = vunpack.c.l.s4 1966171168
    %v2763 = vunpack.c.0.s8 %v2762
    %v2764 = vlaneseq
    %v2765 = vshrl.u32 %v2764, 7
    %v2766 = vsub.s32 %v2763, %v2765
    %v2767 = vrot.slane %v663, %v2766
    %v2768 = vcombine.high %v2767, %v2767
    %v2770 = vunpack.c.l.s4 1966171168
    %v2771 = vunpack.c.0.s8 %v2770
    %v2772 = vlaneseq
    %v2773 = vshrl.u32 %v2772, 7
    %v2774 = vsub.s32 %v2771, %v2773
    %v2775 = vrot.slane %v2767, %v2774
    %v2777 = vunpack.c.l.s4 1966171168
    %v2778 = vunpack.c.0.s8 %v2777
    %v2779 = vlaneseq
    %v2780 = vshrl.u32 %v2779, 7
    %v2781 = vsub.s32 %v2778, %v2780
    %v2782 = vrot.slane %v2768, %v2781
    %v2785 = vsel %vm168, %v2704, 0.0
    %2786 = vadd.xlane.f32.xlu0 %v2785
    %v2787 = vpop.xlane.xlu0 %2786
    %v2788 = vsel %vm168, %v2705, 0.0
    %2789 = vadd.xlane.f32.xlu0 %v2788
    %v2790 = vpop.xlane.xlu0 %2789
    %v2791 = vsel %vm168, %v2706, 0.0
    %2792 = vadd.xlane.f32.xlu0 %v2791
    %v2793 = vpop.xlane.xlu0 %2792
    %v2794 = vsel %vm168, %v2707, 0.0
    %2795 = vadd.xlane.f32.xlu0 %v2794
    %v2796 = vpop.xlane.xlu0 %2795
    %v2797 = vsel %vm168, %v2708, 0.0
    %2798 = vadd.xlane.f32.xlu0 %v2797
    %v2799 = vpop.xlane.xlu0 %2798
    %v2800 = vsel %vm168, %v2709, 0.0
    %2801 = vadd.xlane.f32.xlu0 %v2800
    %v2802 = vpop.xlane.xlu0 %2801
    %v2803 = vsel %vm168, %v2710, 0.0
    %2804 = vadd.xlane.f32.xlu0 %v2803
    %v2805 = vpop.xlane.xlu0 %2804
    %v2806 = vsel %vm168, %v2711, 0.0
    %2807 = vadd.xlane.f32.xlu0 %v2806
    %v2808 = vpop.xlane.xlu0 %2807
    %v2809 = vmul.f32 %v2787, %v804
    %v2810 = vmul.f32 %v2790, %v804
    %v2811 = vmul.f32 %v2793, %v804
    %v2812 = vmul.f32 %v2796, %v804
    %v2813 = vmul.f32 %v2799, %v804
    %v2814 = vmul.f32 %v2802, %v804
    %v2815 = vmul.f32 %v2805, %v804
    %v2816 = vmul.f32 %v2808, %v804
    %v2817 = vsub.f32 %v2704, %v2809
    %v2818 = vsub.f32 %v2705, %v2810
    %v2819 = vsub.f32 %v2706, %v2811
    %v2820 = vsub.f32 %v2707, %v2812
    %v2821 = vsub.f32 %v2708, %v2813
    %v2822 = vsub.f32 %v2709, %v2814
    %v2823 = vsub.f32 %v2710, %v2815
    %v2824 = vsub.f32 %v2711, %v2816
    %v2825 = vmul.f32 %v2817, %v2817
    %v2826 = vmul.f32 %v2818, %v2818
    %v2827 = vmul.f32 %v2819, %v2819
    %v2828 = vmul.f32 %v2820, %v2820
    %v2829 = vmul.f32 %v2821, %v2821
    %v2830 = vmul.f32 %v2822, %v2822
    %v2831 = vmul.f32 %v2823, %v2823
    %v2832 = vmul.f32 %v2824, %v2824
    %v2833 = vsel %vm168, %v2825, 0.0
    %2834 = vadd.xlane.f32.xlu0 %v2833
    %v2835 = vpop.xlane.xlu0 %2834
    %v2836 = vsel %vm168, %v2826, 0.0
    %2837 = vadd.xlane.f32.xlu0 %v2836
    %v2838 = vpop.xlane.xlu0 %2837
    %v2839 = vsel %vm168, %v2827, 0.0
    %2840 = vadd.xlane.f32.xlu0 %v2839
    %v2841 = vpop.xlane.xlu0 %2840
    %v2842 = vsel %vm168, %v2828, 0.0
    %2843 = vadd.xlane.f32.xlu0 %v2842
    %v2844 = vpop.xlane.xlu0 %2843
    %v2845 = vsel %vm168, %v2829, 0.0
    %2846 = vadd.xlane.f32.xlu0 %v2845
    %v2847 = vpop.xlane.xlu0 %2846
    %v2848 = vsel %vm168, %v2830, 0.0
    %2849 = vadd.xlane.f32.xlu0 %v2848
    %v2850 = vpop.xlane.xlu0 %2849
    %v2851 = vsel %vm168, %v2831, 0.0
    %2852 = vadd.xlane.f32.xlu0 %v2851
    %v2853 = vpop.xlane.xlu0 %2852
    %v2854 = vsel %vm168, %v2832, 0.0
    %2855 = vadd.xlane.f32.xlu0 %v2854
    %v2856 = vpop.xlane.xlu0 %2855
    %v2857 = vmul.f32 %v2835, %v804
    %v2858 = vmul.f32 %v2838, %v804
    %v2859 = vmul.f32 %v2841, %v804
    %v2860 = vmul.f32 %v2844, %v804
    %v2861 = vmul.f32 %v2847, %v804
    %v2862 = vmul.f32 %v2850, %v804
    %v2863 = vmul.f32 %v2853, %v804
    %v2864 = vmul.f32 %v2856, %v804
    %v2865 = vadd.f32 %v2857, 1e-06
    %v2866 = vadd.f32 %v2858, 1e-06
    %v2867 = vadd.f32 %v2859, 1e-06
    %v2868 = vadd.f32 %v2860, 1e-06
    %v2869 = vadd.f32 %v2861, 1e-06
    %v2870 = vadd.f32 %v2862, 1e-06
    %v2871 = vadd.f32 %v2863, 1e-06
    %v2872 = vadd.f32 %v2864, 1e-06
    %v2873 = vrsqrt.pop %v2865
    %v2874 = vrsqrt.pop %v2866
    %v2875 = vrsqrt.pop %v2867
    %v2876 = vrsqrt.pop %v2868
    %v2877 = vrsqrt.pop %v2869
    %v2878 = vrsqrt.pop %v2870
    %v2879 = vrsqrt.pop %v2871
    %v2880 = vrsqrt.pop %v2872
    %v2881 = vmul.f32 %v2817, %v2873
    %v2882 = vmul.f32 %v2818, %v2874
    %v2883 = vmul.f32 %v2819, %v2875
    %v2884 = vmul.f32 %v2820, %v2876
    %v2885 = vmul.f32 %v2821, %v2877
    %v2886 = vmul.f32 %v2822, %v2878
    %v2887 = vmul.f32 %v2823, %v2879
    %v2888 = vmul.f32 %v2824, %v2880
    %v2889 = vadd.f32 %v2727, 1.0
    %v2890 = vadd.f32 %v2734, 1.0
    %v2893 = vlaneseq
    %v2894 = vshrl.u32 %v2893, 7
    %v2895 = vsub.s32 0, %v2894
    %v2896 = vrot.slane %v2889, %v2895
    %v2897 = vlaneseq
    %v2898 = vshrl.u32 %v2897, 7
    %v2899 = vsub.s32 0, %v2898
    %v2900 = vrot.slane %v2890, %v2899
    %2901 = vrot.lane.b32.xlu0 %v2896, 64
    %v2902 = vpop.permute.xlu0 %2901
    %2903 = vrot.lane.b32.xlu0 %v2900, 64
    %v2904 = vpop.permute.xlu0 %2903
    %v2907 = vmul.f32 %v2881, %v2902
    %v2908 = vmul.f32 %v2882, %v2902
    %v2909 = vmul.f32 %v2883, %v2902
    %v2910 = vmul.f32 %v2884, %v2902
    %v2911 = vmul.f32 %v2885, %v2904
    %v2912 = vmul.f32 %v2886, %v2904
    %v2913 = vmul.f32 %v2887, %v2904
    %v2914 = vmul.f32 %v2888, %v2904
    %v2915 = vlaneseq
    %v2916 = vshrl.u32 %v2915, 7
    %v2917 = vsub.s32 0, %v2916
    %v2918 = vrot.slane %v2727, %v2917
    %v2919 = vlaneseq
    %v2920 = vshrl.u32 %v2919, 7
    %v2921 = vsub.s32 0, %v2920
    %v2922 = vrot.slane %v2734, %v2921
    %v2925 = vadd.f32 %v2907, %v2918
    %v2926 = vadd.f32 %v2908, %v2918
    %v2927 = vadd.f32 %v2909, %v2918
    %v2928 = vadd.f32 %v2910, %v2918
    %v2929 = vadd.f32 %v2911, %v2922
    %v2930 = vadd.f32 %v2912, %v2922
    %v2931 = vadd.f32 %v2913, %v2922
    %v2932 = vadd.f32 %v2914, %v2922
    %v2933 = vpack.c.bf16 %v2926, %v2925
    %v2934 = vpack.c.bf16 %v2928, %v2927
    %v2935 = vpack.c.bf16 %v2930, %v2929
    %v2936 = vpack.c.bf16 %v2932, %v2931
    %s2937 = scalar_lea.vmem %s12, 64
    %v2938 = vld [vmem:[%s2937] sm:$0xff]
    %v2939 = vld [vmem:[%s2937 + $0x8] sm:$0xff]
    %v2940 = vld [vmem:[%s2937 + $0x10] sm:$0xff]
    %v2941 = vld [vmem:[%s2937 + $0x18] sm:$0xff]
    %v2942 = vld [vmem:[%s2937 + $0x20] sm:$0xff]
    %v2943 = vld [vmem:[%s2937 + $0x28] sm:$0xff]
    %v2944 = vld [vmem:[%s2937 + $0x30] sm:$0xff]
    %v2945 = vld [vmem:[%s2937 + $0x38] sm:$0xff]
    %s2946 = scalar_lea.vmem %s13, 2
    %v2947 = vld [vmem:[%s2946] sm:$0x3]
    %v2949 = vlaneseq
    %v2950 = vshrl.u32 %v2949, 7
    %v2951 = vsub.s32 0, %v2950
    %v2952 = vrot.slane %v2947, %v2951
    %v2953 = vlaneseq
    %v2954 = vshrl.u32 %v2953, 7
    %v2955 = vsub.s32 1, %v2954
    %v2956 = vrot.slane %v2947, %v2955
    %v2967 = vunpack.c.l.b16 %v2938
    %v2968 = vunpack.c.h.b16 %v2938
    %v2969 = vunpack.c.l.b16 %v2939
    %v2970 = vunpack.c.h.b16 %v2939
    %v2971 = vunpack.c.l.b16 %v2940
    %v2972 = vunpack.c.h.b16 %v2940
    %v2973 = vunpack.c.l.b16 %v2941
    %v2974 = vunpack.c.h.b16 %v2941
    %v2975 = vunpack.c.l.b16 %v2942
    %v2976 = vunpack.c.h.b16 %v2942
    %v2977 = vunpack.c.l.b16 %v2943
    %v2978 = vunpack.c.h.b16 %v2943
    %v2979 = vunpack.c.l.b16 %v2944
    %v2980 = vunpack.c.h.b16 %v2944
    %v2981 = vunpack.c.l.b16 %v2945
    %v2982 = vunpack.c.h.b16 %v2945
    %v2983 = vpack.c.b16 %v2969, %v2967
    %v2984 = vpack.c.b16 %v2970, %v2968
    %v2985 = vpack.c.b16 %v2973, %v2971
    %v2986 = vpack.c.b16 %v2974, %v2972
    %v2987 = vpack.c.b16 %v2977, %v2975
    %v2988 = vpack.c.b16 %v2978, %v2976
    %v2989 = vpack.c.b16 %v2981, %v2979
    %v2990 = vpack.c.b16 %v2982, %v2980
    %v3000 = vsel %vm168, %v2933, 0
    %v3003 = vsel %vm168, %v2934, 0
    %v3006 = vsel %vm168, %v2935, 0
    %v3009 = vsel %vm168, %v2936, 0
    %3011 = vmatprep.subr.bf16.mxu0 %v2984
    %3012 = vmatpush1.bf16.msra.mxu0 %v2983
    %3013 = vmatprep.subr.bf16.mxu0 %v2986
    %3014 = vmatpush1.bf16.msra.mxu0 %v2985
    %3015 = vmatprep.subr.bf16.mxu0 %v2988
    %3016 = vmatpush1.bf16.msra.mxu0 %v2987
    %3017 = vmatprep.subr.bf16.mxu0 %v2990
    %3018 = vmatpush1.bf16.msra.mxu0 %v2989
    %3019 = vmatprep.subr.bf16.mxu0 0
    %3020 = vmatpush1.bf16.msra.mxu0 0
    %3021 = vmatprep.subr.bf16.mxu0 0
    %3022 = vmatpush1.bf16.msra.mxu0 0
    %3023 = vmatprep.subr.bf16.mxu0 0
    %3024 = vmatpush1.bf16.msra.mxu0 0
    %3025 = vmatprep.subr.bf16.mxu0 0
    %3026 = vmatpush1.bf16.msra.mxu0 0
    %3027 = vmatprep.subr.bf16.mxu0 0
    %3028 = vmatpush1.bf16.msra.mxu0 0
    %3029 = vmatprep.subr.bf16.mxu0 0
    %3030 = vmatpush1.bf16.msra.mxu0 0
    %3031 = vmatprep.subr.bf16.mxu0 0
    %3032 = vmatpush1.bf16.msra.mxu0 0
    %3033 = vmatprep.subr.bf16.mxu0 0
    %3034 = vmatpush1.bf16.msra.mxu0 0
    %3035 = vmatprep.subr.bf16.mxu0 0
    %3036 = vmatpush1.bf16.msra.mxu0 0
    %3037 = vmatprep.subr.bf16.mxu0 0
    %3038 = vmatpush1.bf16.msra.mxu0 0
    %3039 = vmatprep.subr.bf16.mxu0 0
    %3040 = vmatpush1.bf16.msra.mxu0 0
    %3041 = vmatprep.subr.bf16.mxu0 0
    %3042 = vmatpush1.bf16.msra.mxu0 0
    %3043 = vmatprep.mubr.bf16.mxu0 0
    %3044 = vmatmul.mubr.bf16.gmra.mrb[0].mxu0 %v3000
    %v3045 = vpop.f32.mrb[0].mxu0
    %v3046 = vadd.f32 %v2952, %v3045
    %v3047 = vpop.f32.mrb[0].mxu0
    %v3048 = vadd.f32 %v2956, %v3047
    %v3049 = vpop.f32.mrb[0].mxu0
    %v3050 = vadd.f32 %v2952, %v3049
    %v3051 = vpop.f32.mrb[0].mxu0
    %v3052 = vadd.f32 %v2956, %v3051
    %3053 = vmatprep.mubr.bf16.mxu0 0
    %3054 = vmatmul.mubr.bf16.gmra.mrb[0].mxu0 %v3003
    %v3055 = vpop.f32.mrb[0].mxu0
    %v3056 = vadd.f32 %v2952, %v3055
    %v3057 = vpop.f32.mrb[0].mxu0
    %v3058 = vadd.f32 %v2956, %v3057
    %v3059 = vpop.f32.mrb[0].mxu0
    %v3060 = vadd.f32 %v2952, %v3059
    %v3061 = vpop.f32.mrb[0].mxu0
    %v3062 = vadd.f32 %v2956, %v3061
    %3063 = vmatprep.mubr.bf16.mxu0 0
    %3064 = vmatmul.mubr.bf16.gmra.mrb[0].mxu0 %v3006
    %v3065 = vpop.f32.mrb[0].mxu0
    %v3066 = vadd.f32 %v2952, %v3065
    %v3067 = vpop.f32.mrb[0].mxu0
    %v3068 = vadd.f32 %v2956, %v3067
    %v3069 = vpop.f32.mrb[0].mxu0
    %v3070 = vadd.f32 %v2952, %v3069
    %v3071 = vpop.f32.mrb[0].mxu0
    %v3072 = vadd.f32 %v2956, %v3071
    %3073 = vmatprep.mubr.bf16.mxu0 0
    %3074 = vmatmul.mubr.bf16.gmra.mrb[0].mxu0 %v3009
    %v3075 = vpop.f32.mrb[0].mxu0
    %v3076 = vadd.f32 %v2952, %v3075
    %v3077 = vpop.f32.mrb[0].mxu0
    %v3078 = vadd.f32 %v2956, %v3077
    %v3079 = vpop.f32.mrb[0].mxu0
    %v3080 = vadd.f32 %v2952, %v3079
    %v3081 = vpop.f32.mrb[0].mxu0
    %v3082 = vadd.f32 %v2956, %v3081
    %3083 = vdwg.mxu0
    %v3084 = vpack.c.bf16 %v3050, %v3046
    %v3085 = vpack.c.bf16 %v3060, %v3056
    %v3086 = vpack.c.bf16 %v3070, %v3066
    %v3087 = vpack.c.bf16 %v3080, %v3076
    %3090 = vrot.lane.b32.xlu0 %v3084, 64
    %v3091 = vpop.permute.xlu0 %3090
    %3092 = vrot.lane.b32.xlu0 %v3085, 64
    %v3093 = vpop.permute.xlu0 %3092
    %v3095 = vsel %vm1088, %v3084, 0
    %v3098 = vsel %vm1088, %v3085, 0
    %v3101 = vsel %vm1088, %v3091, 0
    %v3104 = vsel %vm1088, %v3093, 0
    %3106 = vmatprep.subr.bf16.mxu0 0
    %3107 = vmatpush1.bf16.xpose.msra.mxu0 %v3101
    %3108 = vmatprep.subr.bf16.mxu0 0
    %3109 = vmatpush1.bf16.xpose.msra.mxu0 %v3104
    %3110 = vmatprep.subr.bf16.mxu0 0
    %3111 = vmatpush1.bf16.xpose.msra.mxu0 0
    %3112 = vmatprep.subr.bf16.mxu0 0
    %3113 = vmatpush1.bf16.xpose.msra.mxu0 0
    %3114 = vmatprep.subr.bf16.mxu0 0
    %3115 = vmatpush1.bf16.xpose.msra.mxu0 0
    %3116 = vmatprep.subr.bf16.mxu0 0
    %3117 = vmatpush1.bf16.xpose.msra.mxu0 0
    %3118 = vmatprep.subr.bf16.mxu0 0
    %3119 = vmatpush1.bf16.xpose.msra.mxu0 0
    %3120 = vmatprep.subr.bf16.mxu0 0
    %3121 = vmatpush1.bf16.xpose.msra.mxu0 0
    %3122 = vmatprep.subr.bf16.mxu0 0
    %3123 = vmatpush1.bf16.xpose.msra.mxu0 0
    %3124 = vmatprep.subr.bf16.mxu0 0
    %3125 = vmatpush1.bf16.xpose.msra.mxu0 0
    %3126 = vmatprep.subr.bf16.mxu0 0
    %3127 = vmatpush1.bf16.xpose.msra.mxu0 0
    %3128 = vmatprep.subr.bf16.mxu0 0
    %3129 = vmatpush1.bf16.xpose.msra.mxu0 0
    %3130 = vmatprep.subr.bf16.mxu0 0
    %3131 = vmatpush1.bf16.xpose.msra.mxu0 0
    %3132 = vmatprep.subr.bf16.mxu0 0
    %3133 = vmatpush1.bf16.xpose.msra.mxu0 0
    %3134 = vmatprep.subr.bf16.mxu0 0
    %3135 = vmatpush1.bf16.xpose.msra.mxu0 0
    %3136 = vmatprep.subr.bf16.mxu0 0
    %3137 = vmatpush1.bf16.xpose.msra.mxu0 0
    %3138 = vmatprep.mubr.bf16.mxu0 0
    %3139 = vmatmul.mubr.bf16.gmra.mrb[0].mxu0 %v3095
    %v3140 = vpop.f32.mrb[0].mxu0
    %v3141 = vadd.f32 0.0, %v3140
    %v3142 = vpop.f32.mrb[0].mxu0
    %v3143 = vpop.f32.mrb[0].mxu0
    %v3144 = vadd.f32 0.0, %v3143
    %v3145 = vpop.f32.mrb[0].mxu0
    %3146 = vmatprep.mubr.bf16.mxu0 0
    %3147 = vmatmul.mubr.bf16.gmra.mrb[0].mxu0 %v3098
    %v3148 = vpop.f32.mrb[0].mxu0
    %v3149 = vadd.f32 0.0, %v3148
    %v3150 = vpop.f32.mrb[0].mxu0
    %v3151 = vpop.f32.mrb[0].mxu0
    %v3152 = vadd.f32 0.0, %v3151
    %v3153 = vpop.f32.mrb[0].mxu0
    %3154 = vdwg.mxu0
    %3157 = vrot.lane.b32.xlu0 %v3086, 64
    %v3158 = vpop.permute.xlu0 %3157
    %3159 = vrot.lane.b32.xlu0 %v3087, 64
    %v3160 = vpop.permute.xlu0 %3159
    %v3162 = vsel %vm1088, %v3086, 0
    %v3165 = vsel %vm1088, %v3087, 0
    %v3168 = vsel %vm1088, %v3158, 0
    %v3171 = vsel %vm1088, %v3160, 0
    %3173 = vmatprep.subr.bf16.mxu0 0
    %3174 = vmatpush1.bf16.xpose.msra.mxu0 %v3168
    %3175 = vmatprep.subr.bf16.mxu0 0
    %3176 = vmatpush1.bf16.xpose.msra.mxu0 %v3171
    %3177 = vmatprep.subr.bf16.mxu0 0
    %3178 = vmatpush1.bf16.xpose.msra.mxu0 0
    %3179 = vmatprep.subr.bf16.mxu0 0
    %3180 = vmatpush1.bf16.xpose.msra.mxu0 0
    %3181 = vmatprep.subr.bf16.mxu0 0
    %3182 = vmatpush1.bf16.xpose.msra.mxu0 0
    %3183 = vmatprep.subr.bf16.mxu0 0
    %3184 = vmatpush1.bf16.xpose.msra.mxu0 0
    %3185 = vmatprep.subr.bf16.mxu0 0
    %3186 = vmatpush1.bf16.xpose.msra.mxu0 0
    %3187 = vmatprep.subr.bf16.mxu0 0
    %3188 = vmatpush1.bf16.xpose.msra.mxu0 0
    %3189 = vmatprep.subr.bf16.mxu0 0
    %3190 = vmatpush1.bf16.xpose.msra.mxu0 0
    %3191 = vmatprep.subr.bf16.mxu0 0
    %3192 = vmatpush1.bf16.xpose.msra.mxu0 0
    %3193 = vmatprep.subr.bf16.mxu0 0
    %3194 = vmatpush1.bf16.xpose.msra.mxu0 0
    %3195 = vmatprep.subr.bf16.mxu0 0
    %3196 = vmatpush1.bf16.xpose.msra.mxu0 0
    %3197 = vmatprep.subr.bf16.mxu0 0
    %3198 = vmatpush1.bf16.xpose.msra.mxu0 0
    %3199 = vmatprep.subr.bf16.mxu0 0
    %3200 = vmatpush1.bf16.xpose.msra.mxu0 0
    %3201 = vmatprep.subr.bf16.mxu0 0
    %3202 = vmatpush1.bf16.xpose.msra.mxu0 0
    %3203 = vmatprep.subr.bf16.mxu0 0
    %3204 = vmatpush1.bf16.xpose.msra.mxu0 0
    %3205 = vmatprep.mubr.bf16.mxu0 0
    %3206 = vmatmul.mubr.bf16.gmra.mrb[0].mxu0 %v3162
    %v3207 = vpop.f32.mrb[0].mxu0
    %v3208 = vadd.f32 0.0, %v3207
    %v3209 = vpop.f32.mrb[0].mxu0
    %v3210 = vpop.f32.mrb[0].mxu0
    %v3211 = vadd.f32 0.0, %v3210
    %v3212 = vpop.f32.mrb[0].mxu0
    %3213 = vmatprep.mubr.bf16.mxu0 0
    %3214 = vmatmul.mubr.bf16.gmra.mrb[0].mxu0 %v3165
    %v3215 = vpop.f32.mrb[0].mxu0
    %v3216 = vadd.f32 0.0, %v3215
    %v3217 = vpop.f32.mrb[0].mxu0
    %v3218 = vpop.f32.mrb[0].mxu0
    %v3219 = vadd.f32 0.0, %v3218
    %v3220 = vpop.f32.mrb[0].mxu0
    %3221 = vdwg.mxu0
    %v3222 = vmul.f32 %v3141, 0.17677669
    %v3223 = vmul.f32 %v3144, 0.17677669
    %v3224 = vmul.f32 %v3149, 0.17677669
    %v3225 = vmul.f32 %v3152, 0.17677669
    %v3226 = vmul.f32 %v3208, 0.17677669
    %v3227 = vmul.f32 %v3211, 0.17677669
    %v3228 = vmul.f32 %v3216, 0.17677669
    %v3229 = vmul.f32 %v3219, 0.17677669
    %v3230 = vsel %vm1088, %v3222, -inf
    %3231 = vmax.xlane.f32.xlu0 %v3230
    %v3232 = vpop.xlane.xlu0 %3231
    %v3233 = vsel %vm1088, %v3223, -inf
    %3234 = vmax.xlane.f32.xlu0 %v3233
    %v3235 = vpop.xlane.xlu0 %3234
    %v3236 = vsel %vm1088, %v3224, -inf
    %3237 = vmax.xlane.f32.xlu0 %v3236
    %v3238 = vpop.xlane.xlu0 %3237
    %v3239 = vsel %vm1088, %v3225, -inf
    %3240 = vmax.xlane.f32.xlu0 %v3239
    %v3241 = vpop.xlane.xlu0 %3240
    %v3242 = vsel %vm1088, %v3226, -inf
    %3243 = vmax.xlane.f32.xlu0 %v3242
    %v3244 = vpop.xlane.xlu0 %3243
    %v3245 = vsel %vm1088, %v3227, -inf
    %3246 = vmax.xlane.f32.xlu0 %v3245
    %v3247 = vpop.xlane.xlu0 %3246
    %v3248 = vsel %vm1088, %v3228, -inf
    %3249 = vmax.xlane.f32.xlu0 %v3248
    %v3250 = vpop.xlane.xlu0 %3249
    %v3251 = vsel %vm1088, %v3229, -inf
    %3252 = vmax.xlane.f32.xlu0 %v3251
    %v3253 = vpop.xlane.xlu0 %3252
    %v3254 = vsub.f32 %v3222, %v3232
    %v3255 = vsub.f32 %v3223, %v3235
    %v3256 = vsub.f32 %v3224, %v3238
    %v3257 = vsub.f32 %v3225, %v3241
    %v3258 = vsub.f32 %v3226, %v3244
    %v3259 = vsub.f32 %v3227, %v3247
    %v3260 = vsub.f32 %v3228, %v3250
    %v3261 = vsub.f32 %v3229, %v3253
    %v3262 = vmul.f32 %v3254, 1.442695
    %v3263 = vpow.pop %v3262
    %v3264 = vmul.f32 %v3255, 1.442695
    %v3265 = vpow.pop %v3264
    %v3266 = vmul.f32 %v3256, 1.442695
    %v3267 = vpow.pop %v3266
    %v3268 = vmul.f32 %v3257, 1.442695
    %v3269 = vpow.pop %v3268
    %v3270 = vmul.f32 %v3258, 1.442695
    %v3271 = vpow.pop %v3270
    %v3272 = vmul.f32 %v3259, 1.442695
    %v3273 = vpow.pop %v3272
    %v3274 = vmul.f32 %v3260, 1.442695
    %v3275 = vpow.pop %v3274
    %v3276 = vmul.f32 %v3261, 1.442695
    %v3277 = vpow.pop %v3276
    %v3278 = vsel %vm1088, %v3263, 0.0
    %3279 = vadd.xlane.f32.xlu0 %v3278
    %v3280 = vpop.xlane.xlu0 %3279
    %v3281 = vsel %vm1088, %v3265, 0.0
    %3282 = vadd.xlane.f32.xlu0 %v3281
    %v3283 = vpop.xlane.xlu0 %3282
    %v3284 = vsel %vm1088, %v3267, 0.0
    %3285 = vadd.xlane.f32.xlu0 %v3284
    %v3286 = vpop.xlane.xlu0 %3285
    %v3287 = vsel %vm1088, %v3269, 0.0
    %3288 = vadd.xlane.f32.xlu0 %v3287
    %v3289 = vpop.xlane.xlu0 %3288
    %v3290 = vsel %vm1088, %v3271, 0.0
    %3291 = vadd.xlane.f32.xlu0 %v3290
    %v3292 = vpop.xlane.xlu0 %3291
    %v3293 = vsel %vm1088, %v3273, 0.0
    %3294 = vadd.xlane.f32.xlu0 %v3293
    %v3295 = vpop.xlane.xlu0 %3294
    %v3296 = vsel %vm1088, %v3275, 0.0
    %3297 = vadd.xlane.f32.xlu0 %v3296
    %v3298 = vpop.xlane.xlu0 %3297
    %v3299 = vsel %vm1088, %v3277, 0.0
    %3300 = vadd.xlane.f32.xlu0 %v3299
    %v3301 = vpop.xlane.xlu0 %3300
    %v3302 = vrcp.pop %v3280
    %v3303 = vmul.f32 %v3263, %v3302
    %v3304 = vrcp.pop %v3283
    %v3305 = vmul.f32 %v3265, %v3304
    %v3306 = vrcp.pop %v3286
    %v3307 = vmul.f32 %v3267, %v3306
    %v3308 = vrcp.pop %v3289
    %v3309 = vmul.f32 %v3269, %v3308
    %v3310 = vrcp.pop %v3292
    %v3311 = vmul.f32 %v3271, %v3310
    %v3312 = vrcp.pop %v3295
    %v3313 = vmul.f32 %v3273, %v3312
    %v3314 = vrcp.pop %v3298
    %v3315 = vmul.f32 %v3275, %v3314
    %v3316 = vrcp.pop %v3301
    %v3317 = vmul.f32 %v3277, %v3316
    %v3318 = vpack.c.bf16 %v3305, %v3303
    %v3319 = vpack.c.bf16 %v3309, %v3307
    %v3320 = vpack.c.bf16 %v3313, %v3311
    %v3321 = vpack.c.bf16 %v3317, %v3315
    %v3322 = vpack.c.bf16 %v3052, %v3048
    %v3323 = vpack.c.bf16 %v3062, %v3058
    %v3324 = vpack.c.bf16 %v3072, %v3068
    %v3325 = vpack.c.bf16 %v3082, %v3078
    %v3327 = vsel %vm1088, %v3318, 0
    %v3330 = vsel %vm1088, %v3319, 0
    %3332 = vmatprep.subr.bf16.mxu0 0
    %3333 = vmatpush1.bf16.msra.mxu0 %v3322
    %3334 = vmatprep.subr.bf16.mxu0 0
    %3335 = vmatpush1.bf16.msra.mxu0 %v3323
    %3336 = vmatprep.subr.bf16.mxu0 0
    %3337 = vmatpush1.bf16.msra.mxu0 0
    %3338 = vmatprep.subr.bf16.mxu0 0
    %3339 = vmatpush1.bf16.msra.mxu0 0
    %3340 = vmatprep.subr.bf16.mxu0 0
    %3341 = vmatpush1.bf16.msra.mxu0 0
    %3342 = vmatprep.subr.bf16.mxu0 0
    %3343 = vmatpush1.bf16.msra.mxu0 0
    %3344 = vmatprep.subr.bf16.mxu0 0
    %3345 = vmatpush1.bf16.msra.mxu0 0
    %3346 = vmatprep.subr.bf16.mxu0 0
    %3347 = vmatpush1.bf16.msra.mxu0 0
    %3348 = vmatprep.subr.bf16.mxu0 0
    %3349 = vmatpush1.bf16.msra.mxu0 0
    %3350 = vmatprep.subr.bf16.mxu0 0
    %3351 = vmatpush1.bf16.msra.mxu0 0
    %3352 = vmatprep.subr.bf16.mxu0 0
    %3353 = vmatpush1.bf16.msra.mxu0 0
    %3354 = vmatprep.subr.bf16.mxu0 0
    %3355 = vmatpush1.bf16.msra.mxu0 0
    %3356 = vmatprep.subr.bf16.mxu0 0
    %3357 = vmatpush1.bf16.msra.mxu0 0
    %3358 = vmatprep.subr.bf16.mxu0 0
    %3359 = vmatpush1.bf16.msra.mxu0 0
    %3360 = vmatprep.subr.bf16.mxu0 0
    %3361 = vmatpush1.bf16.msra.mxu0 0
    %3362 = vmatprep.subr.bf16.mxu0 0
    %3363 = vmatpush1.bf16.msra.mxu0 0
    %3364 = vmatprep.mubr.bf16.mxu0 0
    %3365 = vmatmul.mubr.bf16.gmra.mrb[0].mxu0 %v3327
    %v3366 = vpop.f32.mrb[0].mxu0
    %v3367 = vadd.f32 0.0, %v3366
    %v3368 = vpop.f32.mrb[0].mxu0
    %v3369 = vpop.f32.mrb[0].mxu0
    %v3370 = vadd.f32 0.0, %v3369
    %v3371 = vpop.f32.mrb[0].mxu0
    %3372 = vmatprep.mubr.bf16.mxu0 0
    %3373 = vmatmul.mubr.bf16.gmra.mrb[0].mxu0 %v3330
    %v3374 = vpop.f32.mrb[0].mxu0
    %v3375 = vadd.f32 0.0, %v3374
    %v3376 = vpop.f32.mrb[0].mxu0
    %v3377 = vpop.f32.mrb[0].mxu0
    %v3378 = vadd.f32 0.0, %v3377
    %v3379 = vpop.f32.mrb[0].mxu0
    %3380 = vdwg.mxu0
    %v3382 = vsel %vm1088, %v3320, 0
    %v3385 = vsel %vm1088, %v3321, 0
    %3387 = vmatprep.subr.bf16.mxu0 0
    %3388 = vmatpush1.bf16.msra.mxu0 %v3324
    %3389 = vmatprep.subr.bf16.mxu0 0
    %3390 = vmatpush1.bf16.msra.mxu0 %v3325
    %3391 = vmatprep.subr.bf16.mxu0 0
    %3392 = vmatpush1.bf16.msra.mxu0 0
    %3393 = vmatprep.subr.bf16.mxu0 0
    %3394 = vmatpush1.bf16.msra.mxu0 0
    %3395 = vmatprep.subr.bf16.mxu0 0
    %3396 = vmatpush1.bf16.msra.mxu0 0
    %3397 = vmatprep.subr.bf16.mxu0 0
    %3398 = vmatpush1.bf16.msra.mxu0 0
    %3399 = vmatprep.subr.bf16.mxu0 0
    %3400 = vmatpush1.bf16.msra.mxu0 0
    %3401 = vmatprep.subr.bf16.mxu0 0
    %3402 = vmatpush1.bf16.msra.mxu0 0
    %3403 = vmatprep.subr.bf16.mxu0 0
    %3404 = vmatpush1.bf16.msra.mxu0 0
    %3405 = vmatprep.subr.bf16.mxu0 0
    %3406 = vmatpush1.bf16.msra.mxu0 0
    %3407 = vmatprep.subr.bf16.mxu0 0
    %3408 = vmatpush1.bf16.msra.mxu0 0
    %3409 = vmatprep.subr.bf16.mxu0 0
    %3410 = vmatpush1.bf16.msra.mxu0 0
    %3411 = vmatprep.subr.bf16.mxu0 0
    %3412 = vmatpush1.bf16.msra.mxu0 0
    %3413 = vmatprep.subr.bf16.mxu0 0
    %3414 = vmatpush1.bf16.msra.mxu0 0
    %3415 = vmatprep.subr.bf16.mxu0 0
    %3416 = vmatpush1.bf16.msra.mxu0 0
    %3417 = vmatprep.subr.bf16.mxu0 0
    %3418 = vmatpush1.bf16.msra.mxu0 0
    %3419 = vmatprep.mubr.bf16.mxu0 0
    %3420 = vmatmul.mubr.bf16.gmra.mrb[0].mxu0 %v3382
    %v3421 = vpop.f32.mrb[0].mxu0
    %v3422 = vadd.f32 0.0, %v3421
    %v3423 = vpop.f32.mrb[0].mxu0
    %v3424 = vpop.f32.mrb[0].mxu0
    %v3425 = vadd.f32 0.0, %v3424
    %v3426 = vpop.f32.mrb[0].mxu0
    %3427 = vmatprep.mubr.bf16.mxu0 0
    %3428 = vmatmul.mubr.bf16.gmra.mrb[0].mxu0 %v3385
    %v3429 = vpop.f32.mrb[0].mxu0
    %v3430 = vadd.f32 0.0, %v3429
    %v3431 = vpop.f32.mrb[0].mxu0
    %v3432 = vpop.f32.mrb[0].mxu0
    %v3433 = vadd.f32 0.0, %v3432
    %v3434 = vpop.f32.mrb[0].mxu0
    %3435 = vdwg.mxu0
    %3436 = vrot.lane.b32.xlu0 %v3084, 96
    %v3437 = vpop.permute.xlu0 %3436
    %3438 = vrot.lane.b32.xlu0 %v3085, 96
    %v3439 = vpop.permute.xlu0 %3438
    %3440 = vrot.lane.b32.xlu0 %v3084, 32
    %v3441 = vpop.permute.xlu0 %3440
    %3442 = vrot.lane.b32.xlu0 %v3085, 32
    %v3443 = vpop.permute.xlu0 %3442
    %v3445 = vsel %vm1088, %v3437, 0
    %v3448 = vsel %vm1088, %v3439, 0
    %v3451 = vsel %vm1088, %v3441, 0
    %v3454 = vsel %vm1088, %v3443, 0
    %3456 = vmatprep.subr.bf16.mxu0 0
    %3457 = vmatpush1.bf16.xpose.msra.mxu0 %v3451
    %3458 = vmatprep.subr.bf16.mxu0 0
    %3459 = vmatpush1.bf16.xpose.msra.mxu0 %v3454
    %3460 = vmatprep.subr.bf16.mxu0 0
    %3461 = vmatpush1.bf16.xpose.msra.mxu0 0
    %3462 = vmatprep.subr.bf16.mxu0 0
    %3463 = vmatpush1.bf16.xpose.msra.mxu0 0
    %3464 = vmatprep.subr.bf16.mxu0 0
    %3465 = vmatpush1.bf16.xpose.msra.mxu0 0
    %3466 = vmatprep.subr.bf16.mxu0 0
    %3467 = vmatpush1.bf16.xpose.msra.mxu0 0
    %3468 = vmatprep.subr.bf16.mxu0 0
    %3469 = vmatpush1.bf16.xpose.msra.mxu0 0
    %3470 = vmatprep.subr.bf16.mxu0 0
    %3471 = vmatpush1.bf16.xpose.msra.mxu0 0
    %3472 = vmatprep.subr.bf16.mxu0 0
    %3473 = vmatpush1.bf16.xpose.msra.mxu0 0
    %3474 = vmatprep.subr.bf16.mxu0 0
    %3475 = vmatpush1.bf16.xpose.msra.mxu0 0
    %3476 = vmatprep.subr.bf16.mxu0 0
    %3477 = vmatpush1.bf16.xpose.msra.mxu0 0
    %3478 = vmatprep.subr.bf16.mxu0 0
    %3479 = vmatpush1.bf16.xpose.msra.mxu0 0
    %3480 = vmatprep.subr.bf16.mxu0 0
    %3481 = vmatpush1.bf16.xpose.msra.mxu0 0
    %3482 = vmatprep.subr.bf16.mxu0 0
    %3483 = vmatpush1.bf16.xpose.msra.mxu0 0
    %3484 = vmatprep.subr.bf16.mxu0 0
    %3485 = vmatpush1.bf16.xpose.msra.mxu0 0
    %3486 = vmatprep.subr.bf16.mxu0 0
    %3487 = vmatpush1.bf16.xpose.msra.mxu0 0
    %3488 = vmatprep.mubr.bf16.mxu0 0
    %3489 = vmatmul.mubr.bf16.gmra.mrb[0].mxu0 %v3445
    %v3490 = vpop.f32.mrb[0].mxu0
    %v3491 = vadd.f32 0.0, %v3490
    %v3492 = vpop.f32.mrb[0].mxu0
    %v3493 = vpop.f32.mrb[0].mxu0
    %v3494 = vadd.f32 0.0, %v3493
    %v3495 = vpop.f32.mrb[0].mxu0
    %3496 = vmatprep.mubr.bf16.mxu0 0
    %3497 = vmatmul.mubr.bf16.gmra.mrb[0].mxu0 %v3448
    %v3498 = vpop.f32.mrb[0].mxu0
    %v3499 = vadd.f32 0.0, %v3498
    %v3500 = vpop.f32.mrb[0].mxu0
    %v3501 = vpop.f32.mrb[0].mxu0
    %v3502 = vadd.f32 0.0, %v3501
    %v3503 = vpop.f32.mrb[0].mxu0
    %3504 = vdwg.mxu0
    %3505 = vrot.lane.b32.xlu0 %v3086, 96
    %v3506 = vpop.permute.xlu0 %3505
    %3507 = vrot.lane.b32.xlu0 %v3087, 96
    %v3508 = vpop.permute.xlu0 %3507
    %3509 = vrot.lane.b32.xlu0 %v3086, 32
    %v3510 = vpop.permute.xlu0 %3509
    %3511 = vrot.lane.b32.xlu0 %v3087, 32
    %v3512 = vpop.permute.xlu0 %3511
    %v3514 = vsel %vm1088, %v3506, 0
    %v3517 = vsel %vm1088, %v3508, 0
    %v3520 = vsel %vm1088, %v3510, 0
    %v3523 = vsel %vm1088, %v3512, 0
    %3525 = vmatprep.subr.bf16.mxu0 0
    %3526 = vmatpush1.bf16.xpose.msra.mxu0 %v3520
    %3527 = vmatprep.subr.bf16.mxu0 0
    %3528 = vmatpush1.bf16.xpose.msra.mxu0 %v3523
    %3529 = vmatprep.subr.bf16.mxu0 0
    %3530 = vmatpush1.bf16.xpose.msra.mxu0 0
    %3531 = vmatprep.subr.bf16.mxu0 0
    %3532 = vmatpush1.bf16.xpose.msra.mxu0 0
    %3533 = vmatprep.subr.bf16.mxu0 0
    %3534 = vmatpush1.bf16.xpose.msra.mxu0 0
    %3535 = vmatprep.subr.bf16.mxu0 0
    %3536 = vmatpush1.bf16.xpose.msra.mxu0 0
    %3537 = vmatprep.subr.bf16.mxu0 0
    %3538 = vmatpush1.bf16.xpose.msra.mxu0 0
    %3539 = vmatprep.subr.bf16.mxu0 0
    %3540 = vmatpush1.bf16.xpose.msra.mxu0 0
    %3541 = vmatprep.subr.bf16.mxu0 0
    %3542 = vmatpush1.bf16.xpose.msra.mxu0 0
    %3543 = vmatprep.subr.bf16.mxu0 0
    %3544 = vmatpush1.bf16.xpose.msra.mxu0 0
    %3545 = vmatprep.subr.bf16.mxu0 0
    %3546 = vmatpush1.bf16.xpose.msra.mxu0 0
    %3547 = vmatprep.subr.bf16.mxu0 0
    %3548 = vmatpush1.bf16.xpose.msra.mxu0 0
    %3549 = vmatprep.subr.bf16.mxu0 0
    %3550 = vmatpush1.bf16.xpose.msra.mxu0 0
    %3551 = vmatprep.subr.bf16.mxu0 0
    %3552 = vmatpush1.bf16.xpose.msra.mxu0 0
    %3553 = vmatprep.subr.bf16.mxu0 0
    %3554 = vmatpush1.bf16.xpose.msra.mxu0 0
    %3555 = vmatprep.subr.bf16.mxu0 0
    %3556 = vmatpush1.bf16.xpose.msra.mxu0 0
    %3557 = vmatprep.mubr.bf16.mxu0 0
    %3558 = vmatmul.mubr.bf16.gmra.mrb[0].mxu0 %v3514
    %v3559 = vpop.f32.mrb[0].mxu0
    %v3560 = vadd.f32 0.0, %v3559
    %v3561 = vpop.f32.mrb[0].mxu0
    %v3562 = vpop.f32.mrb[0].mxu0
    %v3563 = vadd.f32 0.0, %v3562
    %v3564 = vpop.f32.mrb[0].mxu0
    %3565 = vmatprep.mubr.bf16.mxu0 0
    %3566 = vmatmul.mubr.bf16.gmra.mrb[0].mxu0 %v3517
    %v3567 = vpop.f32.mrb[0].mxu0
    %v3568 = vadd.f32 0.0, %v3567
    %v3569 = vpop.f32.mrb[0].mxu0
    %v3570 = vpop.f32.mrb[0].mxu0
    %v3571 = vadd.f32 0.0, %v3570
    %v3572 = vpop.f32.mrb[0].mxu0
    %3573 = vdwg.mxu0
    %v3574 = vmul.f32 %v3491, 0.17677669
    %v3575 = vmul.f32 %v3494, 0.17677669
    %v3576 = vmul.f32 %v3499, 0.17677669
    %v3577 = vmul.f32 %v3502, 0.17677669
    %v3578 = vmul.f32 %v3560, 0.17677669
    %v3579 = vmul.f32 %v3563, 0.17677669
    %v3580 = vmul.f32 %v3568, 0.17677669
    %v3581 = vmul.f32 %v3571, 0.17677669
    %v3582 = vsel %vm1088, %v3574, -inf
    %3583 = vmax.xlane.f32.xlu0 %v3582
    %v3584 = vpop.xlane.xlu0 %3583
    %v3585 = vsel %vm1088, %v3575, -inf
    %3586 = vmax.xlane.f32.xlu0 %v3585
    %v3587 = vpop.xlane.xlu0 %3586
    %v3588 = vsel %vm1088, %v3576, -inf
    %3589 = vmax.xlane.f32.xlu0 %v3588
    %v3590 = vpop.xlane.xlu0 %3589
    %v3591 = vsel %vm1088, %v3577, -inf
    %3592 = vmax.xlane.f32.xlu0 %v3591
    %v3593 = vpop.xlane.xlu0 %3592
    %v3594 = vsel %vm1088, %v3578, -inf
    %3595 = vmax.xlane.f32.xlu0 %v3594
    %v3596 = vpop.xlane.xlu0 %3595
    %v3597 = vsel %vm1088, %v3579, -inf
    %3598 = vmax.xlane.f32.xlu0 %v3597
    %v3599 = vpop.xlane.xlu0 %3598
    %v3600 = vsel %vm1088, %v3580, -inf
    %3601 = vmax.xlane.f32.xlu0 %v3600
    %v3602 = vpop.xlane.xlu0 %3601
    %v3603 = vsel %vm1088, %v3581, -inf
    %3604 = vmax.xlane.f32.xlu0 %v3603
    %v3605 = vpop.xlane.xlu0 %3604
    %v3606 = vsub.f32 %v3574, %v3584
    %v3607 = vsub.f32 %v3575, %v3587
    %v3608 = vsub.f32 %v3576, %v3590
    %v3609 = vsub.f32 %v3577, %v3593
    %v3610 = vsub.f32 %v3578, %v3596
    %v3611 = vsub.f32 %v3579, %v3599
    %v3612 = vsub.f32 %v3580, %v3602
    %v3613 = vsub.f32 %v3581, %v3605
    %v3614 = vmul.f32 %v3606, 1.442695
    %v3615 = vpow.pop %v3614
    %v3616 = vmul.f32 %v3607, 1.442695
    %v3617 = vpow.pop %v3616
    %v3618 = vmul.f32 %v3608, 1.442695
    %v3619 = vpow.pop %v3618
    %v3620 = vmul.f32 %v3609, 1.442695
    %v3621 = vpow.pop %v3620
    %v3622 = vmul.f32 %v3610, 1.442695
    %v3623 = vpow.pop %v3622
    %v3624 = vmul.f32 %v3611, 1.442695
    %v3625 = vpow.pop %v3624
    %v3626 = vmul.f32 %v3612, 1.442695
    %v3627 = vpow.pop %v3626
    %v3628 = vmul.f32 %v3613, 1.442695
    %v3629 = vpow.pop %v3628
    %v3630 = vsel %vm1088, %v3615, 0.0
    %3631 = vadd.xlane.f32.xlu0 %v3630
    %v3632 = vpop.xlane.xlu0 %3631
    %v3633 = vsel %vm1088, %v3617, 0.0
    %3634 = vadd.xlane.f32.xlu0 %v3633
    %v3635 = vpop.xlane.xlu0 %3634
    %v3636 = vsel %vm1088, %v3619, 0.0
    %3637 = vadd.xlane.f32.xlu0 %v3636
    %v3638 = vpop.xlane.xlu0 %3637
    %v3639 = vsel %vm1088, %v3621, 0.0
    %3640 = vadd.xlane.f32.xlu0 %v3639
    %v3641 = vpop.xlane.xlu0 %3640
    %v3642 = vsel %vm1088, %v3623, 0.0
    %3643 = vadd.xlane.f32.xlu0 %v3642
    %v3644 = vpop.xlane.xlu0 %3643
    %v3645 = vsel %vm1088, %v3625, 0.0
    %3646 = vadd.xlane.f32.xlu0 %v3645
    %v3647 = vpop.xlane.xlu0 %3646
    %v3648 = vsel %vm1088, %v3627, 0.0
    %3649 = vadd.xlane.f32.xlu0 %v3648
    %v3650 = vpop.xlane.xlu0 %3649
    %v3651 = vsel %vm1088, %v3629, 0.0
    %3652 = vadd.xlane.f32.xlu0 %v3651
    %v3653 = vpop.xlane.xlu0 %3652
    %v3654 = vrcp.pop %v3632
    %v3655 = vmul.f32 %v3615, %v3654
    %v3656 = vrcp.pop %v3635
    %v3657 = vmul.f32 %v3617, %v3656
    %v3658 = vrcp.pop %v3638
    %v3659 = vmul.f32 %v3619, %v3658
    %v3660 = vrcp.pop %v3641
    %v3661 = vmul.f32 %v3621, %v3660
    %v3662 = vrcp.pop %v3644
    %v3663 = vmul.f32 %v3623, %v3662
    %v3664 = vrcp.pop %v3647
    %v3665 = vmul.f32 %v3625, %v3664
    %v3666 = vrcp.pop %v3650
    %v3667 = vmul.f32 %v3627, %v3666
    %v3668 = vrcp.pop %v3653
    %v3669 = vmul.f32 %v3629, %v3668
    %v3670 = vpack.c.bf16 %v3657, %v3655
    %v3671 = vpack.c.bf16 %v3661, %v3659
    %v3672 = vpack.c.bf16 %v3665, %v3663
    %v3673 = vpack.c.bf16 %v3669, %v3667
    %3676 = vrot.lane.b32.xlu0 %v3322, 96
    %v3677 = vpop.permute.xlu0 %3676
    %3678 = vrot.lane.b32.xlu0 %v3323, 96
    %v3679 = vpop.permute.xlu0 %3678
    %v3683 = vsel %vm1088, %v3670, 0
    %v3686 = vsel %vm1088, %v3671, 0
    %3688 = vmatprep.subr.bf16.mxu0 0
    %3689 = vmatpush1.bf16.msra.mxu0 %v3677
    %3690 = vmatprep.subr.bf16.mxu0 0
    %3691 = vmatpush1.bf16.msra.mxu0 %v3679
    %3692 = vmatprep.subr.bf16.mxu0 0
    %3693 = vmatpush1.bf16.msra.mxu0 0
    %3694 = vmatprep.subr.bf16.mxu0 0
    %3695 = vmatpush1.bf16.msra.mxu0 0
    %3696 = vmatprep.subr.bf16.mxu0 0
    %3697 = vmatpush1.bf16.msra.mxu0 0
    %3698 = vmatprep.subr.bf16.mxu0 0
    %3699 = vmatpush1.bf16.msra.mxu0 0
    %3700 = vmatprep.subr.bf16.mxu0 0
    %3701 = vmatpush1.bf16.msra.mxu0 0
    %3702 = vmatprep.subr.bf16.mxu0 0
    %3703 = vmatpush1.bf16.msra.mxu0 0
    %3704 = vmatprep.subr.bf16.mxu0 0
    %3705 = vmatpush1.bf16.msra.mxu0 0
    %3706 = vmatprep.subr.bf16.mxu0 0
    %3707 = vmatpush1.bf16.msra.mxu0 0
    %3708 = vmatprep.subr.bf16.mxu0 0
    %3709 = vmatpush1.bf16.msra.mxu0 0
    %3710 = vmatprep.subr.bf16.mxu0 0
    %3711 = vmatpush1.bf16.msra.mxu0 0
    %3712 = vmatprep.subr.bf16.mxu0 0
    %3713 = vmatpush1.bf16.msra.mxu0 0
    %3714 = vmatprep.subr.bf16.mxu0 0
    %3715 = vmatpush1.bf16.msra.mxu0 0
    %3716 = vmatprep.subr.bf16.mxu0 0
    %3717 = vmatpush1.bf16.msra.mxu0 0
    %3718 = vmatprep.subr.bf16.mxu0 0
    %3719 = vmatpush1.bf16.msra.mxu0 0
    %3720 = vmatprep.mubr.bf16.mxu0 0
    %3721 = vmatmul.mubr.bf16.gmra.mrb[0].mxu0 %v3683
    %v3722 = vpop.f32.mrb[0].mxu0
    %v3723 = vadd.f32 0.0, %v3722
    %v3724 = vpop.f32.mrb[0].mxu0
    %v3725 = vpop.f32.mrb[0].mxu0
    %v3726 = vadd.f32 0.0, %v3725
    %v3727 = vpop.f32.mrb[0].mxu0
    %3728 = vmatprep.mubr.bf16.mxu0 0
    %3729 = vmatmul.mubr.bf16.gmra.mrb[0].mxu0 %v3686
    %v3730 = vpop.f32.mrb[0].mxu0
    %v3731 = vadd.f32 0.0, %v3730
    %v3732 = vpop.f32.mrb[0].mxu0
    %v3733 = vpop.f32.mrb[0].mxu0
    %v3734 = vadd.f32 0.0, %v3733
    %v3735 = vpop.f32.mrb[0].mxu0
    %3736 = vdwg.mxu0
    %3739 = vrot.lane.b32.xlu0 %v3324, 96
    %v3740 = vpop.permute.xlu0 %3739
    %3741 = vrot.lane.b32.xlu0 %v3325, 96
    %v3742 = vpop.permute.xlu0 %3741
    %v3746 = vsel %vm1088, %v3672, 0
    %v3749 = vsel %vm1088, %v3673, 0
    %3751 = vmatprep.subr.bf16.mxu0 0
    %3752 = vmatpush1.bf16.msra.mxu0 %v3740
    %3753 = vmatprep.subr.bf16.mxu0 0
    %3754 = vmatpush1.bf16.msra.mxu0 %v3742
    %3755 = vmatprep.subr.bf16.mxu0 0
    %3756 = vmatpush1.bf16.msra.mxu0 0
    %3757 = vmatprep.subr.bf16.mxu0 0
    %3758 = vmatpush1.bf16.msra.mxu0 0
    %3759 = vmatprep.subr.bf16.mxu0 0
    %3760 = vmatpush1.bf16.msra.mxu0 0
    %3761 = vmatprep.subr.bf16.mxu0 0
    %3762 = vmatpush1.bf16.msra.mxu0 0
    %3763 = vmatprep.subr.bf16.mxu0 0
    %3764 = vmatpush1.bf16.msra.mxu0 0
    %3765 = vmatprep.subr.bf16.mxu0 0
    %3766 = vmatpush1.bf16.msra.mxu0 0
    %3767 = vmatprep.subr.bf16.mxu0 0
    %3768 = vmatpush1.bf16.msra.mxu0 0
    %3769 = vmatprep.subr.bf16.mxu0 0
    %3770 = vmatpush1.bf16.msra.mxu0 0
    %3771 = vmatprep.subr.bf16.mxu0 0
    %3772 = vmatpush1.bf16.msra.mxu0 0
    %3773 = vmatprep.subr.bf16.mxu0 0
    %3774 = vmatpush1.bf16.msra.mxu0 0
    %3775 = vmatprep.subr.bf16.mxu0 0
    %3776 = vmatpush1.bf16.msra.mxu0 0
    %3777 = vmatprep.subr.bf16.mxu0 0
    %3778 = vmatpush1.bf16.msra.mxu0 0
    %3779 = vmatprep.subr.bf16.mxu0 0
    %3780 = vmatpush1.bf16.msra.mxu0 0
    %3781 = vmatprep.subr.bf16.mxu0 0
    %3782 = vmatpush1.bf16.msra.mxu0 0
    %3783 = vmatprep.mubr.bf16.mxu0 0
    %3784 = vmatmul.mubr.bf16.gmra.mrb[0].mxu0 %v3746
    %v3785 = vpop.f32.mrb[0].mxu0
    %v3786 = vadd.f32 0.0, %v3785
    %v3787 = vpop.f32.mrb[0].mxu0
    %v3788 = vpop.f32.mrb[0].mxu0
    %v3789 = vadd.f32 0.0, %v3788
    %v3790 = vpop.f32.mrb[0].mxu0
    %3791 = vmatprep.mubr.bf16.mxu0 0
    %3792 = vmatmul.mubr.bf16.gmra.mrb[0].mxu0 %v3749
    %v3793 = vpop.f32.mrb[0].mxu0
    %v3794 = vadd.f32 0.0, %v3793
    %v3795 = vpop.f32.mrb[0].mxu0
    %v3796 = vpop.f32.mrb[0].mxu0
    %v3797 = vadd.f32 0.0, %v3796
    %v3798 = vpop.f32.mrb[0].mxu0
    %3799 = vdwg.mxu0
    %3808 = vrot.lane.b32.xlu0 %v3723, 32
    %v3809 = vpop.permute.xlu0 %3808
    %3810 = vrot.lane.b32.xlu0 %v3726, 32
    %v3811 = vpop.permute.xlu0 %3810
    %3812 = vrot.lane.b32.xlu0 %v3731, 32
    %v3813 = vpop.permute.xlu0 %3812
    %3814 = vrot.lane.b32.xlu0 %v3734, 32
    %v3815 = vpop.permute.xlu0 %3814
    %3816 = vrot.lane.b32.xlu0 %v3786, 32
    %v3817 = vpop.permute.xlu0 %3816
    %3818 = vrot.lane.b32.xlu0 %v3789, 32
    %v3819 = vpop.permute.xlu0 %3818
    %3820 = vrot.lane.b32.xlu0 %v3794, 32
    %v3821 = vpop.permute.xlu0 %3820
    %3822 = vrot.lane.b32.xlu0 %v3797, 32
    %v3823 = vpop.permute.xlu0 %3822
    %v3832 = vsel %vm1088, %v3367, %v3809
    %v3833 = vsel %vm1088, %v3370, %v3811
    %v3834 = vsel %vm1088, %v3375, %v3813
    %v3835 = vsel %vm1088, %v3378, %v3815
    %v3836 = vsel %vm1088, %v3422, %v3817
    %v3837 = vsel %vm1088, %v3425, %v3819
    %v3838 = vsel %vm1088, %v3430, %v3821
    %v3839 = vsel %vm1088, %v3433, %v3823
    %v3840 = vpack.c.bf16 %v3833, %v3832
    %v3841 = vpack.c.bf16 %v3835, %v3834
    %v3842 = vpack.c.bf16 %v3837, %v3836
    %v3843 = vpack.c.bf16 %v3839, %v3838
    %s3844 = scalar_lea.vmem %s14, 32
    %v3845 = vld [vmem:[%s3844] sm:$0xf]
    %v3846 = vld [vmem:[%s3844 + $0x4] sm:$0xf]
    %v3847 = vld [vmem:[%s3844 + $0x8] sm:$0xf]
    %v3848 = vld [vmem:[%s3844 + $0xc] sm:$0xf]
    %v3849 = vld [vmem:[%s3844 + $0x10] sm:$0xf]
    %v3850 = vld [vmem:[%s3844 + $0x14] sm:$0xf]
    %v3851 = vld [vmem:[%s3844 + $0x18] sm:$0xf]
    %v3852 = vld [vmem:[%s3844 + $0x1c] sm:$0xf]
    %s3853 = scalar_lea.vmem %s15, 1
    %v3854 = vld [vmem:[%s3853] sm:$0x1]
    %v3856 = vlaneseq
    %v3857 = vshrl.u32 %v3856, 7
    %v3858 = vsub.s32 0, %v3857
    %v3859 = vrot.slane %v3854, %v3858
    %v3869 = vunpack.c.l.b16 %v3845
    %v3870 = vunpack.c.l.b16 %v3846
    %v3871 = vunpack.c.l.b16 %v3847
    %v3872 = vunpack.c.l.b16 %v3848
    %v3873 = vunpack.c.l.b16 %v3849
    %v3874 = vunpack.c.l.b16 %v3850
    %v3875 = vunpack.c.l.b16 %v3851
    %v3876 = vunpack.c.l.b16 %v3852
    %v3877 = vpack.c.b16 %v3870, %v3869
    %v3878 = vpack.c.b16 %v3872, %v3871
    %v3879 = vpack.c.b16 %v3874, %v3873
    %v3880 = vpack.c.b16 %v3876, %v3875
    %v3886 = vsel %vm168, %v3840, 0
    %v3889 = vsel %vm168, %v3841, 0
    %v3892 = vsel %vm168, %v3842, 0
    %v3895 = vsel %vm168, %v3843, 0
    %3897 = vmatprep.subr.bf16.mxu0 0
    %3898 = vmatpush1.bf16.msra.mxu0 %v3877
    %3899 = vmatprep.subr.bf16.mxu0 0
    %3900 = vmatpush1.bf16.msra.mxu0 %v3878
    %3901 = vmatprep.subr.bf16.mxu0 0
    %3902 = vmatpush1.bf16.msra.mxu0 %v3879
    %3903 = vmatprep.subr.bf16.mxu0 0
    %3904 = vmatpush1.bf16.msra.mxu0 %v3880
    %3905 = vmatprep.subr.bf16.mxu0 0
    %3906 = vmatpush1.bf16.msra.mxu0 0
    %3907 = vmatprep.subr.bf16.mxu0 0
    %3908 = vmatpush1.bf16.msra.mxu0 0
    %3909 = vmatprep.subr.bf16.mxu0 0
    %3910 = vmatpush1.bf16.msra.mxu0 0
    %3911 = vmatprep.subr.bf16.mxu0 0
    %3912 = vmatpush1.bf16.msra.mxu0 0
    %3913 = vmatprep.subr.bf16.mxu0 0
    %3914 = vmatpush1.bf16.msra.mxu0 0
    %3915 = vmatprep.subr.bf16.mxu0 0
    %3916 = vmatpush1.bf16.msra.mxu0 0
    %3917 = vmatprep.subr.bf16.mxu0 0
    %3918 = vmatpush1.bf16.msra.mxu0 0
    %3919 = vmatprep.subr.bf16.mxu0 0
    %3920 = vmatpush1.bf16.msra.mxu0 0
    %3921 = vmatprep.subr.bf16.mxu0 0
    %3922 = vmatpush1.bf16.msra.mxu0 0
    %3923 = vmatprep.subr.bf16.mxu0 0
    %3924 = vmatpush1.bf16.msra.mxu0 0
    %3925 = vmatprep.subr.bf16.mxu0 0
    %3926 = vmatpush1.bf16.msra.mxu0 0
    %3927 = vmatprep.subr.bf16.mxu0 0
    %3928 = vmatpush1.bf16.msra.mxu0 0
    %3929 = vmatprep.mubr.bf16.mxu0 0
    %3930 = vmatmul.mubr.bf16.gmra.mrb[0].mxu0 %v3886
    %v3931 = vpop.f32.mrb[0].mxu0
    %v3932 = vadd.f32 %v3859, %v3931
    %v3933 = vpop.f32.mrb[0].mxu0
    %v3934 = vpop.f32.mrb[0].mxu0
    %v3935 = vadd.f32 %v3859, %v3934
    %v3936 = vpop.f32.mrb[0].mxu0
    %3937 = vmatprep.mubr.bf16.mxu0 0
    %3938 = vmatmul.mubr.bf16.gmra.mrb[0].mxu0 %v3889
    %v3939 = vpop.f32.mrb[0].mxu0
    %v3940 = vadd.f32 %v3859, %v3939
    %v3941 = vpop.f32.mrb[0].mxu0
    %v3942 = vpop.f32.mrb[0].mxu0
    %v3943 = vadd.f32 %v3859, %v3942
    %v3944 = vpop.f32.mrb[0].mxu0
    %3945 = vmatprep.mubr.bf16.mxu0 0
    %3946 = vmatmul.mubr.bf16.gmra.mrb[0].mxu0 %v3892
    %v3947 = vpop.f32.mrb[0].mxu0
    %v3948 = vadd.f32 %v3859, %v3947
    %v3949 = vpop.f32.mrb[0].mxu0
    %v3950 = vpop.f32.mrb[0].mxu0
    %v3951 = vadd.f32 %v3859, %v3950
    %v3952 = vpop.f32.mrb[0].mxu0
    %3953 = vmatprep.mubr.bf16.mxu0 0
    %3954 = vmatmul.mubr.bf16.gmra.mrb[0].mxu0 %v3895
    %v3955 = vpop.f32.mrb[0].mxu0
    %v3956 = vadd.f32 %v3859, %v3955
    %v3957 = vpop.f32.mrb[0].mxu0
    %v3958 = vpop.f32.mrb[0].mxu0
    %v3959 = vadd.f32 %v3859, %v3958
    %v3960 = vpop.f32.mrb[0].mxu0
    %3961 = vdwg.mxu0
    %v3962 = vlaneseq
    %v3963 = vshrl.u32 %v3962, 7
    %v3964 = vsub.s32 0, %v3963
    %v3965 = vrot.slane %v2752, %v3964
    %v3966 = vlaneseq
    %v3967 = vshrl.u32 %v3966, 7
    %v3968 = vsub.s32 0, %v3967
    %v3969 = vrot.slane %v2759, %v3968
    %v3972 = vmul.f32 %v3965, %v3932
    %v3973 = vmul.f32 %v3965, %v3935
    %v3974 = vmul.f32 %v3965, %v3940
    %v3975 = vmul.f32 %v3965, %v3943
    %v3976 = vmul.f32 %v3969, %v3948
    %v3977 = vmul.f32 %v3969, %v3951
    %v3978 = vmul.f32 %v3969, %v3956
    %v3979 = vmul.f32 %v3969, %v3959
    %v3980 = vadd.f32 %v2704, %v3972
    %v3981 = vadd.f32 %v2705, %v3973
    %v3982 = vadd.f32 %v2706, %v3974
    %v3983 = vadd.f32 %v2707, %v3975
    %v3984 = vadd.f32 %v2708, %v3976
    %v3985 = vadd.f32 %v2709, %v3977
    %v3986 = vadd.f32 %v2710, %v3978
    %v3987 = vadd.f32 %v2711, %v3979
    %v3988 = vsel %vm168, %v3980, 0.0
    %3989 = vadd.xlane.f32.xlu0 %v3988
    %v3990 = vpop.xlane.xlu0 %3989
    %v3991 = vsel %vm168, %v3981, 0.0
    %3992 = vadd.xlane.f32.xlu0 %v3991
    %v3993 = vpop.xlane.xlu0 %3992
    %v3994 = vsel %vm168, %v3982, 0.0
    %3995 = vadd.xlane.f32.xlu0 %v3994
    %v3996 = vpop.xlane.xlu0 %3995
    %v3997 = vsel %vm168, %v3983, 0.0
    %3998 = vadd.xlane.f32.xlu0 %v3997
    %v3999 = vpop.xlane.xlu0 %3998
    %v4000 = vsel %vm168, %v3984, 0.0
    %4001 = vadd.xlane.f32.xlu0 %v4000
    %v4002 = vpop.xlane.xlu0 %4001
    %v4003 = vsel %vm168, %v3985, 0.0
    %4004 = vadd.xlane.f32.xlu0 %v4003
    %v4005 = vpop.xlane.xlu0 %4004
    %v4006 = vsel %vm168, %v3986, 0.0
    %4007 = vadd.xlane.f32.xlu0 %v4006
    %v4008 = vpop.xlane.xlu0 %4007
    %v4009 = vsel %vm168, %v3987, 0.0
    %4010 = vadd.xlane.f32.xlu0 %v4009
    %v4011 = vpop.xlane.xlu0 %4010
    %v4012 = vmul.f32 %v3990, %v804
    %v4013 = vmul.f32 %v3993, %v804
    %v4014 = vmul.f32 %v3996, %v804
    %v4015 = vmul.f32 %v3999, %v804
    %v4016 = vmul.f32 %v4002, %v804
    %v4017 = vmul.f32 %v4005, %v804
    %v4018 = vmul.f32 %v4008, %v804
    %v4019 = vmul.f32 %v4011, %v804
    %v4020 = vsub.f32 %v3980, %v4012
    %v4021 = vsub.f32 %v3981, %v4013
    %v4022 = vsub.f32 %v3982, %v4014
    %v4023 = vsub.f32 %v3983, %v4015
    %v4024 = vsub.f32 %v3984, %v4016
    %v4025 = vsub.f32 %v3985, %v4017
    %v4026 = vsub.f32 %v3986, %v4018
    %v4027 = vsub.f32 %v3987, %v4019
    %v4028 = vmul.f32 %v4020, %v4020
    %v4029 = vmul.f32 %v4021, %v4021
    %v4030 = vmul.f32 %v4022, %v4022
    %v4031 = vmul.f32 %v4023, %v4023
    %v4032 = vmul.f32 %v4024, %v4024
    %v4033 = vmul.f32 %v4025, %v4025
    %v4034 = vmul.f32 %v4026, %v4026
    %v4035 = vmul.f32 %v4027, %v4027
    %v4036 = vsel %vm168, %v4028, 0.0
    %4037 = vadd.xlane.f32.xlu0 %v4036
    %v4038 = vpop.xlane.xlu0 %4037
    %v4039 = vsel %vm168, %v4029, 0.0
    %4040 = vadd.xlane.f32.xlu0 %v4039
    %v4041 = vpop.xlane.xlu0 %4040
    %v4042 = vsel %vm168, %v4030, 0.0
    %4043 = vadd.xlane.f32.xlu0 %v4042
    %v4044 = vpop.xlane.xlu0 %4043
    %v4045 = vsel %vm168, %v4031, 0.0
    %4046 = vadd.xlane.f32.xlu0 %v4045
    %v4047 = vpop.xlane.xlu0 %4046
    %v4048 = vsel %vm168, %v4032, 0.0
    %4049 = vadd.xlane.f32.xlu0 %v4048
    %v4050 = vpop.xlane.xlu0 %4049
    %v4051 = vsel %vm168, %v4033, 0.0
    %4052 = vadd.xlane.f32.xlu0 %v4051
    %v4053 = vpop.xlane.xlu0 %4052
    %v4054 = vsel %vm168, %v4034, 0.0
    %4055 = vadd.xlane.f32.xlu0 %v4054
    %v4056 = vpop.xlane.xlu0 %4055
    %v4057 = vsel %vm168, %v4035, 0.0
    %4058 = vadd.xlane.f32.xlu0 %v4057
    %v4059 = vpop.xlane.xlu0 %4058
    %v4060 = vmul.f32 %v4038, %v804
    %v4061 = vmul.f32 %v4041, %v804
    %v4062 = vmul.f32 %v4044, %v804
    %v4063 = vmul.f32 %v4047, %v804
    %v4064 = vmul.f32 %v4050, %v804
    %v4065 = vmul.f32 %v4053, %v804
    %v4066 = vmul.f32 %v4056, %v804
    %v4067 = vmul.f32 %v4059, %v804
    %v4068 = vadd.f32 %v4060, 1e-06
    %v4069 = vadd.f32 %v4061, 1e-06
    %v4070 = vadd.f32 %v4062, 1e-06
    %v4071 = vadd.f32 %v4063, 1e-06
    %v4072 = vadd.f32 %v4064, 1e-06
    %v4073 = vadd.f32 %v4065, 1e-06
    %v4074 = vadd.f32 %v4066, 1e-06
    %v4075 = vadd.f32 %v4067, 1e-06
    %v4076 = vrsqrt.pop %v4068
    %v4077 = vrsqrt.pop %v4069
    %v4078 = vrsqrt.pop %v4070
    %v4079 = vrsqrt.pop %v4071
    %v4080 = vrsqrt.pop %v4072
    %v4081 = vrsqrt.pop %v4073
    %v4082 = vrsqrt.pop %v4074
    %v4083 = vrsqrt.pop %v4075
    %v4084 = vmul.f32 %v4020, %v4076
    %v4085 = vmul.f32 %v4021, %v4077
    %v4086 = vmul.f32 %v4022, %v4078
    %v4087 = vmul.f32 %v4023, %v4079
    %v4088 = vmul.f32 %v4024, %v4080
    %v4089 = vmul.f32 %v4025, %v4081
    %v4090 = vmul.f32 %v4026, %v4082
    %v4091 = vmul.f32 %v4027, %v4083
    %v4092 = vadd.f32 %v2775, 1.0
    %v4093 = vadd.f32 %v2782, 1.0
    %v4096 = vlaneseq
    %v4097 = vshrl.u32 %v4096, 7
    %v4098 = vsub.s32 0, %v4097
    %v4099 = vrot.slane %v4092, %v4098
    %v4100 = vlaneseq
    %v4101 = vshrl.u32 %v4100, 7
    %v4102 = vsub.s32 0, %v4101
    %v4103 = vrot.slane %v4093, %v4102
    %v4106 = vmul.f32 %v4084, %v4099
    %v4107 = vmul.f32 %v4085, %v4099
    %v4108 = vmul.f32 %v4086, %v4099
    %v4109 = vmul.f32 %v4087, %v4099
    %v4110 = vmul.f32 %v4088, %v4103
    %v4111 = vmul.f32 %v4089, %v4103
    %v4112 = vmul.f32 %v4090, %v4103
    %v4113 = vmul.f32 %v4091, %v4103
    %4114 = vrot.lane.b32.xlu0 %v3965, 64
    %v4115 = vpop.permute.xlu0 %4114
    %4116 = vrot.lane.b32.xlu0 %v3969, 64
    %v4117 = vpop.permute.xlu0 %4116
    %v4120 = vadd.f32 %v4106, %v4115
    %v4121 = vadd.f32 %v4107, %v4115
    %v4122 = vadd.f32 %v4108, %v4115
    %v4123 = vadd.f32 %v4109, %v4115
    %v4124 = vadd.f32 %v4110, %v4117
    %v4125 = vadd.f32 %v4111, %v4117
    %v4126 = vadd.f32 %v4112, %v4117
    %v4127 = vadd.f32 %v4113, %v4117
    %v4128 = vpack.c.bf16 %v4121, %v4120
    %v4129 = vpack.c.bf16 %v4123, %v4122
    %v4130 = vpack.c.bf16 %v4125, %v4124
    %v4131 = vpack.c.bf16 %v4127, %v4126
    %s4132 = scalar_lea.vmem %s16, 64
    %v4133 = vld [vmem:[%s4132] sm:$0xff]
    %v4134 = vld [vmem:[%s4132 + $0x8] sm:$0xff]
    %v4135 = vld [vmem:[%s4132 + $0x10] sm:$0xff]
    %v4136 = vld [vmem:[%s4132 + $0x18] sm:$0xff]
    %v4137 = vld [vmem:[%s4132 + $0x20] sm:$0xff]
    %v4138 = vld [vmem:[%s4132 + $0x28] sm:$0xff]
    %v4139 = vld [vmem:[%s4132 + $0x30] sm:$0xff]
    %v4140 = vld [vmem:[%s4132 + $0x38] sm:$0xff]
    %s4141 = scalar_lea.vmem %s17, 2
    %v4142 = vld [vmem:[%s4141] sm:$0x3]
    %v4144 = vlaneseq
    %v4145 = vshrl.u32 %v4144, 7
    %v4146 = vsub.s32 0, %v4145
    %v4147 = vrot.slane %v4142, %v4146
    %v4148 = vlaneseq
    %v4149 = vshrl.u32 %v4148, 7
    %v4150 = vsub.s32 1, %v4149
    %v4151 = vrot.slane %v4142, %v4150
    %v4162 = vunpack.c.l.b16 %v4133
    %v4163 = vunpack.c.h.b16 %v4133
    %v4164 = vunpack.c.l.b16 %v4134
    %v4165 = vunpack.c.h.b16 %v4134
    %v4166 = vunpack.c.l.b16 %v4135
    %v4167 = vunpack.c.h.b16 %v4135
    %v4168 = vunpack.c.l.b16 %v4136
    %v4169 = vunpack.c.h.b16 %v4136
    %v4170 = vunpack.c.l.b16 %v4137
    %v4171 = vunpack.c.h.b16 %v4137
    %v4172 = vunpack.c.l.b16 %v4138
    %v4173 = vunpack.c.h.b16 %v4138
    %v4174 = vunpack.c.l.b16 %v4139
    %v4175 = vunpack.c.h.b16 %v4139
    %v4176 = vunpack.c.l.b16 %v4140
    %v4177 = vunpack.c.h.b16 %v4140
    %v4178 = vpack.c.b16 %v4164, %v4162
    %v4179 = vpack.c.b16 %v4165, %v4163
    %v4180 = vpack.c.b16 %v4168, %v4166
    %v4181 = vpack.c.b16 %v4169, %v4167
    %v4182 = vpack.c.b16 %v4172, %v4170
    %v4183 = vpack.c.b16 %v4173, %v4171
    %v4184 = vpack.c.b16 %v4176, %v4174
    %v4185 = vpack.c.b16 %v4177, %v4175
    %v4195 = vsel %vm168, %v4128, 0
    %v4198 = vsel %vm168, %v4129, 0
    %v4201 = vsel %vm168, %v4130, 0
    %v4204 = vsel %vm168, %v4131, 0
    %4206 = vmatprep.subr.bf16.mxu0 %v4179
    %4207 = vmatpush1.bf16.msra.mxu0 %v4178
    %4208 = vmatprep.subr.bf16.mxu0 %v4181
    %4209 = vmatpush1.bf16.msra.mxu0 %v4180
    %4210 = vmatprep.subr.bf16.mxu0 %v4183
    %4211 = vmatpush1.bf16.msra.mxu0 %v4182
    %4212 = vmatprep.subr.bf16.mxu0 %v4185
    %4213 = vmatpush1.bf16.msra.mxu0 %v4184
    %4214 = vmatprep.subr.bf16.mxu0 0
    %4215 = vmatpush1.bf16.msra.mxu0 0
    %4216 = vmatprep.subr.bf16.mxu0 0
    %4217 = vmatpush1.bf16.msra.mxu0 0
    %4218 = vmatprep.subr.bf16.mxu0 0
    %4219 = vmatpush1.bf16.msra.mxu0 0
    %4220 = vmatprep.subr.bf16.mxu0 0
    %4221 = vmatpush1.bf16.msra.mxu0 0
    %4222 = vmatprep.subr.bf16.mxu0 0
    %4223 = vmatpush1.bf16.msra.mxu0 0
    %4224 = vmatprep.subr.bf16.mxu0 0
    %4225 = vmatpush1.bf16.msra.mxu0 0
    %4226 = vmatprep.subr.bf16.mxu0 0
    %4227 = vmatpush1.bf16.msra.mxu0 0
    %4228 = vmatprep.subr.bf16.mxu0 0
    %4229 = vmatpush1.bf16.msra.mxu0 0
    %4230 = vmatprep.subr.bf16.mxu0 0
    %4231 = vmatpush1.bf16.msra.mxu0 0
    %4232 = vmatprep.subr.bf16.mxu0 0
    %4233 = vmatpush1.bf16.msra.mxu0 0
    %4234 = vmatprep.subr.bf16.mxu0 0
    %4235 = vmatpush1.bf16.msra.mxu0 0
    %4236 = vmatprep.subr.bf16.mxu0 0
    %4237 = vmatpush1.bf16.msra.mxu0 0
    %4238 = vmatprep.mubr.bf16.mxu0 0
    %4239 = vmatmul.mubr.bf16.gmra.mrb[0].mxu0 %v4195
    %v4240 = vpop.f32.mrb[0].mxu0
    %v4241 = vadd.f32 %v4147, %v4240
    %v4242 = vpop.f32.mrb[0].mxu0
    %v4243 = vadd.f32 %v4151, %v4242
    %v4244 = vpop.f32.mrb[0].mxu0
    %v4245 = vadd.f32 %v4147, %v4244
    %v4246 = vpop.f32.mrb[0].mxu0
    %v4247 = vadd.f32 %v4151, %v4246
    %4248 = vmatprep.mubr.bf16.mxu0 0
    %4249 = vmatmul.mubr.bf16.gmra.mrb[0].mxu0 %v4198
    %v4250 = vpop.f32.mrb[0].mxu0
    %v4251 = vadd.f32 %v4147, %v4250
    %v4252 = vpop.f32.mrb[0].mxu0
    %v4253 = vadd.f32 %v4151, %v4252
    %v4254 = vpop.f32.mrb[0].mxu0
    %v4255 = vadd.f32 %v4147, %v4254
    %v4256 = vpop.f32.mrb[0].mxu0
    %v4257 = vadd.f32 %v4151, %v4256
    %4258 = vmatprep.mubr.bf16.mxu0 0
    %4259 = vmatmul.mubr.bf16.gmra.mrb[0].mxu0 %v4201
    %v4260 = vpop.f32.mrb[0].mxu0
    %v4261 = vadd.f32 %v4147, %v4260
    %v4262 = vpop.f32.mrb[0].mxu0
    %v4263 = vadd.f32 %v4151, %v4262
    %v4264 = vpop.f32.mrb[0].mxu0
    %v4265 = vadd.f32 %v4147, %v4264
    %v4266 = vpop.f32.mrb[0].mxu0
    %v4267 = vadd.f32 %v4151, %v4266
    %4268 = vmatprep.mubr.bf16.mxu0 0
    %4269 = vmatmul.mubr.bf16.gmra.mrb[0].mxu0 %v4204
    %v4270 = vpop.f32.mrb[0].mxu0
    %v4271 = vadd.f32 %v4147, %v4270
    %v4272 = vpop.f32.mrb[0].mxu0
    %v4273 = vadd.f32 %v4151, %v4272
    %v4274 = vpop.f32.mrb[0].mxu0
    %v4275 = vadd.f32 %v4147, %v4274
    %v4276 = vpop.f32.mrb[0].mxu0
    %v4277 = vadd.f32 %v4151, %v4276
    %4278 = vdwg.mxu0
    %v4279 = vmul.f32 %v4241, 0.5
    %v4280 = vmul.f32 %v4243, 0.5
    %v4281 = vmul.f32 %v4245, 0.5
    %v4282 = vmul.f32 %v4247, 0.5
    %v4283 = vmul.f32 %v4251, 0.5
    %v4284 = vmul.f32 %v4253, 0.5
    %v4285 = vmul.f32 %v4255, 0.5
    %v4286 = vmul.f32 %v4257, 0.5
    %v4287 = vmul.f32 %v4261, 0.5
    %v4288 = vmul.f32 %v4263, 0.5
    %v4289 = vmul.f32 %v4265, 0.5
    %v4290 = vmul.f32 %v4267, 0.5
    %v4291 = vmul.f32 %v4271, 0.5
    %v4292 = vmul.f32 %v4273, 0.5
    %v4293 = vmul.f32 %v4275, 0.5
    %v4294 = vmul.f32 %v4277, 0.5
    %v4295 = vmul.f32 %v4241, 0.044715
    %v4296 = vmul.f32 %v4243, 0.044715
    %v4297 = vmul.f32 %v4245, 0.044715
    %v4298 = vmul.f32 %v4247, 0.044715
    %v4299 = vmul.f32 %v4251, 0.044715
    %v4300 = vmul.f32 %v4253, 0.044715
    %v4301 = vmul.f32 %v4255, 0.044715
    %v4302 = vmul.f32 %v4257, 0.044715
    %v4303 = vmul.f32 %v4261, 0.044715
    %v4304 = vmul.f32 %v4263, 0.044715
    %v4305 = vmul.f32 %v4265, 0.044715
    %v4306 = vmul.f32 %v4267, 0.044715
    %v4307 = vmul.f32 %v4271, 0.044715
    %v4308 = vmul.f32 %v4273, 0.044715
    %v4309 = vmul.f32 %v4275, 0.044715
    %v4310 = vmul.f32 %v4277, 0.044715
    %v4311 = vmul.f32 %v4295, %v4241
    %v4312 = vmul.f32 %v4296, %v4243
    %v4313 = vmul.f32 %v4297, %v4245
    %v4314 = vmul.f32 %v4298, %v4247
    %v4315 = vmul.f32 %v4299, %v4251
    %v4316 = vmul.f32 %v4300, %v4253
    %v4317 = vmul.f32 %v4301, %v4255
    %v4318 = vmul.f32 %v4302, %v4257
    %v4319 = vmul.f32 %v4303, %v4261
    %v4320 = vmul.f32 %v4304, %v4263
    %v4321 = vmul.f32 %v4305, %v4265
    %v4322 = vmul.f32 %v4306, %v4267
    %v4323 = vmul.f32 %v4307, %v4271
    %v4324 = vmul.f32 %v4308, %v4273
    %v4325 = vmul.f32 %v4309, %v4275
    %v4326 = vmul.f32 %v4310, %v4277
    %v4327 = vmul.f32 %v4311, %v4241
    %v4328 = vmul.f32 %v4312, %v4243
    %v4329 = vmul.f32 %v4313, %v4245
    %v4330 = vmul.f32 %v4314, %v4247
    %v4331 = vmul.f32 %v4315, %v4251
    %v4332 = vmul.f32 %v4316, %v4253
    %v4333 = vmul.f32 %v4317, %v4255
    %v4334 = vmul.f32 %v4318, %v4257
    %v4335 = vmul.f32 %v4319, %v4261
    %v4336 = vmul.f32 %v4320, %v4263
    %v4337 = vmul.f32 %v4321, %v4265
    %v4338 = vmul.f32 %v4322, %v4267
    %v4339 = vmul.f32 %v4323, %v4271
    %v4340 = vmul.f32 %v4324, %v4273
    %v4341 = vmul.f32 %v4325, %v4275
    %v4342 = vmul.f32 %v4326, %v4277
    %v4343 = vadd.f32 %v4241, %v4327
    %v4344 = vadd.f32 %v4243, %v4328
    %v4345 = vadd.f32 %v4245, %v4329
    %v4346 = vadd.f32 %v4247, %v4330
    %v4347 = vadd.f32 %v4251, %v4331
    %v4348 = vadd.f32 %v4253, %v4332
    %v4349 = vadd.f32 %v4255, %v4333
    %v4350 = vadd.f32 %v4257, %v4334
    %v4351 = vadd.f32 %v4261, %v4335
    %v4352 = vadd.f32 %v4263, %v4336
    %v4353 = vadd.f32 %v4265, %v4337
    %v4354 = vadd.f32 %v4267, %v4338
    %v4355 = vadd.f32 %v4271, %v4339
    %v4356 = vadd.f32 %v4273, %v4340
    %v4357 = vadd.f32 %v4275, %v4341
    %v4358 = vadd.f32 %v4277, %v4342
    %v4359 = vmul.f32 %v4343, 0.7978846
    %v4360 = vmul.f32 %v4344, 0.7978846
    %v4361 = vmul.f32 %v4345, 0.7978846
    %v4362 = vmul.f32 %v4346, 0.7978846
    %v4363 = vmul.f32 %v4347, 0.7978846
    %v4364 = vmul.f32 %v4348, 0.7978846
    %v4365 = vmul.f32 %v4349, 0.7978846
    %v4366 = vmul.f32 %v4350, 0.7978846
    %v4367 = vmul.f32 %v4351, 0.7978846
    %v4368 = vmul.f32 %v4352, 0.7978846
    %v4369 = vmul.f32 %v4353, 0.7978846
    %v4370 = vmul.f32 %v4354, 0.7978846
    %v4371 = vmul.f32 %v4355, 0.7978846
    %v4372 = vmul.f32 %v4356, 0.7978846
    %v4373 = vmul.f32 %v4357, 0.7978846
    %v4374 = vmul.f32 %v4358, 0.7978846
    %v4375 = vtanh.pop %v4359
    %v4376 = vtanh.pop %v4360
    %v4377 = vtanh.pop %v4361
    %v4378 = vtanh.pop %v4362
    %v4379 = vtanh.pop %v4363
    %v4380 = vtanh.pop %v4364
    %v4381 = vtanh.pop %v4365
    %v4382 = vtanh.pop %v4366
    %v4383 = vtanh.pop %v4367
    %v4384 = vtanh.pop %v4368
    %v4385 = vtanh.pop %v4369
    %v4386 = vtanh.pop %v4370
    %v4387 = vtanh.pop %v4371
    %v4388 = vtanh.pop %v4372
    %v4389 = vtanh.pop %v4373
    %v4390 = vtanh.pop %v4374
    %v4391 = vadd.f32 %v4375, 1.0
    %v4392 = vadd.f32 %v4376, 1.0
    %v4393 = vadd.f32 %v4377, 1.0
    %v4394 = vadd.f32 %v4378, 1.0
    %v4395 = vadd.f32 %v4379, 1.0
    %v4396 = vadd.f32 %v4380, 1.0
    %v4397 = vadd.f32 %v4381, 1.0
    %v4398 = vadd.f32 %v4382, 1.0
    %v4399 = vadd.f32 %v4383, 1.0
    %v4400 = vadd.f32 %v4384, 1.0
    %v4401 = vadd.f32 %v4385, 1.0
    %v4402 = vadd.f32 %v4386, 1.0
    %v4403 = vadd.f32 %v4387, 1.0
    %v4404 = vadd.f32 %v4388, 1.0
    %v4405 = vadd.f32 %v4389, 1.0
    %v4406 = vadd.f32 %v4390, 1.0
    %v4407 = vmul.f32 %v4279, %v4391
    %v4408 = vmul.f32 %v4280, %v4392
    %v4409 = vmul.f32 %v4281, %v4393
    %v4410 = vmul.f32 %v4282, %v4394
    %v4411 = vmul.f32 %v4283, %v4395
    %v4412 = vmul.f32 %v4284, %v4396
    %v4413 = vmul.f32 %v4285, %v4397
    %v4414 = vmul.f32 %v4286, %v4398
    %v4415 = vmul.f32 %v4287, %v4399
    %v4416 = vmul.f32 %v4288, %v4400
    %v4417 = vmul.f32 %v4289, %v4401
    %v4418 = vmul.f32 %v4290, %v4402
    %v4419 = vmul.f32 %v4291, %v4403
    %v4420 = vmul.f32 %v4292, %v4404
    %v4421 = vmul.f32 %v4293, %v4405
    %v4422 = vmul.f32 %v4294, %v4406
    %v4423 = vpack.c.bf16 %v4409, %v4407
    %v4424 = vpack.c.bf16 %v4410, %v4408
    %v4425 = vpack.c.bf16 %v4413, %v4411
    %v4426 = vpack.c.bf16 %v4414, %v4412
    %v4427 = vpack.c.bf16 %v4417, %v4415
    %v4428 = vpack.c.bf16 %v4418, %v4416
    %v4429 = vpack.c.bf16 %v4421, %v4419
    %v4430 = vpack.c.bf16 %v4422, %v4420
    %s4431 = scalar_lea.vmem %s18, 128
    %v4432 = vld [vmem:[%s4431] sm:$0xf]
    %v4433 = vld [vmem:[%s4431 + $0x4] sm:$0xf]
    %v4434 = vld [vmem:[%s4431 + $0x8] sm:$0xf]
    %v4435 = vld [vmem:[%s4431 + $0xc] sm:$0xf]
    %v4436 = vld [vmem:[%s4431 + $0x10] sm:$0xf]
    %v4437 = vld [vmem:[%s4431 + $0x14] sm:$0xf]
    %v4438 = vld [vmem:[%s4431 + $0x18] sm:$0xf]
    %v4439 = vld [vmem:[%s4431 + $0x1c] sm:$0xf]
    %v4440 = vld [vmem:[%s4431 + $0x20] sm:$0xf]
    %v4441 = vld [vmem:[%s4431 + $0x24] sm:$0xf]
    %v4442 = vld [vmem:[%s4431 + $0x28] sm:$0xf]
    %v4443 = vld [vmem:[%s4431 + $0x2c] sm:$0xf]
    %v4444 = vld [vmem:[%s4431 + $0x30] sm:$0xf]
    %v4445 = vld [vmem:[%s4431 + $0x34] sm:$0xf]
    %v4446 = vld [vmem:[%s4431 + $0x38] sm:$0xf]
    %v4447 = vld [vmem:[%s4431 + $0x3c] sm:$0xf]
    %v4448 = vld [vmem:[%s4431 + $0x40] sm:$0xf]
    %v4449 = vld [vmem:[%s4431 + $0x44] sm:$0xf]
    %v4450 = vld [vmem:[%s4431 + $0x48] sm:$0xf]
    %v4451 = vld [vmem:[%s4431 + $0x4c] sm:$0xf]
    %v4452 = vld [vmem:[%s4431 + $0x50] sm:$0xf]
    %v4453 = vld [vmem:[%s4431 + $0x54] sm:$0xf]
    %v4454 = vld [vmem:[%s4431 + $0x58] sm:$0xf]
    %v4455 = vld [vmem:[%s4431 + $0x5c] sm:$0xf]
    %v4456 = vld [vmem:[%s4431 + $0x60] sm:$0xf]
    %v4457 = vld [vmem:[%s4431 + $0x64] sm:$0xf]
    %v4458 = vld [vmem:[%s4431 + $0x68] sm:$0xf]
    %v4459 = vld [vmem:[%s4431 + $0x6c] sm:$0xf]
    %v4460 = vld [vmem:[%s4431 + $0x70] sm:$0xf]
    %v4461 = vld [vmem:[%s4431 + $0x74] sm:$0xf]
    %v4462 = vld [vmem:[%s4431 + $0x78] sm:$0xf]
    %v4463 = vld [vmem:[%s4431 + $0x7c] sm:$0xf]
    %s4464 = scalar_lea.vmem %s19, 1
    %v4465 = vld [vmem:[%s4464] sm:$0x1]
    %v4467 = vlaneseq
    %v4468 = vshrl.u32 %v4467, 7
    %v4469 = vsub.s32 0, %v4468
    %v4470 = vrot.slane %v4465, %v4469
    %v4504 = vunpack.c.l.b16 %v4432
    %v4505 = vunpack.c.l.b16 %v4433
    %v4506 = vunpack.c.l.b16 %v4434
    %v4507 = vunpack.c.l.b16 %v4435
    %v4508 = vunpack.c.l.b16 %v4436
    %v4509 = vunpack.c.l.b16 %v4437
    %v4510 = vunpack.c.l.b16 %v4438
    %v4511 = vunpack.c.l.b16 %v4439
    %v4512 = vunpack.c.l.b16 %v4440
    %v4513 = vunpack.c.l.b16 %v4441
    %v4514 = vunpack.c.l.b16 %v4442
    %v4515 = vunpack.c.l.b16 %v4443
    %v4516 = vunpack.c.l.b16 %v4444
    %v4517 = vunpack.c.l.b16 %v4445
    %v4518 = vunpack.c.l.b16 %v4446
    %v4519 = vunpack.c.l.b16 %v4447
    %v4520 = vunpack.c.l.b16 %v4448
    %v4521 = vunpack.c.l.b16 %v4449
    %v4522 = vunpack.c.l.b16 %v4450
    %v4523 = vunpack.c.l.b16 %v4451
    %v4524 = vunpack.c.l.b16 %v4452
    %v4525 = vunpack.c.l.b16 %v4453
    %v4526 = vunpack.c.l.b16 %v4454
    %v4527 = vunpack.c.l.b16 %v4455
    %v4528 = vunpack.c.l.b16 %v4456
    %v4529 = vunpack.c.l.b16 %v4457
    %v4530 = vunpack.c.l.b16 %v4458
    %v4531 = vunpack.c.l.b16 %v4459
    %v4532 = vunpack.c.l.b16 %v4460
    %v4533 = vunpack.c.l.b16 %v4461
    %v4534 = vunpack.c.l.b16 %v4462
    %v4535 = vunpack.c.l.b16 %v4463
    %v4536 = vpack.c.b16 %v4505, %v4504
    %v4537 = vpack.c.b16 %v4507, %v4506
    %v4538 = vpack.c.b16 %v4509, %v4508
    %v4539 = vpack.c.b16 %v4511, %v4510
    %v4540 = vpack.c.b16 %v4513, %v4512
    %v4541 = vpack.c.b16 %v4515, %v4514
    %v4542 = vpack.c.b16 %v4517, %v4516
    %v4543 = vpack.c.b16 %v4519, %v4518
    %v4544 = vpack.c.b16 %v4521, %v4520
    %v4545 = vpack.c.b16 %v4523, %v4522
    %v4546 = vpack.c.b16 %v4525, %v4524
    %v4547 = vpack.c.b16 %v4527, %v4526
    %v4548 = vpack.c.b16 %v4529, %v4528
    %v4549 = vpack.c.b16 %v4531, %v4530
    %v4550 = vpack.c.b16 %v4533, %v4532
    %v4551 = vpack.c.b16 %v4535, %v4534
    %4568 = vmatprep.subr.bf16.mxu0 0
    %4569 = vmatpush1.bf16.msra.mxu0 %v4536
    %4570 = vmatprep.subr.bf16.mxu0 0
    %4571 = vmatpush1.bf16.msra.mxu0 %v4537
    %4572 = vmatprep.subr.bf16.mxu0 0
    %4573 = vmatpush1.bf16.msra.mxu0 %v4538
    %4574 = vmatprep.subr.bf16.mxu0 0
    %4575 = vmatpush1.bf16.msra.mxu0 %v4539
    %4576 = vmatprep.subr.bf16.mxu0 0
    %4577 = vmatpush1.bf16.msra.mxu0 %v4540
    %4578 = vmatprep.subr.bf16.mxu0 0
    %4579 = vmatpush1.bf16.msra.mxu0 %v4541
    %4580 = vmatprep.subr.bf16.mxu0 0
    %4581 = vmatpush1.bf16.msra.mxu0 %v4542
    %4582 = vmatprep.subr.bf16.mxu0 0
    %4583 = vmatpush1.bf16.msra.mxu0 %v4543
    %4584 = vmatprep.subr.bf16.mxu0 0
    %4585 = vmatpush1.bf16.msra.mxu0 %v4544
    %4586 = vmatprep.subr.bf16.mxu0 0
    %4587 = vmatpush1.bf16.msra.mxu0 %v4545
    %4588 = vmatprep.subr.bf16.mxu0 0
    %4589 = vmatpush1.bf16.msra.mxu0 %v4546
    %4590 = vmatprep.subr.bf16.mxu0 0
    %4591 = vmatpush1.bf16.msra.mxu0 %v4547
    %4592 = vmatprep.subr.bf16.mxu0 0
    %4593 = vmatpush1.bf16.msra.mxu0 %v4548
    %4594 = vmatprep.subr.bf16.mxu0 0
    %4595 = vmatpush1.bf16.msra.mxu0 %v4549
    %4596 = vmatprep.subr.bf16.mxu0 0
    %4597 = vmatpush1.bf16.msra.mxu0 %v4550
    %4598 = vmatprep.subr.bf16.mxu0 0
    %4599 = vmatpush1.bf16.msra.mxu0 %v4551
    %4600 = vmatprep.mubr.bf16.mxu0 %v4424
    %4601 = vmatmul.mubr.bf16.gmra.mrb[0].mxu0 %v4423
    %v4602 = vpop.f32.mrb[0].mxu0
    %v4603 = vadd.f32 %v4470, %v4602
    %v4604 = vpop.f32.mrb[0].mxu0
    %v4605 = vpop.f32.mrb[0].mxu0
    %v4606 = vadd.f32 %v4470, %v4605
    %v4607 = vpop.f32.mrb[0].mxu0
    %4608 = vmatprep.mubr.bf16.mxu0 %v4426
    %4609 = vmatmul.mubr.bf16.gmra.mrb[0].mxu0 %v4425
    %v4610 = vpop.f32.mrb[0].mxu0
    %v4611 = vpop.f32.mrb[0].mxu0
    %v4612 = vpop.f32.mrb[0].mxu0
    %v4613 = vpop.f32.mrb[0].mxu0
    %4614 = vmatprep.mubr.bf16.mxu0 %v4428
    %4615 = vmatmul.mubr.bf16.gmra.mrb[0].mxu0 %v4427
    %v4616 = vpop.f32.mrb[0].mxu0
    %v4617 = vadd.f32 %v4470, %v4616
    %v4618 = vpop.f32.mrb[0].mxu0
    %v4619 = vpop.f32.mrb[0].mxu0
    %v4620 = vadd.f32 %v4470, %v4619
    %v4621 = vpop.f32.mrb[0].mxu0
    %4622 = vmatprep.mubr.bf16.mxu0 %v4430
    %4623 = vmatmul.mubr.bf16.gmra.mrb[0].mxu0 %v4429
    %v4624 = vpop.f32.mrb[0].mxu0
    %v4625 = vpop.f32.mrb[0].mxu0
    %v4626 = vpop.f32.mrb[0].mxu0
    %v4627 = vpop.f32.mrb[0].mxu0
    %4628 = vdwg.mxu0
    %v4629 = vlaneseq
    %v4630 = vshrl.u32 %v4629, 7
    %v4631 = vsub.s32 0, %v4630
    %v4632 = vrot.slane %v2775, %v4631
    %v4633 = vlaneseq
    %v4634 = vshrl.u32 %v4633, 7
    %v4635 = vsub.s32 0, %v4634
    %v4636 = vrot.slane %v2782, %v4635
    %4643 = vrot.lane.b32.xlu0 %v4603, 64
    %v4644 = vpop.permute.xlu0 %4643
    %4645 = vrot.lane.b32.xlu0 %v4606, 64
    %v4646 = vpop.permute.xlu0 %4645
    %4647 = vrot.lane.b32.xlu0 %v4617, 64
    %v4648 = vpop.permute.xlu0 %4647
    %4649 = vrot.lane.b32.xlu0 %v4620, 64
    %v4650 = vpop.permute.xlu0 %4649
    %v4655 = vmul.f32 %v4632, %v4644
    %v4656 = vmul.f32 %v4632, %v4646
    %v4657 = vmul.f32 %v4636, %v4648
    %v4658 = vmul.f32 %v4636, %v4650
    %4663 = vrot.lane.b32.xlu0 %v4655, 64
    %v4664 = vpop.permute.xlu0 %4663
    %4665 = vrot.lane.b32.xlu0 %v4656, 64
    %v4666 = vpop.permute.xlu0 %4665
    %4667 = vrot.lane.b32.xlu0 %v4657, 64
    %v4668 = vpop.permute.xlu0 %4667
    %4669 = vrot.lane.b32.xlu0 %v4658, 64
    %v4670 = vpop.permute.xlu0 %4669
    %v4675 = vadd.f32 %v3980, %v4664
    %v4676 = vadd.f32 %v3981, %v4666
    %v4677 = vadd.f32 %v3984, %v4668
    %v4678 = vadd.f32 %v3985, %v4670
    %v4681 = vunpack.c.l.s4 1966171168
    %v4682 = vunpack.c.0.s8 %v4681
    %v4683 = vlaneseq
    %v4684 = vshrl.u32 %v4683, 7
    %v4685 = vsub.s32 %v4682, %v4684
    %v4686 = vrot.slane %v702, %v4685
    %v4687 = vcombine.high %v4686, %v4686
    %v4689 = vunpack.c.l.s4 1966171168
    %v4690 = vunpack.c.0.s8 %v4689
    %v4691 = vlaneseq
    %v4692 = vshrl.u32 %v4691, 7
    %v4693 = vsub.s32 %v4690, %v4692
    %v4694 = vrot.slane %v4686, %v4693
    %v4696 = vunpack.c.l.s4 1966171168
    %v4697 = vunpack.c.0.s8 %v4696
    %v4698 = vlaneseq
    %v4699 = vshrl.u32 %v4698, 7
    %v4700 = vsub.s32 %v4697, %v4699
    %v4701 = vrot.slane %v4687, %v4700
    %v4704 = vsel %vm168, %v4675, 0.0
    %4705 = vadd.xlane.f32.xlu0 %v4704
    %v4706 = vpop.xlane.xlu0 %4705
    %v4707 = vsel %vm168, %v4676, 0.0
    %4708 = vadd.xlane.f32.xlu0 %v4707
    %v4709 = vpop.xlane.xlu0 %4708
    %v4710 = vsel %vm168, %v4677, 0.0
    %4711 = vadd.xlane.f32.xlu0 %v4710
    %v4712 = vpop.xlane.xlu0 %4711
    %v4713 = vsel %vm168, %v4678, 0.0
    %4714 = vadd.xlane.f32.xlu0 %v4713
    %v4715 = vpop.xlane.xlu0 %4714
    %v4716 = vmul.f32 %v4706, %v804
    %v4717 = vmul.f32 %v4709, %v804
    %v4718 = vmul.f32 %v4712, %v804
    %v4719 = vmul.f32 %v4715, %v804
    %v4720 = vsub.f32 %v4675, %v4716
    %v4721 = vsub.f32 %v4676, %v4717
    %v4722 = vsub.f32 %v4677, %v4718
    %v4723 = vsub.f32 %v4678, %v4719
    %v4724 = vmul.f32 %v4720, %v4720
    %v4725 = vmul.f32 %v4721, %v4721
    %v4726 = vmul.f32 %v4722, %v4722
    %v4727 = vmul.f32 %v4723, %v4723
    %v4728 = vsel %vm168, %v4724, 0.0
    %4729 = vadd.xlane.f32.xlu0 %v4728
    %v4730 = vpop.xlane.xlu0 %4729
    %v4731 = vsel %vm168, %v4725, 0.0
    %4732 = vadd.xlane.f32.xlu0 %v4731
    %v4733 = vpop.xlane.xlu0 %4732
    %v4734 = vsel %vm168, %v4726, 0.0
    %4735 = vadd.xlane.f32.xlu0 %v4734
    %v4736 = vpop.xlane.xlu0 %4735
    %v4737 = vsel %vm168, %v4727, 0.0
    %4738 = vadd.xlane.f32.xlu0 %v4737
    %v4739 = vpop.xlane.xlu0 %4738
    %v4740 = vmul.f32 %v4730, %v804
    %v4741 = vmul.f32 %v4733, %v804
    %v4742 = vmul.f32 %v4736, %v804
    %v4743 = vmul.f32 %v4739, %v804
    %v4744 = vadd.f32 %v4740, 1e-06
    %v4745 = vadd.f32 %v4741, 1e-06
    %v4746 = vadd.f32 %v4742, 1e-06
    %v4747 = vadd.f32 %v4743, 1e-06
    %v4748 = vrsqrt.pop %v4744
    %v4749 = vrsqrt.pop %v4745
    %v4750 = vrsqrt.pop %v4746
    %v4751 = vrsqrt.pop %v4747
    %v4752 = vmul.f32 %v4720, %v4748
    %v4753 = vmul.f32 %v4721, %v4749
    %v4754 = vmul.f32 %v4722, %v4750
    %v4755 = vmul.f32 %v4723, %v4751
    %v4756 = vadd.f32 %v4694, 1.0
    %v4757 = vadd.f32 %v4701, 1.0
    %v4760 = vlaneseq
    %v4761 = vshrl.u32 %v4760, 7
    %v4762 = vsub.s32 0, %v4761
    %v4763 = vrot.slane %v4756, %v4762
    %v4764 = vlaneseq
    %v4765 = vshrl.u32 %v4764, 7
    %v4766 = vsub.s32 0, %v4765
    %v4767 = vrot.slane %v4757, %v4766
    %4768 = vrot.lane.b32.xlu0 %v4763, 64
    %v4769 = vpop.permute.xlu0 %4768
    %4770 = vrot.lane.b32.xlu0 %v4767, 64
    %v4771 = vpop.permute.xlu0 %4770
    %v4774 = vmul.f32 %v4752, %v4769
    %v4775 = vmul.f32 %v4753, %v4769
    %v4776 = vmul.f32 %v4754, %v4771
    %v4777 = vmul.f32 %v4755, %v4771
    %v4778 = vlaneseq
    %v4779 = vshrl.u32 %v4778, 7
    %v4780 = vsub.s32 0, %v4779
    %v4781 = vrot.slane %v4694, %v4780
    %v4782 = vlaneseq
    %v4783 = vshrl.u32 %v4782, 7
    %v4784 = vsub.s32 0, %v4783
    %v4785 = vrot.slane %v4701, %v4784
    %v4788 = vadd.f32 %v4774, %v4781
    %v4789 = vadd.f32 %v4775, %v4781
    %v4790 = vadd.f32 %v4776, %v4785
    %v4791 = vadd.f32 %v4777, %v4785
    %v4792 = vpack.c.bf16 %v4789, %v4788
    %v4793 = vpack.c.bf16 %v4791, %v4790
    %v4794 = vld [vmem:[%s20] sm:$0xf]
    %v4795 = vld [vmem:[%s20 + $0x4] sm:$0xf]
    %v4796 = vld [vmem:[%s20 + $0x8] sm:$0xf]
    %v4797 = vld [vmem:[%s20 + $0xc] sm:$0xf]
    %v4798 = vld [vmem:[%s20 + $0x10] sm:$0xf]
    %v4799 = vld [vmem:[%s20 + $0x14] sm:$0xf]
    %v4800 = vld [vmem:[%s20 + $0x18] sm:$0xf]
    %v4801 = vld [vmem:[%s20 + $0x1c] sm:$0xf]
    %v4810 = vunpack.c.l.b16 %v4794
    %v4811 = vunpack.c.l.b16 %v4795
    %v4812 = vunpack.c.l.b16 %v4796
    %v4813 = vunpack.c.l.b16 %v4797
    %v4814 = vunpack.c.l.b16 %v4798
    %v4815 = vunpack.c.l.b16 %v4799
    %v4816 = vunpack.c.l.b16 %v4800
    %v4817 = vunpack.c.l.b16 %v4801
    %v4818 = vpack.c.b16 %v4811, %v4810
    %v4819 = vpack.c.b16 %v4813, %v4812
    %v4820 = vpack.c.b16 %v4815, %v4814
    %v4821 = vpack.c.b16 %v4817, %v4816
    %v4827 = vsel %vm168, %v4792, 0
    %v4830 = vsel %vm168, %v4793, 0
    %4832 = vmatprep.subr.bf16.mxu0 0
    %4833 = vmatpush1.bf16.msra.mxu0 %v4818
    %4834 = vmatprep.subr.bf16.mxu0 0
    %4835 = vmatpush1.bf16.msra.mxu0 %v4819
    %4836 = vmatprep.subr.bf16.mxu0 0
    %4837 = vmatpush1.bf16.msra.mxu0 %v4820
    %4838 = vmatprep.subr.bf16.mxu0 0
    %4839 = vmatpush1.bf16.msra.mxu0 %v4821
    %4840 = vmatprep.subr.bf16.mxu0 0
    %4841 = vmatpush1.bf16.msra.mxu0 0
    %4842 = vmatprep.subr.bf16.mxu0 0
    %4843 = vmatpush1.bf16.msra.mxu0 0
    %4844 = vmatprep.subr.bf16.mxu0 0
    %4845 = vmatpush1.bf16.msra.mxu0 0
    %4846 = vmatprep.subr.bf16.mxu0 0
    %4847 = vmatpush1.bf16.msra.mxu0 0
    %4848 = vmatprep.subr.bf16.mxu0 0
    %4849 = vmatpush1.bf16.msra.mxu0 0
    %4850 = vmatprep.subr.bf16.mxu0 0
    %4851 = vmatpush1.bf16.msra.mxu0 0
    %4852 = vmatprep.subr.bf16.mxu0 0
    %4853 = vmatpush1.bf16.msra.mxu0 0
    %4854 = vmatprep.subr.bf16.mxu0 0
    %4855 = vmatpush1.bf16.msra.mxu0 0
    %4856 = vmatprep.subr.bf16.mxu0 0
    %4857 = vmatpush1.bf16.msra.mxu0 0
    %4858 = vmatprep.subr.bf16.mxu0 0
    %4859 = vmatpush1.bf16.msra.mxu0 0
    %4860 = vmatprep.subr.bf16.mxu0 0
    %4861 = vmatpush1.bf16.msra.mxu0 0
    %4862 = vmatprep.subr.bf16.mxu0 0
    %4863 = vmatpush1.bf16.msra.mxu0 0
    %4864 = vmatprep.mubr.bf16.mxu0 0
    %4865 = vmatmul.mubr.bf16.gmra.mrb[0].mxu0 %v4827
    %v4866 = vpop.f32.mrb[0].mxu0
    %v4867 = vadd.f32 0.0, %v4866
    %v4868 = vpop.f32.mrb[0].mxu0
    %v4869 = vpop.f32.mrb[0].mxu0
    %v4870 = vadd.f32 0.0, %v4869
    %v4871 = vpop.f32.mrb[0].mxu0
    %4872 = vmatprep.mubr.bf16.mxu0 0
    %4873 = vmatmul.mubr.bf16.gmra.mrb[0].mxu0 %v4830
    %v4874 = vpop.f32.mrb[0].mxu0
    %v4875 = vadd.f32 0.0, %v4874
    %v4876 = vpop.f32.mrb[0].mxu0
    %v4877 = vpop.f32.mrb[0].mxu0
    %v4878 = vadd.f32 0.0, %v4877
    %v4879 = vpop.f32.mrb[0].mxu0
    %4880 = vdwg.mxu0
    %v4881 = vsub.f32 %v4867, %v130
    %v4882 = vsub.f32 %v4870, %v131
    %v4883 = vsub.f32 %v4875, %v132
    %v4884 = vsub.f32 %v4878, %v133
    %v4885 = vmul.f32 %v4881, %v4881
    %v4886 = vmul.f32 %v4882, %v4882
    %v4887 = vmul.f32 %v4883, %v4883
    %v4888 = vmul.f32 %v4884, %v4884
    %v4889 = vsel %vm168, %v4885, 0.0
    %v4890 = vsel %vm168, %v4886, 0.0
    %v4891 = vadd.f32 %v4889, %v4890
    %v4892 = vsel %vm168, %v4887, 0.0
    %v4893 = vadd.f32 %v4891, %v4892
    %v4894 = vsel %vm168, %v4888, 0.0
    %v4895 = vadd.f32 %v4893, %v4894
    %4896 = vadd.xlane.f32.xlu0 %v4895
    %v4897 = vpop.xlane.xlu0 %4896
    %v4898 = vrot.slane %v4897, 4
    %v4899 = vadd.f32 %v4897, %v4898
    %v4900 = vrot.slane %v4899, 2
    %v4901 = vadd.f32 %v4899, %v4900
    %v4902 = vrot.slane %v4901, 1
    %v4903 = vadd.f32 %v4901, %v4902
    %s4904 = vtos %v4903
    %s4905 = scalar_lea.smem [#allocation3], 0
    %4906 = sst [smem:[%s4905]] %s4904
    // Predicated region
    $region86: #{diffusion_decoder_forward.11} parent=1 // pred_check
      _
    $region87: #{diffusion_decoder_forward.11} parent=1 // pred_check_branch
      %4908 = sbr.rel (0) target = $region89
    $region88: #{diffusion_decoder_forward.11} parent=1 // pred_region
      %s4910 = ssub.s32 16, 16
      %4911 = vsyncadd [#allocation4], %s4910
      %4914 = dma.smem_to_hbm [#allocation3], 16, %s21, [#allocation4]
    $region89: #{diffusion_decoder_forward.11} parent=1 // pred_fallthru
      _
    // Predicated region
    $region90: #{diffusion_decoder_forward.11} parent=1 // pred_check
      _
    $region91: #{diffusion_decoder_forward.11} parent=1 // pred_check_branch
      %4916 = sbr.rel (0) target = $region93
    $region92: #{diffusion_decoder_forward.11} parent=1 // pred_region
      %4917 = dma.done [#allocation4], 16
    $region93: #{diffusion_decoder_forward.11} parent=1 // pred_fallthru
      _
    %4918 = sfence
    %4919 = vsyncpa [#allocation4], 1

</llo_original>
